<compile_context>
chip_gen: v5e
topology: v5e:2x2
jax: 0.10.0
libtpu: 0.0.40
codegen_flags: <defaults>
</compile_context>

<pallas_src>
import math
from functools import partial

import jax
import jax.numpy as jnp
from jax.experimental import pallas as pl
from jax.experimental.pallas import tpu as pltpu


# --------------------------------------------------------------------------------------
# Kernel body: one (batch-tile, column-tile) block of the state update.
# --------------------------------------------------------------------------------------
def _mlstm_cell_kernel(x_ref, w_row_ref, b_row_ref, w_col_ref, b_col_ref,
                       c_ref, n_full_ref, n_col_ref,
                       h_out_ref, c_out_ref, n_out_ref):
    H = n_full_ref.shape[-1]
    inv_sqrt_h = 1.0 / math.sqrt(H)

    x = x_ref[...]                               # (TB, I)
    c_prev = c_ref[...]                          # (TB, H, TC) — loaded once, used twice
    n_prev_full = n_full_ref[...]                # (TB, H)

    # Row-oriented gate slab (full H extent): one fused lane-dense MXU matmul.
    pr = jnp.dot(x, w_row_ref[...], preferred_element_type=jnp.float32) + b_row_ref[...]
    q      = pr[:, 0 * H:1 * H]                  # (TB, H)
    v_full = pr[:, 1 * H:2 * H]
    i_full = jnp.exp(pr[:, 2 * H:3 * H])         # exponential input gate (rows)
    f_full = jax.nn.sigmoid(pr[:, 3 * H:4 * H])  # forget gate (rows)

    # Column-block gate slab: only the TC columns owned by this grid step.
    def colproj(g):
        return (jnp.dot(x, w_col_ref[g], preferred_element_type=jnp.float32)
                + b_col_ref[g])
    k_col = colproj(0) * inv_sqrt_h              # (TB, TC)
    o_col = jax.nn.sigmoid(colproj(1))
    i_col = jnp.exp(colproj(2))
    f_col = jax.nn.sigmoid(colproj(3))

    # h_tilde[b, j] = sum_r q[b, r] * C_prev[b, r, j]  for the TC columns of this block,
    # as a batched MXU contraction (no (TB, H, TC) broadcast temporary).
    h_tilde = jnp.einsum('bqr,brj->bqj', q[:, None, :], c_prev,
                         preferred_element_type=jnp.float32)[:, 0, :]     # (TB, TC)

    # denominator = max(|n_prev . q|, 1) per batch row (exact; hidden under the C DMA).
    denom = jnp.maximum(jnp.abs(jnp.sum(n_prev_full * q, axis=-1, keepdims=True)), 1.0)
    inv_denom = 1.0 / denom

    h_out_ref[...] = o_col * h_tilde * inv_denom                          # (TB, TC)
    n_out_ref[...] = f_col * n_col_ref[...] + i_col * k_col               # (TB, TC)

    # C update; fold i into v so the dominant (TB, H, TC) loop is 2 muls + 1 add.
    iv = i_full * v_full
    c_out_ref[...] = (f_full[:, :, None] * c_prev
                      + iv[:, :, None] * k_col[:, None, :])


# --------------------------------------------------------------------------------------
# Tile / VMEM budgeting (generation-aware).
# --------------------------------------------------------------------------------------
def _vmem_capacity_bytes():
    try:
        return int(pltpu.get_tpu_info().vmem_capacity_bytes)
    except Exception:
        return 64 << 20      # conservative (v7x-sized) fallback


def _choose_tiles(batch, hidden, c_block_budget_bytes, min_steps=8):
    """Pick (batch_tile, col_tile) for the (TB, H, TC) C block.

    Largest block under the budget (HBM roofline), then split mildly so the grid has
    enough steps to fill the DMA pipeline / both v7x TensorCores, keeping blocks >=1MiB.
    """
    batch_cands = sorted({batch, *[t for t in range(8, batch + 1, 8) if batch % t == 0]},
                         reverse=True)
    col_cands = sorted({hidden, *[t for t in range(128, hidden + 1, 128) if hidden % t == 0]},
                       reverse=True)
    fits = [(tb, tc) for tb in batch_cands for tc in col_cands
            if tb * hidden * tc * 4 <= c_block_budget_bytes]
    if not fits:
        tb, tc = batch_cands[-1], col_cands[-1]   # smallest legal block; may exceed budget
        return tb, tc
    tb, tc = max(fits, key=lambda p: (p[0] * p[1], p[1]))   # biggest block, prefer wide cols

    def steps(a, b):
        return (batch // a) * (hidden // b)

    while steps(tb, tc) < min_steps:
        smaller_tb = max((t for t in batch_cands if t < tb), default=None)
        smaller_tc = max((t for t in col_cands if t < tc), default=None)
        if smaller_tb is not None and smaller_tb * hidden * tc * 4 >= (1 << 20):
            tb = smaller_tb
        elif smaller_tc is not None and tb * hidden * smaller_tc * 4 >= (1 << 20):
            tc = smaller_tc
        else:
            break
    return tb, tc


# --------------------------------------------------------------------------------------
# pallas_call wrapper.  c_prev is donated so the in-place alias is a real alias.
# --------------------------------------------------------------------------------------
@partial(jax.jit, static_argnames=("batch_tile", "col_tile"), donate_argnums=(2,))
def _mlstm_cell_impl(x, params, c_prev, n_prev, *, batch_tile, col_tile):
    w_row, b_row, w_col, b_col = params
    B, I = x.shape
    H = n_prev.shape[-1]
    tb, tc = batch_tile, col_tile
    assert B % tb == 0 and H % tc == 0, "tiles must divide (B, H)"
    grid = (B // tb, H // tc)

    c_block_bytes = tb * H * tc * 4
    vmem_cap = _vmem_capacity_bytes()
    # in + out C blocks, double-buffered (4x), plus small operands / headroom; capped at
    # 75% of physical VMEM so compiler-internal scratch and semaphores still fit.
    vmem_limit = int(min(int(0.75 * vmem_cap),
                         max(32 << 20, 6 * c_block_bytes + (4 << 20))))

    # Rough roofline numbers so XLA schedules around the call sensibly.
    n_col_steps = H // tc
    cost = pl.CostEstimate(
        flops=int(2 * B * I * 4 * H * n_col_steps + 8 * B * I * H
                  + 5 * B * H * H + 8 * B * H),
        transcendentals=int(2 * B * H * n_col_steps + 3 * B * H),
        bytes_accessed=int(4 * (2 * B * H * H + 3 * B * H + B * I * n_col_steps
                                + 8 * I * H)),
    )

    out_shape = (
        jax.ShapeDtypeStruct((B, H), jnp.float32),      # h
        jax.ShapeDtypeStruct((B, H, H), jnp.float32),   # C
        jax.ShapeDtypeStruct((B, H), jnp.float32),      # n
    )
    return pl.pallas_call(
        _mlstm_cell_kernel,
        out_shape=out_shape,
        grid_spec=pltpu.PrefetchScalarGridSpec(
            num_scalar_prefetch=0,
            grid=grid,
            in_specs=[
                pl.BlockSpec((tb, I), lambda b, j: (b, 0)),            # x
                pl.BlockSpec((I, 4 * H), lambda b, j: (0, 0)),         # row-gate weights
                pl.BlockSpec((1, 4 * H), lambda b, j: (0, 0)),         # row-gate biases
                pl.BlockSpec((4, I, tc), lambda b, j: (0, 0, j)),      # col-gate weights
                pl.BlockSpec((4, 1, tc), lambda b, j: (0, 0, j)),      # col-gate biases
                pl.BlockSpec((tb, H, tc), lambda b, j: (b, 0, j)),     # C_prev (aliased)
                pl.BlockSpec((tb, H), lambda b, j: (b, 0)),            # n_prev (full row)
                pl.BlockSpec((tb, tc), lambda b, j: (b, j)),           # n_prev (col slice)
            ],
            out_specs=(
                pl.BlockSpec((tb, tc), lambda b, j: (b, j)),           # h
                pl.BlockSpec((tb, H, tc), lambda b, j: (b, 0, j)),     # C
                pl.BlockSpec((tb, tc), lambda b, j: (b, j)),           # n
            ),
        ),
        # In-place matrix-memory update: c_prev -> C (requires caller-side donation,
        # which the jit above provides via donate_argnums).
        input_output_aliases={5: 1},
        compiler_params=pltpu.CompilerParams(
            dimension_semantics=("parallel", "parallel"),
            vmem_limit_bytes=vmem_limit),
        cost_estimate=cost,
    )(x, w_row, b_row, w_col, b_col, c_prev, n_prev, n_prev)


def mlstm_cell(x, params, hx, *, batch_tile=None, col_tile=None):
    """hx = (h_prev, c_prev, n_prev); h_prev is unused (as in the torch forward).

    c_prev is donated to the kernel (it is updated in place); do not reuse it after."""
    h_prev, c_prev, n_prev = hx
    del h_prev  # not read by the original forward either
    B, _ = x.shape
    H = n_prev.shape[-1]
    vmem_cap = _vmem_capacity_bytes()
    c_block_budget = min(8 << 20, vmem_cap // 10)   # ~8 MiB on 128 MiB parts, ~6 MiB on v7x
    tb, tc = _choose_tiles(B, H, c_block_budget)
    if batch_tile is not None:
        tb = batch_tile
    if col_tile is not None:
        tc = col_tile
    return _mlstm_cell_impl(x, params, c_prev, n_prev, batch_tile=tb, col_tile=tc)


# --------------------------------------------------------------------------------------
# Pure-JAX reference and parameter init (mirrors mLSTMCell.__init__/reset_parameters).
# --------------------------------------------------------------------------------------
def mlstm_cell_ref(x, params, hx):
    w_row, b_row, w_col, b_col = params
    _, c_prev, n_prev = hx
    H = n_prev.shape[-1]
    pr = x @ w_row + b_row
    q = pr[:, 0 * H:1 * H]
    v = pr[:, 1 * H:2 * H]
    i_ = jnp.exp(pr[:, 2 * H:3 * H])
    f_ = jax.nn.sigmoid(pr[:, 3 * H:4 * H])
    k = (x @ w_col[0] + b_col[0]) / math.sqrt(H)
    o_ = jax.nn.sigmoid(x @ w_col[1] + b_col[1])
    h_tilde = jnp.einsum('bh,bhj->bj', q, c_prev)
    denom = jnp.maximum(jnp.abs(jnp.sum(n_prev * q, axis=-1, keepdims=True)), 1.0)
    h = o_ * (h_tilde / denom)
    n = f_ * n_prev + i_ * k
    c = f_[:, :, None] * c_prev + i_[:, :, None] * (v[:, :, None] * k[:, None, :])
    return h, c, n


def init_params(key, input_size, hidden_size):
    """Deterministic init mirroring the torch module, laid out as:
       w_row (I, 4H) = [Wq | Wv | Wi | Wf],  b_row (1, 4H)
       w_col (4, I, H) = [Wk, Wo, Wi, Wf],   b_col (4, 1, H)"""
    ks = jax.random.split(key, 12)
    xavier = lambda k, shape: jax.random.uniform(
        k, shape, jnp.float32,
        -math.sqrt(6.0 / (shape[0] + shape[1])),
        math.sqrt(6.0 / (shape[0] + shape[1])))
    lin_default = lambda k, shape: jax.random.uniform(
        k, shape, jnp.float32,
        -1.0 / math.sqrt(input_size), 1.0 / math.sqrt(input_size))

    # created only for shape fidelity with __init__ (unused by forward)
    _weight_ih = xavier(ks[0], (3 * hidden_size, input_size))
    _weight_hh = xavier(ks[1], (3 * hidden_size, hidden_size))
    _bias = jnp.zeros((3 * hidden_size,), jnp.float32)

    W_q = xavier(ks[2], (hidden_size, input_size))
    W_k = xavier(ks[3], (hidden_size, input_size))
    W_v = xavier(ks[4], (hidden_size, input_size))
    b_q = jnp.zeros((hidden_size,), jnp.float32)
    b_k = jnp.zeros((hidden_size,), jnp.float32)
    b_v = jnp.zeros((hidden_size,), jnp.float32)
    W_i = lin_default(ks[5], (hidden_size, input_size))
    W_f = lin_default(ks[6], (hidden_size, input_size))
    W_o = lin_default(ks[7], (hidden_size, input_size))
    b_i = lin_default(ks[8], (hidden_size,))
    b_f = lin_default(ks[9], (hidden_size,))
    b_o = lin_default(ks[10], (hidden_size,))

    w_row = jnp.concatenate([W_q.T, W_v.T, W_i.T, W_f.T], axis=1)          # (I, 4H)
    b_row = jnp.concatenate([b_q, b_v, b_i, b_f])[None, :]                 # (1, 4H)
    w_col = jnp.stack([W_k.T, W_o.T, W_i.T, W_f.T], axis=0)                # (4, I, H)
    b_col = jnp.stack([b_k, b_o, b_i, b_f], axis=0)[:, None, :]            # (4, 1, H)
    return w_row, b_row, w_col, b_col


if __name__ == "__main__":
    # Keep H a multiple of 128 so column tiles and stores are lane-dense / unmasked.
    batch, input_size, hidden_size = 16, 16, 128
    batch_tile = 8   # grid = (2, 1): pipelined over batch, megacore-splittable on v7x

    key = jax.random.PRNGKey(0)
    k_param, k_x, k_c, k_n = jax.random.split(key, 4)
    params = init_params(k_param, input_size, hidden_size)

    x = jax.random.normal(k_x, (batch, input_size), jnp.float32)
    h_prev = jnp.zeros((batch, hidden_size), jnp.float32)
    c_prev = 0.1 * jax.random.normal(k_c, (batch, hidden_size, hidden_size), jnp.float32)
    n_prev = 0.1 * jax.random.normal(k_n, (batch, hidden_size), jnp.float32)
    hx = (h_prev, c_prev, n_prev)

    # Compute (and finish) the reference first: the kernel donates + overwrites c_prev.
    h_ref, c_ref, n_ref = mlstm_cell_ref(x, params, hx)
    jax.block_until_ready((h_ref, c_ref, n_ref))

    h, c, n = mlstm_cell(x, params, hx, batch_tile=batch_tile)
    jax.block_until_ready((h, c, n))

    assert jnp.allclose(h, h_ref, atol=2e-3, rtol=2e-3), float(jnp.max(jnp.abs(h - h_ref)))
    assert jnp.allclose(c, c_ref, atol=1e-3, rtol=1e-3), float(jnp.max(jnp.abs(c - c_ref)))
    assert jnp.allclose(n, n_ref, atol=1e-3, rtol=1e-3), float(jnp.max(jnp.abs(n - n_ref)))

    print("KERNEL_OK")
</pallas_src>

<mosaic_0001>
module attributes {stable_mosaic.version = 11 : i64} {
  func.func @_mlstm_cell_kernel(%arg0: i32, %arg1: i32, %arg2: memref<8x16xf32, #tpu.memory_space<vmem>>, %arg3: memref<16x512xf32, #tpu.memory_space<vmem>>, %arg4: memref<1x512xf32, #tpu.memory_space<vmem>>, %arg5: memref<4x16x128xf32, #tpu.memory_space<vmem>>, %arg6: memref<4x1x128xf32, #tpu.memory_space<vmem>>, %arg7: memref<8x128x128xf32, #tpu.memory_space<vmem>>, %arg8: memref<8x128xf32, #tpu.memory_space<vmem>>, %arg9: memref<8x128xf32, #tpu.memory_space<vmem>>, %arg10: memref<8x128xf32, #tpu.memory_space<vmem>>, %arg11: memref<8x128x128xf32, #tpu.memory_space<vmem>>, %arg12: memref<8x128xf32, #tpu.memory_space<vmem>>) attributes {dimension_semantics = [#tpu.dimension_semantics<parallel>, #tpu.dimension_semantics<parallel>], iteration_bounds = array<i64: 2, 1>, scalar_prefetch = 0 : i64, scratch_operands = 0 : i64, tpu.core_type = #tpu.core_type<tc>, window_params = [{transform_indices = @transform_0, window_bounds = array<i64: 8, 16>}, {pipeline_mode = #tpu.pipeline_mode<synchronous>, transform_indices = @transform_1, window_bounds = array<i64: 16, 512>}, {pipeline_mode = #tpu.pipeline_mode<synchronous>, transform_indices = @transform_2, window_bounds = array<i64: 1, 512>}, {transform_indices = @transform_3, window_bounds = array<i64: 4, 16, 128>}, {transform_indices = @transform_4, window_bounds = array<i64: 4, 1, 128>}, {transform_indices = @transform_5, window_bounds = array<i64: 8, 128, 128>}, {transform_indices = @transform_6, window_bounds = array<i64: 8, 128>}, {transform_indices = @transform_7, window_bounds = array<i64: 8, 128>}, {transform_indices = @transform_8, window_bounds = array<i64: 8, 128>}, {transform_indices = @transform_9, window_bounds = array<i64: 8, 128, 128>}, {transform_indices = @transform_10, window_bounds = array<i64: 8, 128>}]} {
    %c0 = arith.constant 0 : index
    %c0_0 = arith.constant 0 : index
    %0 = vector.load %arg2[%c0, %c0_0] : memref<8x16xf32, #tpu.memory_space<vmem>>, vector<8x16xf32>
    %c0_1 = arith.constant 0 : index
    %c0_2 = arith.constant 0 : index
    %c0_3 = arith.constant 0 : index
    %1 = vector.load %arg7[%c0_1, %c0_2, %c0_3] : memref<8x128x128xf32, #tpu.memory_space<vmem>>, vector<8x128x128xf32>
    %c0_4 = arith.constant 0 : index
    %c0_5 = arith.constant 0 : index
    %2 = vector.load %arg8[%c0_4, %c0_5] : memref<8x128xf32, #tpu.memory_space<vmem>>, vector<8x128xf32>
    %c0_6 = arith.constant 0 : index
    %c0_7 = arith.constant 0 : index
    %3 = vector.load %arg3[%c0_6, %c0_7] : memref<16x512xf32, #tpu.memory_space<vmem>>, vector<16x512xf32>
    %cst = arith.constant dense<0.000000e+00> : vector<8x512xf32>
    %4 = tpu.matmul %0, %3, %cst {dimension_numbers = #tpu.dot_dimension_numbers<[1], [0], [0], [1], [0, 0, 1, 1], [], []>} : vector<8x16xf32>, vector<16x512xf32>, vector<8x512xf32> -> vector<8x512xf32>
    %c0_8 = arith.constant 0 : index
    %c0_9 = arith.constant 0 : index
    %5 = vector.load %arg4[%c0_8, %c0_9] : memref<1x512xf32, #tpu.memory_space<vmem>>, vector<1x512xf32>
    %6 = vector.broadcast %5 : vector<1x512xf32> to vector<8x512xf32>
    %7 = arith.addf %4, %6 : vector<8x512xf32>
    %8 = vector.extract_strided_slice %7 {offsets = [0, 0], sizes = [8, 128], strides = [1, 1]} : vector<8x512xf32> to vector<8x128xf32>
    %9 = vector.extract_strided_slice %7 {offsets = [0, 128], sizes = [8, 128], strides = [1, 1]} : vector<8x512xf32> to vector<8x128xf32>
    %10 = vector.extract_strided_slice %7 {offsets = [0, 256], sizes = [8, 128], strides = [1, 1]} : vector<8x512xf32> to vector<8x128xf32>
    %11 = math.exp %10 : vector<8x128xf32>
    %12 = vector.extract_strided_slice %7 {offsets = [0, 384], sizes = [8, 128], strides = [1, 1]} : vector<8x512xf32> to vector<8x128xf32>
    %13 = arith.negf %12 : vector<8x128xf32>
    %14 = math.exp %13 : vector<8x128xf32>
    %cst_10 = arith.constant 1.000000e+00 : f32
    %15 = vector.broadcast %cst_10 : f32 to vector<8x128xf32>
    %16 = arith.addf %15, %14 : vector<8x128xf32>
    %17 = arith.divf %15, %16 : vector<8x128xf32>
    %c0_11 = arith.constant 0 : index
    %c0_12 = arith.constant 0 : index
    %c0_13 = arith.constant 0 : index
    %18 = vector.load %arg5[%c0_11, %c0_12, %c0_13] : memref<4x16x128xf32, #tpu.memory_space<vmem>>, vector<1x16x128xf32>
    %19 = vector.shape_cast %18 : vector<1x16x128xf32> to vector<16x128xf32>
    %cst_14 = arith.constant dense<0.000000e+00> : vector<8x128xf32>
    %20 = tpu.matmul %0, %19, %cst_14 {dimension_numbers = #tpu.dot_dimension_numbers<[1], [0], [0], [1], [0, 0, 1, 1], [], []>} : vector<8x16xf32>, vector<16x128xf32>, vector<8x128xf32> -> vector<8x128xf32>
    %c0_15 = arith.constant 0 : index
    %c0_16 = arith.constant 0 : index
    %c0_17 = arith.constant 0 : index
    %21 = vector.load %arg6[%c0_15, %c0_16, %c0_17] : memref<4x1x128xf32, #tpu.memory_space<vmem>>, vector<1x1x128xf32>
    %22 = vector.shape_cast %21 : vector<1x1x128xf32> to vector<1x128xf32>
    %23 = vector.broadcast %22 : vector<1x128xf32> to vector<8x128xf32>
    %24 = arith.addf %20, %23 : vector<8x128xf32>
    %cst_18 = arith.constant 0.0883883461 : f32
    %25 = vector.broadcast %cst_18 : f32 to vector<8x128xf32>
    %26 = arith.mulf %24, %25 : vector<8x128xf32>
    %c1 = arith.constant 1 : index
    %c0_19 = arith.constant 0 : index
    %c0_20 = arith.constant 0 : index
    %27 = vector.load %arg5[%c1, %c0_19, %c0_20] : memref<4x16x128xf32, #tpu.memory_space<vmem>>, vector<1x16x128xf32>
    %28 = vector.shape_cast %27 : vector<1x16x128xf32> to vector<16x128xf32>
    %cst_21 = arith.constant dense<0.000000e+00> : vector<8x128xf32>
    %29 = tpu.matmul %0, %28, %cst_21 {dimension_numbers = #tpu.dot_dimension_numbers<[1], [0], [0], [1], [0, 0, 1, 1], [], []>} : vector<8x16xf32>, vector<16x128xf32>, vector<8x128xf32> -> vector<8x128xf32>
    %c1_22 = arith.constant 1 : index
    %c0_23 = arith.constant 0 : index
    %c0_24 = arith.constant 0 : index
    %30 = vector.load %arg6[%c1_22, %c0_23, %c0_24] : memref<4x1x128xf32, #tpu.memory_space<vmem>>, vector<1x1x128xf32>
    %31 = vector.shape_cast %30 : vector<1x1x128xf32> to vector<1x128xf32>
    %32 = vector.broadcast %31 : vector<1x128xf32> to vector<8x128xf32>
    %33 = arith.addf %29, %32 : vector<8x128xf32>
    %34 = arith.negf %33 : vector<8x128xf32>
    %35 = math.exp %34 : vector<8x128xf32>
    %cst_25 = arith.constant 1.000000e+00 : f32
    %36 = vector.broadcast %cst_25 : f32 to vector<8x128xf32>
    %37 = arith.addf %36, %35 : vector<8x128xf32>
    %38 = arith.divf %36, %37 : vector<8x128xf32>
    %c2 = arith.constant 2 : index
    %c0_26 = arith.constant 0 : index
    %c0_27 = arith.constant 0 : index
    %39 = vector.load %arg5[%c2, %c0_26, %c0_27] : memref<4x16x128xf32, #tpu.memory_space<vmem>>, vector<1x16x128xf32>
    %40 = vector.shape_cast %39 : vector<1x16x128xf32> to vector<16x128xf32>
    %cst_28 = arith.constant dense<0.000000e+00> : vector<8x128xf32>
    %41 = tpu.matmul %0, %40, %cst_28 {dimension_numbers = #tpu.dot_dimension_numbers<[1], [0], [0], [1], [0, 0, 1, 1], [], []>} : vector<8x16xf32>, vector<16x128xf32>, vector<8x128xf32> -> vector<8x128xf32>
    %c2_29 = arith.constant 2 : index
    %c0_30 = arith.constant 0 : index
    %c0_31 = arith.constant 0 : index
    %42 = vector.load %arg6[%c2_29, %c0_30, %c0_31] : memref<4x1x128xf32, #tpu.memory_space<vmem>>, vector<1x1x128xf32>
    %43 = vector.shape_cast %42 : vector<1x1x128xf32> to vector<1x128xf32>
    %44 = vector.broadcast %43 : vector<1x128xf32> to vector<8x128xf32>
    %45 = arith.addf %41, %44 : vector<8x128xf32>
    %46 = math.exp %45 : vector<8x128xf32>
    %c3 = arith.constant 3 : index
    %c0_32 = arith.constant 0 : index
    %c0_33 = arith.constant 0 : index
    %47 = vector.load %arg5[%c3, %c0_32, %c0_33] : memref<4x16x128xf32, #tpu.memory_space<vmem>>, vector<1x16x128xf32>
    %48 = vector.shape_cast %47 : vector<1x16x128xf32> to vector<16x128xf32>
    %cst_34 = arith.constant dense<0.000000e+00> : vector<8x128xf32>
    %49 = tpu.matmul %0, %48, %cst_34 {dimension_numbers = #tpu.dot_dimension_numbers<[1], [0], [0], [1], [0, 0, 1, 1], [], []>} : vector<8x16xf32>, vector<16x128xf32>, vector<8x128xf32> -> vector<8x128xf32>
    %c3_35 = arith.constant 3 : index
    %c0_36 = arith.constant 0 : index
    %c0_37 = arith.constant 0 : index
    %50 = vector.load %arg6[%c3_35, %c0_36, %c0_37] : memref<4x1x128xf32, #tpu.memory_space<vmem>>, vector<1x1x128xf32>
    %51 = vector.shape_cast %50 : vector<1x1x128xf32> to vector<1x128xf32>
    %52 = vector.broadcast %51 : vector<1x128xf32> to vector<8x128xf32>
    %53 = arith.addf %49, %52 : vector<8x128xf32>
    %54 = arith.negf %53 : vector<8x128xf32>
    %55 = math.exp %54 : vector<8x128xf32>
    %cst_38 = arith.constant 1.000000e+00 : f32
    %56 = vector.broadcast %cst_38 : f32 to vector<8x128xf32>
    %57 = arith.addf %56, %55 : vector<8x128xf32>
    %58 = arith.divf %56, %57 : vector<8x128xf32>
    %59 = vector.shape_cast %8 : vector<8x128xf32> to vector<8x1x128xf32>
    "tpu.trace_start"() <{level = 10 : i32, message = "bqr,brj->bqj"}> : () -> ()
    %cst_39 = arith.constant dense<0.000000e+00> : vector<8x1x128xf32>
    %60 = tpu.matmul %59, %1, %cst_39 {dimension_numbers = #tpu.dot_dimension_numbers<[2], [1], [1], [2], [0, 0, 0, 1, 1, 2], [0], [0]>} : vector<8x1x128xf32>, vector<8x128x128xf32>, vector<8x1x128xf32> -> vector<8x1x128xf32>
    "tpu.trace_stop"() : () -> ()
    %61 = vector.shape_cast %60 : vector<8x1x128xf32> to vector<8x128xf32>
    %62 = arith.mulf %2, %8 : vector<8x128xf32>
    %cst_40 = arith.constant dense<0.000000e+00> : vector<8xf32>
    %63 = vector.multi_reduction <add>, %62, %cst_40 [1] : vector<8x128xf32> to vector<8xf32>
    %64 = vector.shape_cast %63 : vector<8xf32> to vector<8x1xf32>
    %65 = math.absf %64 : vector<8x1xf32>
    %cst_41 = arith.constant 1.000000e+00 : f32
    %66 = vector.broadcast %cst_41 : f32 to vector<8x1xf32>
    %67 = arith.maximumf %65, %66 : vector<8x1xf32>
    %cst_42 = arith.constant 1.000000e+00 : f32
    %68 = vector.broadcast %cst_42 : f32 to vector<8x1xf32>
    %69 = arith.divf %68, %67 : vector<8x1xf32>
    %70 = arith.mulf %38, %61 : vector<8x128xf32>
    %71 = vector.broadcast %69 : vector<8x1xf32> to vector<8x128xf32>
    %72 = arith.mulf %70, %71 : vector<8x128xf32>
    %c0_43 = arith.constant 0 : index
    %c0_44 = arith.constant 0 : index
    %73 = vector.load %arg10[%c0_43, %c0_44] : memref<8x128xf32, #tpu.memory_space<vmem>>, vector<8x128xf32>
    tpu.vector_store %arg10[%c0_43, %c0_44], %72 {strides = array<i32>} : memref<8x128xf32, #tpu.memory_space<vmem>>, vector<8x128xf32>,
    %c0_45 = arith.constant 0 : index
    %c0_46 = arith.constant 0 : index
    %74 = vector.load %arg9[%c0_45, %c0_46] : memref<8x128xf32, #tpu.memory_space<vmem>>, vector<8x128xf32>
    %75 = arith.mulf %58, %74 : vector<8x128xf32>
    %76 = arith.mulf %46, %26 : vector<8x128xf32>
    %77 = arith.addf %75, %76 : vector<8x128xf32>
    %c0_47 = arith.constant 0 : index
    %c0_48 = arith.constant 0 : index
    %78 = vector.load %arg12[%c0_47, %c0_48] : memref<8x128xf32, #tpu.memory_space<vmem>>, vector<8x128xf32>
    tpu.vector_store %arg12[%c0_47, %c0_48], %77 {strides = array<i32>} : memref<8x128xf32, #tpu.memory_space<vmem>>, vector<8x128xf32>,
    %79 = arith.mulf %11, %9 : vector<8x128xf32>
    %80 = vector.shape_cast %17 : vector<8x128xf32> to vector<8x128x1xf32>
    %81 = vector.broadcast %80 : vector<8x128x1xf32> to vector<8x128x128xf32>
    %82 = arith.mulf %81, %1 : vector<8x128x128xf32>
    %83 = vector.shape_cast %79 : vector<8x128xf32> to vector<8x128x1xf32>
    %84 = vector.shape_cast %26 : vector<8x128xf32> to vector<8x1x128xf32>
    %85 = vector.broadcast %83 : vector<8x128x1xf32> to vector<8x128x128xf32>
    %86 = vector.broadcast %84 : vector<8x1x128xf32> to vector<8x128x128xf32>
    %87 = arith.mulf %85, %86 : vector<8x128x128xf32>
    %88 = arith.addf %82, %87 : vector<8x128x128xf32>
    %c0_49 = arith.constant 0 : index
    %c0_50 = arith.constant 0 : index
    %c0_51 = arith.constant 0 : index
    %89 = vector.load %arg11[%c0_49, %c0_50, %c0_51] : memref<8x128x128xf32, #tpu.memory_space<vmem>>, vector<8x128x128xf32>
    tpu.vector_store %arg11[%c0_49, %c0_50, %c0_51], %88 {strides = array<i32>} : memref<8x128x128xf32, #tpu.memory_space<vmem>>, vector<8x128x128xf32>,
    return
  }
  func.func @transform_0(%arg0: i32, %arg1: i32) -> (i32, i32) {
    %c0_i32 = arith.constant 0 : i32
    %c0_i32_0 = arith.constant 0 : i32
    return %arg0, %c0_i32 : i32, i32
  }
  func.func @transform_1(%arg0: i32, %arg1: i32) -> (i32, i32) {
    %c0_i32 = arith.constant 0 : i32
    %c0_i32_0 = arith.constant 0 : i32
    %c0_i32_1 = arith.constant 0 : i32
    return %c0_i32, %c0_i32_0 : i32, i32
  }
  func.func @transform_2(%arg0: i32, %arg1: i32) -> (i32, i32) {
    %c0_i32 = arith.constant 0 : i32
    %c0_i32_0 = arith.constant 0 : i32
    %c0_i32_1 = arith.constant 0 : i32
    return %c0_i32, %c0_i32_0 : i32, i32
  }
  func.func @transform_3(%arg0: i32, %arg1: i32) -> (i32, i32, i32) {
    %c0_i32 = arith.constant 0 : i32
    %c0_i32_0 = arith.constant 0 : i32
    %c0_i32_1 = arith.constant 0 : i32
    return %c0_i32, %c0_i32_0, %arg1 : i32, i32, i32
  }
  func.func @transform_4(%arg0: i32, %arg1: i32) -> (i32, i32, i32) {
    %c0_i32 = arith.constant 0 : i32
    %c0_i32_0 = arith.constant 0 : i32
    %c0_i32_1 = arith.constant 0 : i32
    return %c0_i32, %c0_i32_0, %arg1 : i32, i32, i32
  }
  func.func @transform_5(%arg0: i32, %arg1: i32) -> (i32, i32, i32) {
    %c0_i32 = arith.constant 0 : i32
    %c0_i32_0 = arith.constant 0 : i32
    return %arg0, %c0_i32, %arg1 : i32, i32, i32
  }
  func.func @transform_6(%arg0: i32, %arg1: i32) -> (i32, i32) {
    %c0_i32 = arith.constant 0 : i32
    %c0_i32_0 = arith.constant 0 : i32
    return %arg0, %c0_i32 : i32, i32
  }
  func.func @transform_7(%arg0: i32, %arg1: i32) -> (i32, i32) {
    %c0_i32 = arith.constant 0 : i32
    return %arg0, %arg1 : i32, i32
  }
  func.func @transform_8(%arg0: i32, %arg1: i32) -> (i32, i32) {
    %c0_i32 = arith.constant 0 : i32
    return %arg0, %arg1 : i32, i32
  }
  func.func @transform_9(%arg0: i32, %arg1: i32) -> (i32, i32, i32) {
    %c0_i32 = arith.constant 0 : i32
    %c0_i32_0 = arith.constant 0 : i32
    return %arg0, %c0_i32, %arg1 : i32, i32, i32
  }
  func.func @transform_10(%arg0: i32, %arg1: i32) -> (i32, i32) {
    %c0_i32 = arith.constant 0 : i32
    return %arg0, %arg1 : i32, i32
  }
}

</mosaic_0001>

<llo_original>
// kernel: _mlstm_cell_impl.1
$region0: #{_mlstm_cell_impl.1}
  #allocation0 [shape = 'u32[]', space=smem, size = 0x4, offset = 0x4, fixed_abs, tag = 'smem constant byte address 0x4 - core index']
  #allocation1 [shape = 'u32[72,128]{1,0:T(1,128)}', space=vmem, size = 0x9000, scoped, tag = 'internal scratch']
  %s0 = inlined_call_operand.hbm [shape: f32[16,16], index: 0, kind: input, shape index: {}]
  %s1 = inlined_call_operand.hbm [shape: f32[16,512], index: 1, kind: input, shape index: {}]
  %s2 = inlined_call_operand.hbm [shape: f32[1,512], index: 2, kind: input, shape index: {}]
  %s3 = inlined_call_operand.hbm [shape: f32[4,16,128], index: 3, kind: input, shape index: {}]
  %s4 = inlined_call_operand.hbm [shape: f32[4,1,128], index: 4, kind: input, shape index: {}]
  %s5 = inlined_call_operand.hbm [shape: f32[16,128,128], index: 5, kind: input, shape index: {}, may-alias: {5,9}]
  %s6 = inlined_call_operand.hbm [shape: f32[16,128], index: 6, kind: input, shape index: {}, may-alias: {6,7}]
  %s7 = inlined_call_operand.hbm [shape: f32[16,128], index: 7, kind: input, shape index: {}, may-alias: {6,7}]
  %s8 = inlined_call_operand.hbm [shape: f32[16,128], index: 8, kind: output, shape index: {0}]
  %s9 = inlined_call_operand.hbm [shape: f32[16,128,128], index: 9, kind: output, shape index: {1}, may-alias: {5,9}]
  %s10 = inlined_call_operand.hbm [shape: f32[16,128], index: 10, kind: output, shape index: {2}]
  %11 = xla_tuple %s8, %s9, %s10
  %s12 = sld [smem:[#allocation0]]
  $region113: #{_mlstm_cell_impl.1} parent=0
    _
  %s14 = ssub.s32 1, %s12
  %s15 = scalar_select 0, %s14, %s12
  $region1: #{_mlstm_cell_impl.1} parent=0
    #allocation2 [shape = 'u8[8192]{0}', space=vmem, size = 0x2000, scoped, tag = 'input window, operand 0']
    #allocation3 [shape = 's32[2]{0}', space=sflag, size = 0x8, scoped, tag = 'scoped memory for _mlstm_cell_impl.1']
    #allocation4 [shape = 's32[2]{0}', space=sflag, size = 0x8, scoped, tag = 'scoped memory for _mlstm_cell_impl.1']
    #allocation5 [shape = 'u8[32768]{0}', space=vmem, size = 0x8000, scoped, tag = 'input window, operand 1, single buffered']
    #allocation6 [shape = 's32[1]{0}', space=sflag, size = 0x4, scoped, tag = 'scoped memory for _mlstm_cell_impl.1']
    #allocation7 [shape = 'u8[2048]{0}', space=vmem, size = 0x800, scoped, tag = 'input window, operand 2, single buffered']
    #allocation8 [shape = 'u8[32768]{0}', space=vmem, size = 0x8000, scoped, tag = 'input window, operand 3, single buffered']
    #allocation9 [shape = 's32[1]{0}', space=sflag, size = 0x4, scoped, tag = 'scoped memory for _mlstm_cell_impl.1']
    #allocation10 [shape = 'u8[2048]{0}', space=vmem, size = 0x800, scoped, tag = 'input window, operand 4, single buffered']
    #allocation11 [shape = 'u8[1048576]{0}', space=vmem, size = 0x100000, scoped, tag = 'input window, operand 5']
    #allocation12 [shape = 's32[2]{0}', space=sflag, size = 0x8, scoped, tag = 'scoped memory for _mlstm_cell_impl.1']
    #allocation13 [shape = 'u8[8192]{0}', space=vmem, size = 0x2000, scoped, tag = 'input window, operand 6']
    #allocation14 [shape = 'u8[8192]{0}', space=vmem, size = 0x2000, scoped, tag = 'input window, operand 7']
    #allocation15 [shape = 's32[2]{0}', space=sflag, size = 0x8, scoped, tag = 'scoped memory for _mlstm_cell_impl.1']
    #allocation16 [shape = 'u8[8192]{0}', space=vmem, size = 0x2000, scoped, tag = 'output window, operand 0']
    #allocation17 [shape = 'u8[1048576]{0}', space=vmem, size = 0x100000, scoped, tag = 'output window, operand 1']
    #allocation18 [shape = 's32[2]{0}', space=sflag, size = 0x8, scoped, tag = 'scoped memory for _mlstm_cell_impl.1']
    #allocation19 [shape = 'u8[8192]{0}', space=vmem, size = 0x2000, scoped, tag = 'output window, operand 2']
    %16 = vsyncpa [#allocation3], 0
    %s17 = scalar_lea.sflag [#allocation3], 1
    %18 = vsyncpa %s17, 0
    %19 = vsyncpa [#allocation6], 0
    %20 = vsyncpa [#allocation9], 0
    %21 = vsyncpa [#allocation12], 0
    %s22 = scalar_lea.sflag [#allocation12], 1
    %23 = vsyncpa %s22, 0
    %24 = vsyncpa [#allocation15], 0
    %s25 = scalar_lea.sflag [#allocation15], 1
    %26 = vsyncpa %s25, 0
    %27 = vsyncpa [#allocation4], 0
    %s28 = scalar_lea.sflag [#allocation4], 1
    %29 = vsyncpa %s28, 0
    %30 = vsyncpa [#allocation18], 0
    %s31 = scalar_lea.sflag [#allocation18], 1
    %32 = vsyncpa %s31, 0
    loop: start=0, step=1, limit=4
    $region2: #{_mlstm_cell_impl.1} parent=1 // loop_pre_header
      _
    $region3: #{_mlstm_cell_impl.1} parent=1 // loop_header
      %s34 = sphi 0, %s38
      %p35 = scmp.ge.s32.totalorder %s34, 4
      %s41 = sphi 0, %s53
      %s42 = sphi 0, %s49
      %s43 = sphi 0, %s41
      %s44 = sphi 0, %s42
      %s45 = sphi 0, %s43
      %s46 = sphi 0, %s44
      %s56 = sphi 0, %s58
      %s59 = sphi 0, %s56
      %s60 = sphi 0, %s59
      %s76 = sphi 0, %s60
      %s80 = sphi 0, %s80
      %s82 = sphi 0, %s80
      %s83 = sphi 0, %s82
      %s97 = sphi 0, %s83
      %s101 = sphi 0, %s101
      %s103 = sphi 0, %s101
      %s104 = sphi 0, %s103
      %s118 = sphi 0, %s104
      %s124 = sphi 0, %s126
      %s127 = sphi 0, %s124
      %s128 = sphi 0, %s127
      %s144 = sphi 0, %s128
      %s150 = sphi 0, %s152
      %s153 = sphi 0, %s150
      %s154 = sphi 0, %s153
      %s170 = sphi 0, %s154
      %s178 = sphi 0, %s180
      %s181 = sphi 0, %s178
      %s182 = sphi 0, %s181
      %s198 = sphi 0, %s182
      %s204 = sphi 0, %s206
      %s207 = sphi 0, %s204
      %s208 = sphi 0, %s207
      %s224 = sphi 0, %s208
      %s232 = sphi 0, %s234
      %s235 = sphi 0, %s232
      %s236 = sphi 0, %s235
      %s252 = sphi 0, %s236
      %s260 = sphi 0, %s262
      %s263 = sphi 0, %s260
      %s264 = sphi 0, %s263
      %s280 = sphi 0, %s264
      %s288 = sphi 0, %s290
      %s291 = sphi 0, %s288
      %s292 = sphi 0, %s291
      %s308 = sphi 0, %s292
      %s316 = sphi 0, %s318
      %s319 = sphi 0, %s316
      %s320 = sphi 0, %s319
      %s336 = sphi 0, %s320
    $region4: #{_mlstm_cell_impl.1} parent=1 // loop_header_branch
      %37 = sbr.rel (%p35) target = $region8
    $region5: #{_mlstm_cell_impl.1} parent=1 // loop_body
      %s39 = ssub.s32 %s34, 1
      %s40 = ssub.s32 %s34, 2
      %s47 = sadd.s32 1, %s42
      %p48 = scmp.ge.s32.totalorder %s47, 1
      %s49 = scalar_select %p48, 0, %s47
      %s50 = sadd.s32 1, %s41
      %s51 = scalar_select %p48, %s50, %s41
      %p52 = scmp.ge.s32.totalorder %s51, 2
      %s53 = scalar_select %p52, 0, %s51
      %s54 = ssub.s32 %s41, %s53
      %p55 = scmp.eq.s32.totalorder %s54, 0
      %s57 = sadd.s32 %s56, 1
      %s58 = scalar_select %p55, %s56, %s57
      %p61 = pneg %p55
      %p62 = scmp.eq.s32.totalorder %s34, 1
      %p63 = por %p61, %p62
      %p64 = scmp.ne.s32.totalorder %s56, %s59
      %p65 = scmp.eq.s32.totalorder %s34, 0
      %p66 = por %p64, %p65
      %p67 = scmp.ne.s32.totalorder %s56, %s59
      %p68 = scmp.eq.s32.totalorder %s39, 1
      %p69 = por %p67, %p68
      %p70 = scmp.ne.s32.totalorder %s59, %s60
      %p71 = scmp.eq.s32.totalorder %s39, 0
      %p72 = por %p70, %p71
      %p73 = scmp.ne.s32.totalorder %s59, %s60
      %p74 = scmp.eq.s32.totalorder %s40, 1
      %p75 = por %p73, %p74
      %p77 = scmp.ne.s32.totalorder %s60, %s76
      %p78 = scmp.eq.s32.totalorder %s40, 0
      %p79 = por %p77, %p78
      %s81 = sadd.s32 %s80, 1
      %p84 = scmp.eq.s32.totalorder %s34, 1
      %p85 = scmp.ne.s32.totalorder %s80, %s82
      %p86 = scmp.eq.s32.totalorder %s34, 0
      %p87 = por %p85, %p86
      %p88 = scmp.ne.s32.totalorder %s80, %s82
      %p89 = scmp.eq.s32.totalorder %s39, 1
      %p90 = por %p88, %p89
      %p91 = scmp.ne.s32.totalorder %s82, %s83
      %p92 = scmp.eq.s32.totalorder %s39, 0
      %p93 = por %p91, %p92
      %p94 = scmp.ne.s32.totalorder %s82, %s83
      %p95 = scmp.eq.s32.totalorder %s40, 1
      %p96 = por %p94, %p95
      %p98 = scmp.ne.s32.totalorder %s83, %s97
      %p99 = scmp.eq.s32.totalorder %s40, 0
      %p100 = por %p98, %p99
      %s102 = sadd.s32 %s101, 1
      %p105 = scmp.eq.s32.totalorder %s34, 1
      %p106 = scmp.ne.s32.totalorder %s101, %s103
      %p107 = scmp.eq.s32.totalorder %s34, 0
      %p108 = por %p106, %p107
      %p109 = scmp.ne.s32.totalorder %s101, %s103
      %p110 = scmp.eq.s32.totalorder %s39, 1
      %p111 = por %p109, %p110
      %p112 = scmp.ne.s32.totalorder %s103, %s104
      %p113 = scmp.eq.s32.totalorder %s39, 0
      %p114 = por %p112, %p113
      %p115 = scmp.ne.s32.totalorder %s103, %s104
      %p116 = scmp.eq.s32.totalorder %s40, 1
      %p117 = por %p115, %p116
      %p119 = scmp.ne.s32.totalorder %s104, %s118
      %p120 = scmp.eq.s32.totalorder %s40, 0
      %p121 = por %p119, %p120
      %s122 = ssub.s32 %s42, %s49
      %p123 = scmp.eq.s32.totalorder %s122, 0
      %s125 = sadd.s32 %s124, 1
      %s126 = scalar_select %p123, %s124, %s125
      %p129 = pneg %p123
      %p130 = scmp.eq.s32.totalorder %s34, 1
      %p131 = por %p129, %p130
      %p132 = scmp.ne.s32.totalorder %s124, %s127
      %p133 = scmp.eq.s32.totalorder %s34, 0
      %p134 = por %p132, %p133
      %p135 = scmp.ne.s32.totalorder %s124, %s127
      %p136 = scmp.eq.s32.totalorder %s39, 1
      %p137 = por %p135, %p136
      %p138 = scmp.ne.s32.totalorder %s127, %s128
      %p139 = scmp.eq.s32.totalorder %s39, 0
      %p140 = por %p138, %p139
      %p141 = scmp.ne.s32.totalorder %s127, %s128
      %p142 = scmp.eq.s32.totalorder %s40, 1
      %p143 = por %p141, %p142
      %p145 = scmp.ne.s32.totalorder %s128, %s144
      %p146 = scmp.eq.s32.totalorder %s40, 0
      %p147 = por %p145, %p146
      %s148 = ssub.s32 %s42, %s49
      %p149 = scmp.eq.s32.totalorder %s148, 0
      %s151 = sadd.s32 %s150, 1
      %s152 = scalar_select %p149, %s150, %s151
      %p155 = pneg %p149
      %p156 = scmp.eq.s32.totalorder %s34, 1
      %p157 = por %p155, %p156
      %p158 = scmp.ne.s32.totalorder %s150, %s153
      %p159 = scmp.eq.s32.totalorder %s34, 0
      %p160 = por %p158, %p159
      %p161 = scmp.ne.s32.totalorder %s150, %s153
      %p162 = scmp.eq.s32.totalorder %s39, 1
      %p163 = por %p161, %p162
      %p164 = scmp.ne.s32.totalorder %s153, %s154
      %p165 = scmp.eq.s32.totalorder %s39, 0
      %p166 = por %p164, %p165
      %p167 = scmp.ne.s32.totalorder %s153, %s154
      %p168 = scmp.eq.s32.totalorder %s40, 1
      %p169 = por %p167, %p168
      %p171 = scmp.ne.s32.totalorder %s154, %s170
      %p172 = scmp.eq.s32.totalorder %s40, 0
      %p173 = por %p171, %p172
      %s174 = ssub.s32 %s41, %s53
      %s175 = ssub.s32 %s42, %s49
      %s176 = sor.u32 %s174, %s175
      %p177 = scmp.eq.s32.totalorder %s176, 0
      %s179 = sadd.s32 %s178, 1
      %s180 = scalar_select %p177, %s178, %s179
      %p183 = pneg %p177
      %p184 = scmp.eq.s32.totalorder %s34, 1
      %p185 = por %p183, %p184
      %p186 = scmp.ne.s32.totalorder %s178, %s181
      %p187 = scmp.eq.s32.totalorder %s34, 0
      %p188 = por %p186, %p187
      %p189 = scmp.ne.s32.totalorder %s178, %s181
      %p190 = scmp.eq.s32.totalorder %s39, 1
      %p191 = por %p189, %p190
      %p192 = scmp.ne.s32.totalorder %s181, %s182
      %p193 = scmp.eq.s32.totalorder %s39, 0
      %p194 = por %p192, %p193
      %p195 = scmp.ne.s32.totalorder %s181, %s182
      %p196 = scmp.eq.s32.totalorder %s40, 1
      %p197 = por %p195, %p196
      %p199 = scmp.ne.s32.totalorder %s182, %s198
      %p200 = scmp.eq.s32.totalorder %s40, 0
      %p201 = por %p199, %p200
      %s202 = ssub.s32 %s41, %s53
      %p203 = scmp.eq.s32.totalorder %s202, 0
      %s205 = sadd.s32 %s204, 1
      %s206 = scalar_select %p203, %s204, %s205
      %p209 = pneg %p203
      %p210 = scmp.eq.s32.totalorder %s34, 1
      %p211 = por %p209, %p210
      %p212 = scmp.ne.s32.totalorder %s204, %s207
      %p213 = scmp.eq.s32.totalorder %s34, 0
      %p214 = por %p212, %p213
      %p215 = scmp.ne.s32.totalorder %s204, %s207
      %p216 = scmp.eq.s32.totalorder %s39, 1
      %p217 = por %p215, %p216
      %p218 = scmp.ne.s32.totalorder %s207, %s208
      %p219 = scmp.eq.s32.totalorder %s39, 0
      %p220 = por %p218, %p219
      %p221 = scmp.ne.s32.totalorder %s207, %s208
      %p222 = scmp.eq.s32.totalorder %s40, 1
      %p223 = por %p221, %p222
      %p225 = scmp.ne.s32.totalorder %s208, %s224
      %p226 = scmp.eq.s32.totalorder %s40, 0
      %p227 = por %p225, %p226
      %s228 = ssub.s32 %s41, %s53
      %s229 = ssub.s32 %s42, %s49
      %s230 = sor.u32 %s228, %s229
      %p231 = scmp.eq.s32.totalorder %s230, 0
      %s233 = sadd.s32 %s232, 1
      %s234 = scalar_select %p231, %s232, %s233
      %p237 = pneg %p231
      %p238 = scmp.eq.s32.totalorder %s34, 1
      %p239 = por %p237, %p238
      %p240 = scmp.ne.s32.totalorder %s232, %s235
      %p241 = scmp.eq.s32.totalorder %s34, 0
      %p242 = por %p240, %p241
      %p243 = scmp.ne.s32.totalorder %s232, %s235
      %p244 = scmp.eq.s32.totalorder %s39, 1
      %p245 = por %p243, %p244
      %p246 = scmp.ne.s32.totalorder %s235, %s236
      %p247 = scmp.eq.s32.totalorder %s39, 0
      %p248 = por %p246, %p247
      %p249 = scmp.ne.s32.totalorder %s235, %s236
      %p250 = scmp.eq.s32.totalorder %s40, 1
      %p251 = por %p249, %p250
      %p253 = scmp.ne.s32.totalorder %s236, %s252
      %p254 = scmp.eq.s32.totalorder %s40, 0
      %p255 = por %p253, %p254
      %s256 = ssub.s32 %s41, %s53
      %s257 = ssub.s32 %s42, %s49
      %s258 = sor.u32 %s256, %s257
      %p259 = scmp.eq.s32.totalorder %s258, 0
      %s261 = sadd.s32 %s260, 1
      %s262 = scalar_select %p259, %s260, %s261
      %p265 = pneg %p259
      %p266 = scmp.eq.s32.totalorder %s34, 1
      %p267 = por %p265, %p266
      %p268 = scmp.ne.s32.totalorder %s260, %s263
      %p269 = scmp.eq.s32.totalorder %s34, 0
      %p270 = por %p268, %p269
      %p271 = scmp.ne.s32.totalorder %s260, %s263
      %p272 = scmp.eq.s32.totalorder %s39, 1
      %p273 = por %p271, %p272
      %p274 = scmp.ne.s32.totalorder %s263, %s264
      %p275 = scmp.eq.s32.totalorder %s39, 0
      %p276 = por %p274, %p275
      %p277 = scmp.ne.s32.totalorder %s263, %s264
      %p278 = scmp.eq.s32.totalorder %s40, 1
      %p279 = por %p277, %p278
      %p281 = scmp.ne.s32.totalorder %s264, %s280
      %p282 = scmp.eq.s32.totalorder %s40, 0
      %p283 = por %p281, %p282
      %s284 = ssub.s32 %s41, %s53
      %s285 = ssub.s32 %s42, %s49
      %s286 = sor.u32 %s284, %s285
      %p287 = scmp.eq.s32.totalorder %s286, 0
      %s289 = sadd.s32 %s288, 1
      %s290 = scalar_select %p287, %s288, %s289
      %p293 = pneg %p287
      %p294 = scmp.eq.s32.totalorder %s34, 1
      %p295 = por %p293, %p294
      %p296 = scmp.ne.s32.totalorder %s288, %s291
      %p297 = scmp.eq.s32.totalorder %s34, 0
      %p298 = por %p296, %p297
      %p299 = scmp.ne.s32.totalorder %s288, %s291
      %p300 = scmp.eq.s32.totalorder %s39, 1
      %p301 = por %p299, %p300
      %p302 = scmp.ne.s32.totalorder %s291, %s292
      %p303 = scmp.eq.s32.totalorder %s39, 0
      %p304 = por %p302, %p303
      %p305 = scmp.ne.s32.totalorder %s291, %s292
      %p306 = scmp.eq.s32.totalorder %s40, 1
      %p307 = por %p305, %p306
      %p309 = scmp.ne.s32.totalorder %s292, %s308
      %p310 = scmp.eq.s32.totalorder %s40, 0
      %p311 = por %p309, %p310
      %s312 = ssub.s32 %s41, %s53
      %s313 = ssub.s32 %s42, %s49
      %s314 = sor.u32 %s312, %s313
      %p315 = scmp.eq.s32.totalorder %s314, 0
      %s317 = sadd.s32 %s316, 1
      %s318 = scalar_select %p315, %s316, %s317
      %p321 = pneg %p315
      %p322 = scmp.eq.s32.totalorder %s34, 1
      %p323 = por %p321, %p322
      %p324 = scmp.ne.s32.totalorder %s316, %s319
      %p325 = scmp.eq.s32.totalorder %s34, 0
      %p326 = por %p324, %p325
      %p327 = scmp.ne.s32.totalorder %s316, %s319
      %p328 = scmp.eq.s32.totalorder %s39, 1
      %p329 = por %p327, %p328
      %p330 = scmp.ne.s32.totalorder %s319, %s320
      %p331 = scmp.eq.s32.totalorder %s39, 0
      %p332 = por %p330, %p331
      %p333 = scmp.ne.s32.totalorder %s319, %s320
      %p334 = scmp.eq.s32.totalorder %s40, 1
      %p335 = por %p333, %p334
      %p337 = scmp.ne.s32.totalorder %s320, %s336
      %p338 = scmp.eq.s32.totalorder %s40, 0
      %p339 = por %p337, %p338
      %p340 = scmp.le.s32.totalorder 1, %s34
      %p341 = scmp.lt.s32.totalorder %s34, 3
      %p342 = pnand %p340, %p341
      %p343 = pneg %p342
      // Predicated region
      $region9: #{_mlstm_cell_impl.1} parent=5 // pred_check
        _
      $region10: #{_mlstm_cell_impl.1} parent=5 // pred_check_branch
        %345 = sbr.rel (%p342) target = $region12
      $region11: #{_mlstm_cell_impl.1} parent=5 // pred_region
        %s346 = ssub.s32 %s34, 1
        // Predicated region
        $region13: #{_mlstm_cell_impl.1} parent=11 // pred_check
          %p347 = pneg %p93
        $region14: #{_mlstm_cell_impl.1} parent=11 // pred_check_branch
          %349 = sbr.rel (%p347) target = $region16
        $region15: #{_mlstm_cell_impl.1} parent=11 // pred_region
          %351 = vsyncadd [#allocation6], 0
          %s352 = sshll.u32 %s1, 4
          %s353 = int_to_ptr.hbm [resolvable:$true] %s352
          %s354 = sshll.u32 [#allocation5], 4
          %s355 = int_to_ptr.vmem [resolvable:$true] %s354
          %360 = dma.hbm_to_vmem [thread:$0]  %s353, 1024, %s355, [#allocation6], 512, 512, 32
        $region16: #{_mlstm_cell_impl.1} parent=11 // pred_fallthru
          _
        // Predicated region
        $region17: #{_mlstm_cell_impl.1} parent=11 // pred_check
          %p361 = pneg %p114
        $region18: #{_mlstm_cell_impl.1} parent=11 // pred_check_branch
          %363 = sbr.rel (%p361) target = $region20
        $region19: #{_mlstm_cell_impl.1} parent=11 // pred_region
          %365 = vsyncadd [#allocation6], 0
          %s367 = sshll.u32 %s2, 4
          %s368 = int_to_ptr.hbm [resolvable:$true] %s367
          %s369 = sshll.u32 [#allocation7], 4
          %s370 = int_to_ptr.vmem [resolvable:$true] %s369
          %372 = dma.hbm_to_vmem [thread:$0]  %s368, 64, %s370, [#allocation6]
        $region20: #{_mlstm_cell_impl.1} parent=11 // pred_fallthru
          _
        // Predicated region
        $region21: #{_mlstm_cell_impl.1} parent=11 // pred_check
          %p373 = pneg %p140
        $region22: #{_mlstm_cell_impl.1} parent=11 // pred_check_branch
          %375 = sbr.rel (%p373) target = $region24
        $region23: #{_mlstm_cell_impl.1} parent=11 // pred_region
          %377 = vsyncadd [#allocation9], 0
          %s378 = smul.addr %s44, 8
          %s379 = scalar_lea.hbm %s3, %s378
          %s380 = sshll.u32 %s379, 4
          %s381 = int_to_ptr.hbm [resolvable:$true] %s380
          %s382 = sshll.u32 [#allocation8], 4
          %s383 = int_to_ptr.vmem [resolvable:$true] %s382
          %388 = dma.hbm_to_vmem [thread:$0]  %s381, 1024, %s383, [#allocation9], 128, 128, 8
        $region24: #{_mlstm_cell_impl.1} parent=11 // pred_fallthru
          _
        // Predicated region
        $region25: #{_mlstm_cell_impl.1} parent=11 // pred_check
          %p389 = pneg %p166
        $region26: #{_mlstm_cell_impl.1} parent=11 // pred_check_branch
          %391 = sbr.rel (%p389) target = $region28
        $region27: #{_mlstm_cell_impl.1} parent=11 // pred_region
          %393 = vsyncadd [#allocation9], 0
          %s394 = scalar_lea.hbm %s4, %s44
          %s395 = sshll.u32 %s394, 4
          %s396 = int_to_ptr.hbm [resolvable:$true] %s395
          %s397 = sshll.u32 [#allocation10], 4
          %s398 = int_to_ptr.vmem [resolvable:$true] %s397
          %403 = dma.hbm_to_vmem [thread:$0]  %s396, 64, %s398, [#allocation9], 16, 16, 1
        $region28: #{_mlstm_cell_impl.1} parent=11 // pred_fallthru
          _
      $region12: #{_mlstm_cell_impl.1} parent=5 // pred_fallthru
        _
      %p404 = scmp.lt.s32.totalorder %s34, 2
      // Predicated region
      $region29: #{_mlstm_cell_impl.1} parent=5 // pred_check
        %p405 = pneg %p404
      $region30: #{_mlstm_cell_impl.1} parent=5 // pred_check_branch
        %407 = sbr.rel (%p405) target = $region32
      $region31: #{_mlstm_cell_impl.1} parent=5 // pred_region
        // Predicated region
        $region33: #{_mlstm_cell_impl.1} parent=31 // pred_check
          %p408 = pneg %p66
        $region34: #{_mlstm_cell_impl.1} parent=31 // pred_check_branch
          %410 = sbr.rel (%p408) target = $region36
        $region35: #{_mlstm_cell_impl.1} parent=31 // pred_region
          %s411 = sand.u32 %s56, 1
          %s412 = scalar_lea.sflag [#allocation3], %s411
          %s413 = sand.u32 %s56, 1
          %s414 = smul.addr %s413, 8
          %s415 = scalar_lea.vmem [#allocation2], %s414
          %417 = vsyncadd %s412, 0
          %s418 = smul.addr %s41, 8
          %s419 = scalar_lea.hbm %s0, %s418
          %s421 = sshll.u32 %s419, 4
          %s422 = int_to_ptr.hbm [resolvable:$true] %s421
          %s423 = sshll.u32 %s415, 4
          %s424 = int_to_ptr.vmem [resolvable:$true] %s423
          %426 = dma.hbm_to_vmem [thread:$0]  %s422, 128, %s424, %s412
        $region36: #{_mlstm_cell_impl.1} parent=31 // pred_fallthru
          _
        // Predicated region
        $region37: #{_mlstm_cell_impl.1} parent=31 // pred_check
          %p427 = pneg %p188
        $region38: #{_mlstm_cell_impl.1} parent=31 // pred_check_branch
          %429 = sbr.rel (%p427) target = $region40
        $region39: #{_mlstm_cell_impl.1} parent=31 // pred_region
          %s430 = sand.u32 %s34, 1
          %s431 = scalar_lea.sflag [#allocation12], %s430
          %s432 = sand.u32 %s178, 1
          %s433 = smul.addr %s432, 1024
          %s434 = scalar_lea.vmem [#allocation11], %s433
          %s435 = smul.u32 8, %s41
          %437 = vsyncadd %s431, 0
          %s438 = smul.addr %s435, 16
          %s439 = sadd.s32 %s42, %s438
          %s440 = smul.addr %s439, 8
          %s441 = scalar_lea.hbm %s5, %s440
          %s442 = sshll.u32 %s441, 4
          %s443 = int_to_ptr.hbm [resolvable:$true] %s442
          %s444 = sshll.u32 %s434, 4
          %s445 = int_to_ptr.vmem [resolvable:$true] %s444
          %450 = dma.hbm_to_vmem [thread:$0]  %s443, 16384, %s445, %s431, 128, 128, 8
        $region40: #{_mlstm_cell_impl.1} parent=31 // pred_fallthru
          _
        // Predicated region
        $region41: #{_mlstm_cell_impl.1} parent=31 // pred_check
          %p451 = pneg %p214
        $region42: #{_mlstm_cell_impl.1} parent=31 // pred_check_branch
          %453 = sbr.rel (%p451) target = $region44
        $region43: #{_mlstm_cell_impl.1} parent=31 // pred_region
          %s454 = sand.u32 %s34, 1
          %s455 = scalar_lea.sflag [#allocation12], %s454
          %s456 = sand.u32 %s204, 1
          %s457 = smul.addr %s456, 8
          %s458 = scalar_lea.vmem [#allocation13], %s457
          %460 = vsyncadd %s455, 0
          %s461 = smul.addr %s41, 8
          %s462 = scalar_lea.hbm %s6, %s461
          %s464 = sshll.u32 %s462, 4
          %s465 = int_to_ptr.hbm [resolvable:$true] %s464
          %s466 = sshll.u32 %s458, 4
          %s467 = int_to_ptr.vmem [resolvable:$true] %s466
          %469 = dma.hbm_to_vmem [thread:$0]  %s465, 128, %s467, %s455
        $region44: #{_mlstm_cell_impl.1} parent=31 // pred_fallthru
          _
        // Predicated region
        $region45: #{_mlstm_cell_impl.1} parent=31 // pred_check
          %p470 = pneg %p242
        $region46: #{_mlstm_cell_impl.1} parent=31 // pred_check_branch
          %472 = sbr.rel (%p470) target = $region48
        $region47: #{_mlstm_cell_impl.1} parent=31 // pred_region
          %s473 = sand.u32 %s232, 1
          %s474 = scalar_lea.sflag [#allocation15], %s473
          %s475 = sand.u32 %s232, 1
          %s476 = smul.addr %s475, 8
          %s477 = scalar_lea.vmem [#allocation14], %s476
          %479 = vsyncadd %s474, 0
          %s480 = sadd.s32 %s42, %s41
          %s481 = smul.addr %s480, 8
          %s482 = scalar_lea.hbm %s7, %s481
          %s484 = sshll.u32 %s482, 4
          %s485 = int_to_ptr.hbm [resolvable:$true] %s484
          %s486 = sshll.u32 %s477, 4
          %s487 = int_to_ptr.vmem [resolvable:$true] %s486
          %489 = dma.hbm_to_vmem [thread:$0]  %s485, 128, %s487, %s474
        $region48: #{_mlstm_cell_impl.1} parent=31 // pred_fallthru
          _
      $region32: #{_mlstm_cell_impl.1} parent=5 // pred_fallthru
        _
      %p490 = scmp.le.s32.totalorder 1, %s34
      %p491 = scmp.lt.s32.totalorder %s34, 3
      %p492 = pnand %p490, %p491
      %p493 = pneg %p492
      // Predicated region
      $region49: #{_mlstm_cell_impl.1} parent=5 // pred_check
        _
      $region50: #{_mlstm_cell_impl.1} parent=5 // pred_check_branch
        %495 = sbr.rel (%p492) target = $region52
      $region51: #{_mlstm_cell_impl.1} parent=5 // pred_region
        %s496 = ssub.s32 %s34, 1
        %s497 = sand.u32 %s59, 1
        %s498 = scalar_lea.sflag [#allocation3], %s497
        %s499 = sand.u32 %s59, 1
        %s500 = smul.addr %s499, 8
        %s501 = scalar_lea.vmem [#allocation2], %s500
        // Predicated region
        $region53: #{_mlstm_cell_impl.1} parent=51 // pred_check
          %p502 = pneg %p72
        $region54: #{_mlstm_cell_impl.1} parent=51 // pred_check_branch
          %504 = sbr.rel (%p502) target = $region56
        $region55: #{_mlstm_cell_impl.1} parent=51 // pred_region
          %506 = dma.done %s498, 128
        $region56: #{_mlstm_cell_impl.1} parent=51 // pred_fallthru
          _
        // Predicated region
        $region57: #{_mlstm_cell_impl.1} parent=51 // pred_check
          %p507 = pneg %p93
        $region58: #{_mlstm_cell_impl.1} parent=51 // pred_check_branch
          %509 = sbr.rel (%p507) target = $region60
        $region59: #{_mlstm_cell_impl.1} parent=51 // pred_region
          %511 = dma.done [#allocation6], 1024
        $region60: #{_mlstm_cell_impl.1} parent=51 // pred_fallthru
          _
        // Predicated region
        $region61: #{_mlstm_cell_impl.1} parent=51 // pred_check
          %p512 = pneg %p114
        $region62: #{_mlstm_cell_impl.1} parent=51 // pred_check_branch
          %514 = sbr.rel (%p512) target = $region64
        $region63: #{_mlstm_cell_impl.1} parent=51 // pred_region
          %516 = dma.done [#allocation6], 64
        $region64: #{_mlstm_cell_impl.1} parent=51 // pred_fallthru
          _
        // Predicated region
        $region65: #{_mlstm_cell_impl.1} parent=51 // pred_check
          %p517 = pneg %p140
        $region66: #{_mlstm_cell_impl.1} parent=51 // pred_check_branch
          %519 = sbr.rel (%p517) target = $region68
        $region67: #{_mlstm_cell_impl.1} parent=51 // pred_region
          %521 = dma.done [#allocation9], 1024
        $region68: #{_mlstm_cell_impl.1} parent=51 // pred_fallthru
          _
        // Predicated region
        $region69: #{_mlstm_cell_impl.1} parent=51 // pred_check
          %p522 = pneg %p166
        $region70: #{_mlstm_cell_impl.1} parent=51 // pred_check_branch
          %524 = sbr.rel (%p522) target = $region72
        $region71: #{_mlstm_cell_impl.1} parent=51 // pred_region
          %526 = dma.done [#allocation9], 64
        $region72: #{_mlstm_cell_impl.1} parent=51 // pred_fallthru
          _
        %s527 = sand.u32 %s39, 1
        %s528 = scalar_lea.sflag [#allocation12], %s527
        %s529 = sand.u32 %s181, 1
        %s530 = smul.addr %s529, 1024
        %s531 = scalar_lea.vmem [#allocation11], %s530
        // Predicated region
        $region73: #{_mlstm_cell_impl.1} parent=51 // pred_check
          %p532 = pneg %p194
        $region74: #{_mlstm_cell_impl.1} parent=51 // pred_check_branch
          %534 = sbr.rel (%p532) target = $region76
        $region75: #{_mlstm_cell_impl.1} parent=51 // pred_region
          %536 = dma.done %s528, 16384
        $region76: #{_mlstm_cell_impl.1} parent=51 // pred_fallthru
          _
        %s537 = sand.u32 %s39, 1
        %s538 = scalar_lea.sflag [#allocation12], %s537
        %s539 = sand.u32 %s207, 1
        %s540 = smul.addr %s539, 8
        %s541 = scalar_lea.vmem [#allocation13], %s540
        // Predicated region
        $region77: #{_mlstm_cell_impl.1} parent=51 // pred_check
          %p542 = pneg %p220
        $region78: #{_mlstm_cell_impl.1} parent=51 // pred_check_branch
          %544 = sbr.rel (%p542) target = $region80
        $region79: #{_mlstm_cell_impl.1} parent=51 // pred_region
          %546 = dma.done %s538, 128
        $region80: #{_mlstm_cell_impl.1} parent=51 // pred_fallthru
          _
        %s547 = sand.u32 %s235, 1
        %s548 = scalar_lea.sflag [#allocation15], %s547
        %s549 = sand.u32 %s235, 1
        %s550 = smul.addr %s549, 8
        %s551 = scalar_lea.vmem [#allocation14], %s550
        // Predicated region
        $region81: #{_mlstm_cell_impl.1} parent=51 // pred_check
          %p552 = pneg %p248
        $region82: #{_mlstm_cell_impl.1} parent=51 // pred_check_branch
          %554 = sbr.rel (%p552) target = $region84
        $region83: #{_mlstm_cell_impl.1} parent=51 // pred_region
          %556 = dma.done %s548, 128
        $region84: #{_mlstm_cell_impl.1} parent=51 // pred_fallthru
          _
        %s557 = sand.u32 %s59, 1
        %s558 = scalar_lea.sflag [#allocation3], %s557
        %s559 = sand.u32 %s59, 1
        %s560 = smul.addr %s559, 8
        %s561 = scalar_lea.vmem [#allocation2], %s560
        %p562 = pneg %p72
        %p563 = pneg %p69
        %p564 = pneg %p93
        %p565 = pneg %p90
        %p566 = pneg %p114
        %p567 = pneg %p111
        %p568 = pneg %p140
        %p569 = pneg %p137
        %p570 = pneg %p166
        %p571 = pneg %p163
        %s572 = sand.u32 %s39, 1
        %s573 = scalar_lea.sflag [#allocation12], %s572
        %s574 = sand.u32 %s181, 1
        %s575 = smul.addr %s574, 1024
        %s576 = scalar_lea.vmem [#allocation11], %s575
        %p577 = pneg %p194
        %p578 = pneg %p191
        %s579 = sand.u32 %s39, 1
        %s580 = scalar_lea.sflag [#allocation12], %s579
        %s581 = sand.u32 %s207, 1
        %s582 = smul.addr %s581, 8
        %s583 = scalar_lea.vmem [#allocation13], %s582
        %p584 = pneg %p220
        %p585 = pneg %p217
        %s586 = sand.u32 %s235, 1
        %s587 = scalar_lea.sflag [#allocation15], %s586
        %s588 = sand.u32 %s235, 1
        %s589 = smul.addr %s588, 8
        %s590 = scalar_lea.vmem [#allocation14], %s589
        %p591 = pneg %p248
        %p592 = pneg %p245
        %p593 = pneg %p276
        %p594 = pneg %p273
        %s595 = sand.u32 %s263, 1
        %s596 = scalar_lea.sflag [#allocation4], %s595
        %s597 = sand.u32 %s263, 1
        %s598 = smul.addr %s597, 8
        %s599 = scalar_lea.vmem [#allocation16], %s598
        %p600 = pneg %p304
        %p601 = pneg %p301
        %s602 = sand.u32 %s39, 1
        %s603 = scalar_lea.sflag [#allocation18], %s602
        %s604 = sand.u32 %s291, 1
        %s605 = smul.addr %s604, 1024
        %s606 = scalar_lea.vmem [#allocation17], %s605
        %p607 = pneg %p332
        %p608 = pneg %p329
        %s609 = sand.u32 %s39, 1
        %s610 = scalar_lea.sflag [#allocation18], %s609
        %s611 = sand.u32 %s319, 1
        %s612 = smul.addr %s611, 8
        %s613 = scalar_lea.vmem [#allocation19], %s612
        %s614 = smul.u32 8, %s43
        %s615 = smul.u32 8, %s43
        %v616 = vld [vmem:[%s501] sm:$0xff]
        %v617 = vld [vmem:[%s531] sm:$0xff]
        %v618 = vld [vmem:[%s531 + $0x8] sm:$0xff]
        %v619 = vld [vmem:[%s531 + $0x10] sm:$0xff]
        %v620 = vld [vmem:[%s531 + $0x18] sm:$0xff]
        %v621 = vld [vmem:[%s531 + $0x20] sm:$0xff]
        %v622 = vld [vmem:[%s531 + $0x28] sm:$0xff]
        %v623 = vld [vmem:[%s531 + $0x30] sm:$0xff]
        %v624 = vld [vmem:[%s531 + $0x38] sm:$0xff]
        %v625 = vld [vmem:[%s531 + $0x40] sm:$0xff]
        %v626 = vld [vmem:[%s531 + $0x48] sm:$0xff]
        %v627 = vld [vmem:[%s531 + $0x50] sm:$0xff]
        %v628 = vld [vmem:[%s531 + $0x58] sm:$0xff]
        %v629 = vld [vmem:[%s531 + $0x60] sm:$0xff]
        %v630 = vld [vmem:[%s531 + $0x68] sm:$0xff]
        %v631 = vld [vmem:[%s531 + $0x70] sm:$0xff]
        %v632 = vld [vmem:[%s531 + $0x78] sm:$0xff]
        %v633 = vld [vmem:[%s531 + $0x80] sm:$0xff]
        %v634 = vld [vmem:[%s531 + $0x88] sm:$0xff]
        %v635 = vld [vmem:[%s531 + $0x90] sm:$0xff]
        %v636 = vld [vmem:[%s531 + $0x98] sm:$0xff]
        %v637 = vld [vmem:[%s531 + $0xa0] sm:$0xff]
        %v638 = vld [vmem:[%s531 + $0xa8] sm:$0xff]
        %v639 = vld [vmem:[%s531 + $0xb0] sm:$0xff]
        %v640 = vld [vmem:[%s531 + $0xb8] sm:$0xff]
        %v641 = vld [vmem:[%s531 + $0xc0] sm:$0xff]
        %v642 = vld [vmem:[%s531 + $0xc8] sm:$0xff]
        %v643 = vld [vmem:[%s531 + $0xd0] sm:$0xff]
        %v644 = vld [vmem:[%s531 + $0xd8] sm:$0xff]
        %v645 = vld [vmem:[%s531 + $0xe0] sm:$0xff]
        %v646 = vld [vmem:[%s531 + $0xe8] sm:$0xff]
        %v647 = vld [vmem:[%s531 + $0xf0] sm:$0xff]
        %v648 = vld [vmem:[%s531 + $0xf8] sm:$0xff]
        %v649 = vld [vmem:[%s531 + $0x100] sm:$0xff]
        %v650 = vld [vmem:[%s531 + $0x108] sm:$0xff]
        %v651 = vld [vmem:[%s531 + $0x110] sm:$0xff]
        %v652 = vld [vmem:[%s531 + $0x118] sm:$0xff]
        %v653 = vld [vmem:[%s531 + $0x120] sm:$0xff]
        %v654 = vld [vmem:[%s531 + $0x128] sm:$0xff]
        %v655 = vld [vmem:[%s531 + $0x130] sm:$0xff]
        %v656 = vld [vmem:[%s531 + $0x138] sm:$0xff]
        %v657 = vld [vmem:[%s531 + $0x140] sm:$0xff]
        %v658 = vld [vmem:[%s531 + $0x148] sm:$0xff]
        %v659 = vld [vmem:[%s531 + $0x150] sm:$0xff]
        %v660 = vld [vmem:[%s531 + $0x158] sm:$0xff]
        %v661 = vld [vmem:[%s531 + $0x160] sm:$0xff]
        %v662 = vld [vmem:[%s531 + $0x168] sm:$0xff]
        %v663 = vld [vmem:[%s531 + $0x170] sm:$0xff]
        %v664 = vld [vmem:[%s531 + $0x178] sm:$0xff]
        %v665 = vld [vmem:[%s531 + $0x180] sm:$0xff]
        %v666 = vld [vmem:[%s531 + $0x188] sm:$0xff]
        %v667 = vld [vmem:[%s531 + $0x190] sm:$0xff]
        %v668 = vld [vmem:[%s531 + $0x198] sm:$0xff]
        %v669 = vld [vmem:[%s531 + $0x1a0] sm:$0xff]
        %v670 = vld [vmem:[%s531 + $0x1a8] sm:$0xff]
        %v671 = vld [vmem:[%s531 + $0x1b0] sm:$0xff]
        %v672 = vld [vmem:[%s531 + $0x1b8] sm:$0xff]
        %v673 = vld [vmem:[%s531 + $0x1c0] sm:$0xff]
        %v674 = vld [vmem:[%s531 + $0x1c8] sm:$0xff]
        %v675 = vld [vmem:[%s531 + $0x1d0] sm:$0xff]
        %v676 = vld [vmem:[%s531 + $0x1d8] sm:$0xff]
        %v677 = vld [vmem:[%s531 + $0x1e0] sm:$0xff]
        %v678 = vld [vmem:[%s531 + $0x1e8] sm:$0xff]
        %v679 = vld [vmem:[%s531 + $0x1f0] sm:$0xff]
        %v680 = vld [vmem:[%s531 + $0x1f8] sm:$0xff]
        %v681 = vld [vmem:[%s531 + $0x200] sm:$0xff]
        %v682 = vld [vmem:[%s531 + $0x208] sm:$0xff]
        %v683 = vld [vmem:[%s531 + $0x210] sm:$0xff]
        %v684 = vld [vmem:[%s531 + $0x218] sm:$0xff]
        %v685 = vld [vmem:[%s531 + $0x220] sm:$0xff]
        %v686 = vld [vmem:[%s531 + $0x228] sm:$0xff]
        %v687 = vld [vmem:[%s531 + $0x230] sm:$0xff]
        %v688 = vld [vmem:[%s531 + $0x238] sm:$0xff]
        %v689 = vld [vmem:[%s531 + $0x240] sm:$0xff]
        %v690 = vld [vmem:[%s531 + $0x248] sm:$0xff]
        %v691 = vld [vmem:[%s531 + $0x250] sm:$0xff]
        %v692 = vld [vmem:[%s531 + $0x258] sm:$0xff]
        %v693 = vld [vmem:[%s531 + $0x260] sm:$0xff]
        %v694 = vld [vmem:[%s531 + $0x268] sm:$0xff]
        %v695 = vld [vmem:[%s531 + $0x270] sm:$0xff]
        %v696 = vld [vmem:[%s531 + $0x278] sm:$0xff]
        %v697 = vld [vmem:[%s531 + $0x280] sm:$0xff]
        %v698 = vld [vmem:[%s531 + $0x288] sm:$0xff]
        %v699 = vld [vmem:[%s531 + $0x290] sm:$0xff]
        %v700 = vld [vmem:[%s531 + $0x298] sm:$0xff]
        %v701 = vld [vmem:[%s531 + $0x2a0] sm:$0xff]
        %v702 = vld [vmem:[%s531 + $0x2a8] sm:$0xff]
        %v703 = vld [vmem:[%s531 + $0x2b0] sm:$0xff]
        %v704 = vld [vmem:[%s531 + $0x2b8] sm:$0xff]
        %v705 = vld [vmem:[%s531 + $0x2c0] sm:$0xff]
        %v706 = vld [vmem:[%s531 + $0x2c8] sm:$0xff]
        %v707 = vld [vmem:[%s531 + $0x2d0] sm:$0xff]
        %v708 = vld [vmem:[%s531 + $0x2d8] sm:$0xff]
        %v709 = vld [vmem:[%s531 + $0x2e0] sm:$0xff]
        %v710 = vld [vmem:[%s531 + $0x2e8] sm:$0xff]
        %v711 = vld [vmem:[%s531 + $0x2f0] sm:$0xff]
        %v712 = vld [vmem:[%s531 + $0x2f8] sm:$0xff]
        %v713 = vld [vmem:[%s531 + $0x300] sm:$0xff]
        %v714 = vld [vmem:[%s531 + $0x308] sm:$0xff]
        %v715 = vld [vmem:[%s531 + $0x310] sm:$0xff]
        %v716 = vld [vmem:[%s531 + $0x318] sm:$0xff]
        %v717 = vld [vmem:[%s531 + $0x320] sm:$0xff]
        %v718 = vld [vmem:[%s531 + $0x328] sm:$0xff]
        %v719 = vld [vmem:[%s531 + $0x330] sm:$0xff]
        %v720 = vld [vmem:[%s531 + $0x338] sm:$0xff]
        %v721 = vld [vmem:[%s531 + $0x340] sm:$0xff]
        %v722 = vld [vmem:[%s531 + $0x348] sm:$0xff]
        %v723 = vld [vmem:[%s531 + $0x350] sm:$0xff]
        %v724 = vld [vmem:[%s531 + $0x358] sm:$0xff]
        %v725 = vld [vmem:[%s531 + $0x360] sm:$0xff]
        %v726 = vld [vmem:[%s531 + $0x368] sm:$0xff]
        %v727 = vld [vmem:[%s531 + $0x370] sm:$0xff]
        %v728 = vld [vmem:[%s531 + $0x378] sm:$0xff]
        %v729 = vld [vmem:[%s531 + $0x380] sm:$0xff]
        %v730 = vld [vmem:[%s531 + $0x388] sm:$0xff]
        %v731 = vld [vmem:[%s531 + $0x390] sm:$0xff]
        %v732 = vld [vmem:[%s531 + $0x398] sm:$0xff]
        %v733 = vld [vmem:[%s531 + $0x3a0] sm:$0xff]
        %v734 = vld [vmem:[%s531 + $0x3a8] sm:$0xff]
        %v735 = vld [vmem:[%s531 + $0x3b0] sm:$0xff]
        %v736 = vld [vmem:[%s531 + $0x3b8] sm:$0xff]
        %v737 = vld [vmem:[%s531 + $0x3c0] sm:$0xff]
        %v738 = vld [vmem:[%s531 + $0x3c8] sm:$0xff]
        %v739 = vld [vmem:[%s531 + $0x3d0] sm:$0xff]
        %v740 = vld [vmem:[%s531 + $0x3d8] sm:$0xff]
        %v741 = vld [vmem:[%s531 + $0x3e0] sm:$0xff]
        %v742 = vld [vmem:[%s531 + $0x3e8] sm:$0xff]
        %v743 = vld [vmem:[%s531 + $0x3f0] sm:$0xff]
        %v744 = vld [vmem:[%s531 + $0x3f8] sm:$0xff]
        %v745 = vld [vmem:[%s541] sm:$0xff]
        %v746 = vld [vmem:[#allocation5] sm:$0xff]
        %v747 = vld [vmem:[#allocation5 + $0x8] sm:$0xff]
        %v748 = vld [vmem:[#allocation5 + $0x10] sm:$0xff]
        %v749 = vld [vmem:[#allocation5 + $0x18] sm:$0xff]
        %v750 = vld [vmem:[#allocation5 + $0x20] sm:$0xff]
        %v751 = vld [vmem:[#allocation5 + $0x28] sm:$0xff]
        %v752 = vld [vmem:[#allocation5 + $0x30] sm:$0xff]
        %v753 = vld [vmem:[#allocation5 + $0x38] sm:$0xff]
        %v754 = vld [vmem:[#allocation7] sm:$0xf]
        %v756 = vperm.slane %v754, 0
        %v757 = vperm.slane %v754, 1
        %v758 = vperm.slane %v754, 2
        %v759 = vperm.slane %v754, 3
        %vm764 = vcmask 130048
        %v766 = vsel %vm764, %v616, 0
        %768 = vmatpush.msra.mxu0 0.0
        %769 = vmatpush.msra.mxu0 0.0
        %770 = vmatpush.msra.mxu0 0.0
        %771 = vmatpush.msra.mxu0 0.0
        %772 = vmatpush.msra.mxu0 0.0
        %773 = vmatpush.msra.mxu0 0.0
        %774 = vmatpush.msra.mxu0 0.0
        %775 = vmatpush.msra.mxu0 0.0
        %776 = vmatpush.msra.mxu0 0.0
        %777 = vmatpush.msra.mxu0 0.0
        %778 = vmatpush.msra.mxu0 0.0
        %779 = vmatpush.msra.mxu0 0.0
        %780 = vmatpush.msra.mxu0 0.0
        %781 = vmatpush.msra.mxu0 0.0
        %782 = vmatpush.msra.mxu0 %v750
        %783 = vmatpush.msra.mxu0 %v746
        %784 = vmatmul.f32.gmra.mxu0 %v766
        %v785 = vpop.f32.mrf.mxu0
        %v786 = vadd.f32 %v756, %v785
        %787 = vdwg.mxu0
        %788 = vmatpush.msra.mxu0 0.0
        %789 = vmatpush.msra.mxu0 0.0
        %790 = vmatpush.msra.mxu0 0.0
        %791 = vmatpush.msra.mxu0 0.0
        %792 = vmatpush.msra.mxu0 0.0
        %793 = vmatpush.msra.mxu0 0.0
        %794 = vmatpush.msra.mxu0 0.0
        %795 = vmatpush.msra.mxu0 0.0
        %796 = vmatpush.msra.mxu0 0.0
        %797 = vmatpush.msra.mxu0 0.0
        %798 = vmatpush.msra.mxu0 0.0
        %799 = vmatpush.msra.mxu0 0.0
        %800 = vmatpush.msra.mxu0 0.0
        %801 = vmatpush.msra.mxu0 0.0
        %802 = vmatpush.msra.mxu0 %v751
        %803 = vmatpush.msra.mxu0 %v747
        %804 = vmatmul.f32.gmra.mxu0 %v766
        %v805 = vpop.f32.mrf.mxu0
        %v806 = vadd.f32 %v757, %v805
        %807 = vdwg.mxu0
        %808 = vmatpush.msra.mxu0 0.0
        %809 = vmatpush.msra.mxu0 0.0
        %810 = vmatpush.msra.mxu0 0.0
        %811 = vmatpush.msra.mxu0 0.0
        %812 = vmatpush.msra.mxu0 0.0
        %813 = vmatpush.msra.mxu0 0.0
        %814 = vmatpush.msra.mxu0 0.0
        %815 = vmatpush.msra.mxu0 0.0
        %816 = vmatpush.msra.mxu0 0.0
        %817 = vmatpush.msra.mxu0 0.0
        %818 = vmatpush.msra.mxu0 0.0
        %819 = vmatpush.msra.mxu0 0.0
        %820 = vmatpush.msra.mxu0 0.0
        %821 = vmatpush.msra.mxu0 0.0
        %822 = vmatpush.msra.mxu0 %v752
        %823 = vmatpush.msra.mxu0 %v748
        %824 = vmatmul.f32.gmra.mxu0 %v766
        %v825 = vpop.f32.mrf.mxu0
        %v826 = vadd.f32 %v758, %v825
        %827 = vdwg.mxu0
        %828 = vmatpush.msra.mxu0 0.0
        %829 = vmatpush.msra.mxu0 0.0
        %830 = vmatpush.msra.mxu0 0.0
        %831 = vmatpush.msra.mxu0 0.0
        %832 = vmatpush.msra.mxu0 0.0
        %833 = vmatpush.msra.mxu0 0.0
        %834 = vmatpush.msra.mxu0 0.0
        %835 = vmatpush.msra.mxu0 0.0
        %836 = vmatpush.msra.mxu0 0.0
        %837 = vmatpush.msra.mxu0 0.0
        %838 = vmatpush.msra.mxu0 0.0
        %839 = vmatpush.msra.mxu0 0.0
        %840 = vmatpush.msra.mxu0 0.0
        %841 = vmatpush.msra.mxu0 0.0
        %842 = vmatpush.msra.mxu0 %v753
        %843 = vmatpush.msra.mxu0 %v749
        %844 = vmatmul.f32.gmra.mxu0 %v766
        %v845 = vpop.f32.mrf.mxu0
        %v846 = vadd.f32 %v759, %v845
        %847 = vdwg.mxu0
        %v848 = vmul.f32 %v826, 1.442695
        %v849 = vpow.pop %v848
        %v850 = vxor.u32 %v846, 2147483648
        %v851 = vmul.f32 %v850, 1.442695
        %v852 = vpow.pop %v851
        %v853 = vadd.f32 %v852, 1.0
        %v854 = vrcp.pop %v853
        %v855 = vmul.f32 %v853, %v854
        %v856 = vsub.f32 1.0, %v855
        %v857 = vmul.f32 %v854, %v856
        %v858 = vadd.f32 %v854, %v857
        %vm859 = vweird.f32 %v853
        %vm860 = vweird.f32 %v854
        %vm861 = vmor %vm859, %vm860
        %v862 = vsel %vm861, %v854, %v858
        %v863 = vand.u32 2147483647, %v853
        %vm864 = vcmp.eq.f32.partialorder %v863, 8.507059e+37
        %v865 = vand.u32 %v853, 2147483648
        %v866 = vor.u32 1.1754944e-38, %v865
        %v867 = vsel %vm864, %v866, %v862
        %v868 = vmul.f32 1.0, %v867
        %v869 = vld [vmem:[#allocation8] sm:$0xff]
        %v870 = vld [vmem:[#allocation8 + $0x8] sm:$0xff]
        %v871 = vld [vmem:[#allocation10] sm:$0x1]
        %v873 = vperm.slane %v871, 0
        %875 = vmatpush.msra.mxu0 0.0
        %876 = vmatpush.msra.mxu0 0.0
        %877 = vmatpush.msra.mxu0 0.0
        %878 = vmatpush.msra.mxu0 0.0
        %879 = vmatpush.msra.mxu0 0.0
        %880 = vmatpush.msra.mxu0 0.0
        %881 = vmatpush.msra.mxu0 0.0
        %882 = vmatpush.msra.mxu0 0.0
        %883 = vmatpush.msra.mxu0 0.0
        %884 = vmatpush.msra.mxu0 0.0
        %885 = vmatpush.msra.mxu0 0.0
        %886 = vmatpush.msra.mxu0 0.0
        %887 = vmatpush.msra.mxu0 0.0
        %888 = vmatpush.msra.mxu0 0.0
        %889 = vmatpush.msra.mxu0 %v870
        %890 = vmatpush.msra.mxu0 %v869
        %891 = vmatmul.f32.gmra.mxu0 %v766
        %v892 = vpop.f32.mrf.mxu0
        %v893 = vadd.f32 %v873, %v892
        %894 = vdwg.mxu0
        %v895 = vmul.f32 %v893, 0.088388346
        %s896 = scalar_lea.vmem [#allocation8], 16
        %v897 = vld [vmem:[%s896] sm:$0xff]
        %v898 = vld [vmem:[%s896 + $0x8] sm:$0xff]
        %s899 = scalar_lea.vmem [#allocation10], 1
        %v900 = vld [vmem:[%s899] sm:$0x1]
        %v902 = vperm.slane %v900, 0
        %904 = vmatpush.msra.mxu0 0.0
        %905 = vmatpush.msra.mxu0 0.0
        %906 = vmatpush.msra.mxu0 0.0
        %907 = vmatpush.msra.mxu0 0.0
        %908 = vmatpush.msra.mxu0 0.0
        %909 = vmatpush.msra.mxu0 0.0
        %910 = vmatpush.msra.mxu0 0.0
        %911 = vmatpush.msra.mxu0 0.0
        %912 = vmatpush.msra.mxu0 0.0
        %913 = vmatpush.msra.mxu0 0.0
        %914 = vmatpush.msra.mxu0 0.0
        %915 = vmatpush.msra.mxu0 0.0
        %916 = vmatpush.msra.mxu0 0.0
        %917 = vmatpush.msra.mxu0 0.0
        %918 = vmatpush.msra.mxu0 %v898
        %919 = vmatpush.msra.mxu0 %v897
        %920 = vmatmul.f32.gmra.mxu0 %v766
        %v921 = vpop.f32.mrf.mxu0
        %v922 = vadd.f32 %v902, %v921
        %923 = vdwg.mxu0
        %v924 = vxor.u32 %v922, 2147483648
        %v925 = vmul.f32 %v924, 1.442695
        %v926 = vpow.pop %v925
        %v927 = vadd.f32 %v926, 1.0
        %v928 = vrcp.pop %v927
        %v929 = vmul.f32 %v927, %v928
        %v930 = vsub.f32 1.0, %v929
        %v931 = vmul.f32 %v928, %v930
        %v932 = vadd.f32 %v928, %v931
        %vm933 = vweird.f32 %v927
        %vm934 = vweird.f32 %v928
        %vm935 = vmor %vm933, %vm934
        %v936 = vsel %vm935, %v928, %v932
        %v937 = vand.u32 2147483647, %v927
        %vm938 = vcmp.eq.f32.partialorder %v937, 8.507059e+37
        %v939 = vand.u32 %v927, 2147483648
        %v940 = vor.u32 1.1754944e-38, %v939
        %v941 = vsel %vm938, %v940, %v936
        %v942 = vmul.f32 1.0, %v941
        %s943 = scalar_lea.vmem [#allocation8], 32
        %v944 = vld [vmem:[%s943] sm:$0xff]
        %v945 = vld [vmem:[%s943 + $0x8] sm:$0xff]
        %s946 = scalar_lea.vmem [#allocation10], 2
        %v947 = vld [vmem:[%s946] sm:$0x1]
        %v949 = vperm.slane %v947, 0
        %951 = vmatpush.msra.mxu0 0.0
        %952 = vmatpush.msra.mxu0 0.0
        %953 = vmatpush.msra.mxu0 0.0
        %954 = vmatpush.msra.mxu0 0.0
        %955 = vmatpush.msra.mxu0 0.0
        %956 = vmatpush.msra.mxu0 0.0
        %957 = vmatpush.msra.mxu0 0.0
        %958 = vmatpush.msra.mxu0 0.0
        %959 = vmatpush.msra.mxu0 0.0
        %960 = vmatpush.msra.mxu0 0.0
        %961 = vmatpush.msra.mxu0 0.0
        %962 = vmatpush.msra.mxu0 0.0
        %963 = vmatpush.msra.mxu0 0.0
        %964 = vmatpush.msra.mxu0 0.0
        %965 = vmatpush.msra.mxu0 %v945
        %966 = vmatpush.msra.mxu0 %v944
        %967 = vmatmul.f32.gmra.mxu0 %v766
        %v968 = vpop.f32.mrf.mxu0
        %v969 = vadd.f32 %v949, %v968
        %970 = vdwg.mxu0
        %v971 = vmul.f32 %v969, 1.442695
        %v972 = vpow.pop %v971
        %s973 = scalar_lea.vmem [#allocation8], 48
        %v974 = vld [vmem:[%s973] sm:$0xff]
        %v975 = vld [vmem:[%s973 + $0x8] sm:$0xff]
        %s976 = scalar_lea.vmem [#allocation10], 3
        %v977 = vld [vmem:[%s976] sm:$0x1]
        %v979 = vperm.slane %v977, 0
        %981 = vmatpush.msra.mxu0 0.0
        %982 = vmatpush.msra.mxu0 0.0
        %983 = vmatpush.msra.mxu0 0.0
        %984 = vmatpush.msra.mxu0 0.0
        %985 = vmatpush.msra.mxu0 0.0
        %986 = vmatpush.msra.mxu0 0.0
        %987 = vmatpush.msra.mxu0 0.0
        %988 = vmatpush.msra.mxu0 0.0
        %989 = vmatpush.msra.mxu0 0.0
        %990 = vmatpush.msra.mxu0 0.0
        %991 = vmatpush.msra.mxu0 0.0
        %992 = vmatpush.msra.mxu0 0.0
        %993 = vmatpush.msra.mxu0 0.0
        %994 = vmatpush.msra.mxu0 0.0
        %995 = vmatpush.msra.mxu0 %v975
        %996 = vmatpush.msra.mxu0 %v974
        %997 = vmatmul.f32.gmra.mxu0 %v766
        %v998 = vpop.f32.mrf.mxu0
        %v999 = vadd.f32 %v979, %v998
        %1000 = vdwg.mxu0
        %v1001 = vxor.u32 %v999, 2147483648
        %v1002 = vmul.f32 %v1001, 1.442695
        %v1003 = vpow.pop %v1002
        %v1004 = vadd.f32 %v1003, 1.0
        %v1005 = vrcp.pop %v1004
        %v1006 = vmul.f32 %v1004, %v1005
        %v1007 = vsub.f32 1.0, %v1006
        %v1008 = vmul.f32 %v1005, %v1007
        %v1009 = vadd.f32 %v1005, %v1008
        %vm1010 = vweird.f32 %v1004
        %vm1011 = vweird.f32 %v1005
        %vm1012 = vmor %vm1010, %vm1011
        %v1013 = vsel %vm1012, %v1005, %v1009
        %v1014 = vand.u32 2147483647, %v1004
        %vm1015 = vcmp.eq.f32.partialorder %v1014, 8.507059e+37
        %v1016 = vand.u32 %v1004, 2147483648
        %v1017 = vor.u32 1.1754944e-38, %v1016
        %v1018 = vsel %vm1015, %v1017, %v1013
        %v1019 = vmul.f32 1.0, %v1018
        %v1021 = vrot.slane %v786, 1
        %v1022 = vrot.slane %v786, 2
        %v1023 = vrot.slane %v786, 3
        %v1024 = vrot.slane %v786, 4
        %v1025 = vrot.slane %v786, 5
        %v1026 = vrot.slane %v786, 6
        %v1027 = vrot.slane %v786, 7
        %1035 = vmatpush.msra.mxu0 %v632
        %1036 = vmatpush.msra.mxu0 %v631
        %1037 = vmatpush.msra.mxu0 %v630
        %1038 = vmatpush.msra.mxu0 %v629
        %1039 = vmatpush.msra.mxu0 %v628
        %1040 = vmatpush.msra.mxu0 %v627
        %1041 = vmatpush.msra.mxu0 %v626
        %1042 = vmatpush.msra.mxu0 %v625
        %1043 = vmatpush.msra.mxu0 %v624
        %1044 = vmatpush.msra.mxu0 %v623
        %1045 = vmatpush.msra.mxu0 %v622
        %1046 = vmatpush.msra.mxu0 %v621
        %1047 = vmatpush.msra.mxu0 %v620
        %1048 = vmatpush.msra.mxu0 %v619
        %1049 = vmatpush.msra.mxu0 %v618
        %1050 = vmatpush.msra.mxu0 %v617
        %1051 = vmatmul.f32.gmra.mxu0 %v786
        %v1052 = vpop.f32.mrf.mxu0
        %v1053 = vadd.f32 0.0, %v1052
        %1054 = vdwg.mxu0
        %1055 = vmatpush.msra.mxu0 %v648
        %1056 = vmatpush.msra.mxu0 %v647
        %1057 = vmatpush.msra.mxu0 %v646
        %1058 = vmatpush.msra.mxu0 %v645
        %1059 = vmatpush.msra.mxu0 %v644
        %1060 = vmatpush.msra.mxu0 %v643
        %1061 = vmatpush.msra.mxu0 %v642
        %1062 = vmatpush.msra.mxu0 %v641
        %1063 = vmatpush.msra.mxu0 %v640
        %1064 = vmatpush.msra.mxu0 %v639
        %1065 = vmatpush.msra.mxu0 %v638
        %1066 = vmatpush.msra.mxu0 %v637
        %1067 = vmatpush.msra.mxu0 %v636
        %1068 = vmatpush.msra.mxu0 %v635
        %1069 = vmatpush.msra.mxu0 %v634
        %1070 = vmatpush.msra.mxu0 %v633
        %1071 = vmatmul.f32.gmra.mxu0 %v1021
        %v1072 = vpop.f32.mrf.mxu0
        %v1073 = vadd.f32 0.0, %v1072
        %1074 = vdwg.mxu0
        %1075 = vmatpush.msra.mxu0 %v664
        %1076 = vmatpush.msra.mxu0 %v663
        %1077 = vmatpush.msra.mxu0 %v662
        %1078 = vmatpush.msra.mxu0 %v661
        %1079 = vmatpush.msra.mxu0 %v660
        %1080 = vmatpush.msra.mxu0 %v659
        %1081 = vmatpush.msra.mxu0 %v658
        %1082 = vmatpush.msra.mxu0 %v657
        %1083 = vmatpush.msra.mxu0 %v656
        %1084 = vmatpush.msra.mxu0 %v655
        %1085 = vmatpush.msra.mxu0 %v654
        %1086 = vmatpush.msra.mxu0 %v653
        %1087 = vmatpush.msra.mxu0 %v652
        %1088 = vmatpush.msra.mxu0 %v651
        %1089 = vmatpush.msra.mxu0 %v650
        %1090 = vmatpush.msra.mxu0 %v649
        %1091 = vmatmul.f32.gmra.mxu0 %v1022
        %v1092 = vpop.f32.mrf.mxu0
        %v1093 = vadd.f32 0.0, %v1092
        %1094 = vdwg.mxu0
        %1095 = vmatpush.msra.mxu0 %v680
        %1096 = vmatpush.msra.mxu0 %v679
        %1097 = vmatpush.msra.mxu0 %v678
        %1098 = vmatpush.msra.mxu0 %v677
        %1099 = vmatpush.msra.mxu0 %v676
        %1100 = vmatpush.msra.mxu0 %v675
        %1101 = vmatpush.msra.mxu0 %v674
        %1102 = vmatpush.msra.mxu0 %v673
        %1103 = vmatpush.msra.mxu0 %v672
        %1104 = vmatpush.msra.mxu0 %v671
        %1105 = vmatpush.msra.mxu0 %v670
        %1106 = vmatpush.msra.mxu0 %v669
        %1107 = vmatpush.msra.mxu0 %v668
        %1108 = vmatpush.msra.mxu0 %v667
        %1109 = vmatpush.msra.mxu0 %v666
        %1110 = vmatpush.msra.mxu0 %v665
        %1111 = vmatmul.f32.gmra.mxu0 %v1023
        %v1112 = vpop.f32.mrf.mxu0
        %v1113 = vadd.f32 0.0, %v1112
        %1114 = vdwg.mxu0
        %1115 = vmatpush.msra.mxu0 %v696
        %1116 = vmatpush.msra.mxu0 %v695
        %1117 = vmatpush.msra.mxu0 %v694
        %1118 = vmatpush.msra.mxu0 %v693
        %1119 = vmatpush.msra.mxu0 %v692
        %1120 = vmatpush.msra.mxu0 %v691
        %1121 = vmatpush.msra.mxu0 %v690
        %1122 = vmatpush.msra.mxu0 %v689
        %1123 = vmatpush.msra.mxu0 %v688
        %1124 = vmatpush.msra.mxu0 %v687
        %1125 = vmatpush.msra.mxu0 %v686
        %1126 = vmatpush.msra.mxu0 %v685
        %1127 = vmatpush.msra.mxu0 %v684
        %1128 = vmatpush.msra.mxu0 %v683
        %1129 = vmatpush.msra.mxu0 %v682
        %1130 = vmatpush.msra.mxu0 %v681
        %1131 = vmatmul.f32.gmra.mxu0 %v1024
        %v1132 = vpop.f32.mrf.mxu0
        %v1133 = vadd.f32 0.0, %v1132
        %1134 = vdwg.mxu0
        %1135 = vmatpush.msra.mxu0 %v712
        %1136 = vmatpush.msra.mxu0 %v711
        %1137 = vmatpush.msra.mxu0 %v710
        %1138 = vmatpush.msra.mxu0 %v709
        %1139 = vmatpush.msra.mxu0 %v708
        %1140 = vmatpush.msra.mxu0 %v707
        %1141 = vmatpush.msra.mxu0 %v706
        %1142 = vmatpush.msra.mxu0 %v705
        %1143 = vmatpush.msra.mxu0 %v704
        %1144 = vmatpush.msra.mxu0 %v703
        %1145 = vmatpush.msra.mxu0 %v702
        %1146 = vmatpush.msra.mxu0 %v701
        %1147 = vmatpush.msra.mxu0 %v700
        %1148 = vmatpush.msra.mxu0 %v699
        %1149 = vmatpush.msra.mxu0 %v698
        %1150 = vmatpush.msra.mxu0 %v697
        %1151 = vmatmul.f32.gmra.mxu0 %v1025
        %v1152 = vpop.f32.mrf.mxu0
        %v1153 = vadd.f32 0.0, %v1152
        %1154 = vdwg.mxu0
        %1155 = vmatpush.msra.mxu0 %v728
        %1156 = vmatpush.msra.mxu0 %v727
        %1157 = vmatpush.msra.mxu0 %v726
        %1158 = vmatpush.msra.mxu0 %v725
        %1159 = vmatpush.msra.mxu0 %v724
        %1160 = vmatpush.msra.mxu0 %v723
        %1161 = vmatpush.msra.mxu0 %v722
        %1162 = vmatpush.msra.mxu0 %v721
        %1163 = vmatpush.msra.mxu0 %v720
        %1164 = vmatpush.msra.mxu0 %v719
        %1165 = vmatpush.msra.mxu0 %v718
        %1166 = vmatpush.msra.mxu0 %v717
        %1167 = vmatpush.msra.mxu0 %v716
        %1168 = vmatpush.msra.mxu0 %v715
        %1169 = vmatpush.msra.mxu0 %v714
        %1170 = vmatpush.msra.mxu0 %v713
        %1171 = vmatmul.f32.gmra.mxu0 %v1026
        %v1172 = vpop.f32.mrf.mxu0
        %v1173 = vadd.f32 0.0, %v1172
        %1174 = vdwg.mxu0
        %1175 = vmatpush.msra.mxu0 %v744
        %1176 = vmatpush.msra.mxu0 %v743
        %1177 = vmatpush.msra.mxu0 %v742
        %1178 = vmatpush.msra.mxu0 %v741
        %1179 = vmatpush.msra.mxu0 %v740
        %1180 = vmatpush.msra.mxu0 %v739
        %1181 = vmatpush.msra.mxu0 %v738
        %1182 = vmatpush.msra.mxu0 %v737
        %1183 = vmatpush.msra.mxu0 %v736
        %1184 = vmatpush.msra.mxu0 %v735
        %1185 = vmatpush.msra.mxu0 %v734
        %1186 = vmatpush.msra.mxu0 %v733
        %1187 = vmatpush.msra.mxu0 %v732
        %1188 = vmatpush.msra.mxu0 %v731
        %1189 = vmatpush.msra.mxu0 %v730
        %1190 = vmatpush.msra.mxu0 %v729
        %1191 = vmatmul.f32.gmra.mxu0 %v1027
        %v1192 = vpop.f32.mrf.mxu0
        %v1193 = vadd.f32 0.0, %v1192
        %1194 = vdwg.mxu0
        %v1195 = vmul.f32 %v745, %v786
        %1196 = vadd.xlane.f32.xlu0 %v1195
        %v1197 = vpop.xlane.xlu0 %1196
        %v1198 = vand.u32 2147483647, %v1197
        %v1199 = vmax.f32 %v1198, 1.0
        %v1200 = vrcp.pop %v1199
        %v1201 = vmul.f32 %v1199, %v1200
        %v1202 = vsub.f32 1.0, %v1201
        %v1203 = vmul.f32 %v1200, %v1202
        %v1204 = vadd.f32 %v1200, %v1203
        %vm1205 = vweird.f32 %v1199
        %vm1206 = vweird.f32 %v1200
        %vm1207 = vmor %vm1205, %vm1206
        %v1208 = vsel %vm1207, %v1200, %v1204
        %v1209 = vand.u32 2147483647, %v1199
        %vm1210 = vcmp.eq.f32.partialorder %v1209, 8.507059e+37
        %v1211 = vand.u32 %v1199, 2147483648
        %v1212 = vor.u32 1.1754944e-38, %v1211
        %v1213 = vsel %vm1210, %v1212, %v1208
        %v1214 = vmul.f32 1.0, %v1213
        %v1223 = vrot.slane %v1073, 7
        %vm1224 = vcmask 1041409
        %v1225 = vsel %vm1224, %v1223, %v1053
        %v1226 = vrot.slane %v1093, 6
        %vm1227 = vcmask 1042434
        %v1228 = vsel %vm1227, %v1226, %v1225
        %v1229 = vrot.slane %v1113, 5
        %vm1230 = vcmask 1043459
        %v1231 = vsel %vm1230, %v1229, %v1228
        %v1232 = vrot.slane %v1133, 4
        %vm1233 = vcmask 1044484
        %v1234 = vsel %vm1233, %v1232, %v1231
        %v1235 = vrot.slane %v1153, 3
        %vm1236 = vcmask 1045509
        %v1237 = vsel %vm1236, %v1235, %v1234
        %v1238 = vrot.slane %v1173, 2
        %vm1239 = vcmask 1046534
        %v1240 = vsel %vm1239, %v1238, %v1237
        %v1241 = vrot.slane %v1193, 1
        %vm1242 = vcmask 1047559
        %v1243 = vsel %vm1242, %v1241, %v1240
        %v1245 = vmul.f32 %v942, %v1243
        %v1246 = vmul.f32 %v1245, %v1214
        %1247 = vst [vmem:[%s599] sm:$0xff] %v1246
        %v1248 = vld [vmem:[%s551] sm:$0xff]
        %v1249 = vmul.f32 %v1019, %v1248
        %v1250 = vmul.f32 %v972, %v895
        %v1251 = vadd.f32 %v1249, %v1250
        %1252 = vst [vmem:[%s613] sm:$0xff] %v1251
        %v1253 = vmul.f32 %v849, %v806
        %v1254 = vperm.slane %v868, 0
        %v1255 = vlaneseq
        %v1256 = vshrl.u32 %v1255, 7
        %1258 = vset.pattern.permute.xlu0 %v1256
        %1259 = vperm.xlu0 %1258, %v1254
        %v1260 = vpop.permute.xlu0 %1259
        %v1261 = vlaneseq
        %v1262 = vshrl.u32 %v1261, 7
        %v1263 = vadd.s32 %v1262, 8
        %1264 = vset.pattern.permute.xlu0 %v1263
        %1265 = vperm.xlu0 %1264, %v1254
        %v1266 = vpop.permute.xlu0 %1265
        %v1267 = vlaneseq
        %v1268 = vshrl.u32 %v1267, 7
        %v1269 = vadd.s32 %v1268, 16
        %1270 = vset.pattern.permute.xlu0 %v1269
        %1271 = vperm.xlu0 %1270, %v1254
        %v1272 = vpop.permute.xlu0 %1271
        %v1273 = vlaneseq
        %v1274 = vshrl.u32 %v1273, 7
        %v1275 = vadd.s32 %v1274, 24
        %1276 = vset.pattern.permute.xlu0 %v1275
        %1277 = vperm.xlu0 %1276, %v1254
        %v1278 = vpop.permute.xlu0 %1277
        %v1279 = vlaneseq
        %v1280 = vshrl.u32 %v1279, 7
        %v1281 = vadd.s32 %v1280, 32
        %1282 = vset.pattern.permute.xlu0 %v1281
        %1283 = vperm.xlu0 %1282, %v1254
        %v1284 = vpop.permute.xlu0 %1283
        %v1285 = vlaneseq
        %v1286 = vshrl.u32 %v1285, 7
        %v1287 = vadd.s32 %v1286, 40
        %1288 = vset.pattern.permute.xlu0 %v1287
        %1289 = vperm.xlu0 %1288, %v1254
        %v1290 = vpop.permute.xlu0 %1289
        %v1291 = vlaneseq
        %v1292 = vshrl.u32 %v1291, 7
        %v1293 = vadd.s32 %v1292, 48
        %1294 = vset.pattern.permute.xlu0 %v1293
        %1295 = vperm.xlu0 %1294, %v1254
        %v1296 = vpop.permute.xlu0 %1295
        %v1297 = vlaneseq
        %v1298 = vshrl.u32 %v1297, 7
        %v1299 = vadd.s32 %v1298, 56
        %1300 = vset.pattern.permute.xlu0 %v1299
        %1301 = vperm.xlu0 %1300, %v1254
        %v1302 = vpop.permute.xlu0 %1301
        %v1303 = vlaneseq
        %v1304 = vshrl.u32 %v1303, 7
        %v1305 = vadd.s32 %v1304, 64
        %1306 = vset.pattern.permute.xlu0 %v1305
        %1307 = vperm.xlu0 %1306, %v1254
        %v1308 = vpop.permute.xlu0 %1307
        %v1309 = vlaneseq
        %v1310 = vshrl.u32 %v1309, 7
        %v1311 = vadd.s32 %v1310, 72
        %1312 = vset.pattern.permute.xlu0 %v1311
        %1313 = vperm.xlu0 %1312, %v1254
        %v1314 = vpop.permute.xlu0 %1313
        %v1315 = vlaneseq
        %v1316 = vshrl.u32 %v1315, 7
        %v1317 = vadd.s32 %v1316, 80
        %1318 = vset.pattern.permute.xlu0 %v1317
        %1319 = vperm.xlu0 %1318, %v1254
        %v1320 = vpop.permute.xlu0 %1319
        %v1321 = vlaneseq
        %v1322 = vshrl.u32 %v1321, 7
        %v1323 = vadd.s32 %v1322, 88
        %1324 = vset.pattern.permute.xlu0 %v1323
        %1325 = vperm.xlu0 %1324, %v1254
        %v1326 = vpop.permute.xlu0 %1325
        %v1327 = vlaneseq
        %v1328 = vshrl.u32 %v1327, 7
        %v1329 = vadd.s32 %v1328, 96
        %1330 = vset.pattern.permute.xlu0 %v1329
        %1331 = vperm.xlu0 %1330, %v1254
        %v1332 = vpop.permute.xlu0 %1331
        %v1333 = vlaneseq
        %v1334 = vshrl.u32 %v1333, 7
        %v1335 = vadd.s32 %v1334, 104
        %1336 = vset.pattern.permute.xlu0 %v1335
        %1337 = vperm.xlu0 %1336, %v1254
        %v1338 = vpop.permute.xlu0 %1337
        %v1339 = vlaneseq
        %v1340 = vshrl.u32 %v1339, 7
        %v1341 = vadd.s32 %v1340, 112
        %1342 = vset.pattern.permute.xlu0 %v1341
        %1343 = vperm.xlu0 %1342, %v1254
        %v1344 = vpop.permute.xlu0 %1343
        %v1345 = vlaneseq
        %v1346 = vshrl.u32 %v1345, 7
        %v1347 = vadd.s32 %v1346, 120
        %1348 = vset.pattern.permute.xlu0 %v1347
        %1349 = vperm.xlu0 %1348, %v1254
        %v1350 = vpop.permute.xlu0 %1349
        %v1351 = vperm.slane %v868, 1
        %v1352 = vlaneseq
        %v1353 = vshrl.u32 %v1352, 7
        %1355 = vset.pattern.permute.xlu0 %v1353
        %1356 = vperm.xlu0 %1355, %v1351
        %v1357 = vpop.permute.xlu0 %1356
        %v1358 = vlaneseq
        %v1359 = vshrl.u32 %v1358, 7
        %v1360 = vadd.s32 %v1359, 8
        %1361 = vset.pattern.permute.xlu0 %v1360
        %1362 = vperm.xlu0 %1361, %v1351
        %v1363 = vpop.permute.xlu0 %1362
        %v1364 = vlaneseq
        %v1365 = vshrl.u32 %v1364, 7
        %v1366 = vadd.s32 %v1365, 16
        %1367 = vset.pattern.permute.xlu0 %v1366
        %1368 = vperm.xlu0 %1367, %v1351
        %v1369 = vpop.permute.xlu0 %1368
        %v1370 = vlaneseq
        %v1371 = vshrl.u32 %v1370, 7
        %v1372 = vadd.s32 %v1371, 24
        %1373 = vset.pattern.permute.xlu0 %v1372
        %1374 = vperm.xlu0 %1373, %v1351
        %v1375 = vpop.permute.xlu0 %1374
        %v1376 = vlaneseq
        %v1377 = vshrl.u32 %v1376, 7
        %v1378 = vadd.s32 %v1377, 32
        %1379 = vset.pattern.permute.xlu0 %v1378
        %1380 = vperm.xlu0 %1379, %v1351
        %v1381 = vpop.permute.xlu0 %1380
        %v1382 = vlaneseq
        %v1383 = vshrl.u32 %v1382, 7
        %v1384 = vadd.s32 %v1383, 40
        %1385 = vset.pattern.permute.xlu0 %v1384
        %1386 = vperm.xlu0 %1385, %v1351
        %v1387 = vpop.permute.xlu0 %1386
        %v1388 = vlaneseq
        %v1389 = vshrl.u32 %v1388, 7
        %v1390 = vadd.s32 %v1389, 48
        %1391 = vset.pattern.permute.xlu0 %v1390
        %1392 = vperm.xlu0 %1391, %v1351
        %v1393 = vpop.permute.xlu0 %1392
        %v1394 = vlaneseq
        %v1395 = vshrl.u32 %v1394, 7
        %v1396 = vadd.s32 %v1395, 56
        %1397 = vset.pattern.permute.xlu0 %v1396
        %1398 = vperm.xlu0 %1397, %v1351
        %v1399 = vpop.permute.xlu0 %1398
        %v1400 = vlaneseq
        %v1401 = vshrl.u32 %v1400, 7
        %v1402 = vadd.s32 %v1401, 64
        %1403 = vset.pattern.permute.xlu0 %v1402
        %1404 = vperm.xlu0 %1403, %v1351
        %v1405 = vpop.permute.xlu0 %1404
        %v1406 = vlaneseq
        %v1407 = vshrl.u32 %v1406, 7
        %v1408 = vadd.s32 %v1407, 72
        %1409 = vset.pattern.permute.xlu0 %v1408
        %1410 = vperm.xlu0 %1409, %v1351
        %v1411 = vpop.permute.xlu0 %1410
        %v1412 = vlaneseq
        %v1413 = vshrl.u32 %v1412, 7
        %v1414 = vadd.s32 %v1413, 80
        %1415 = vset.pattern.permute.xlu0 %v1414
        %1416 = vperm.xlu0 %1415, %v1351
        %v1417 = vpop.permute.xlu0 %1416
        %v1418 = vlaneseq
        %v1419 = vshrl.u32 %v1418, 7
        %v1420 = vadd.s32 %v1419, 88
        %1421 = vset.pattern.permute.xlu0 %v1420
        %1422 = vperm.xlu0 %1421, %v1351
        %v1423 = vpop.permute.xlu0 %1422
        %v1424 = vlaneseq
        %v1425 = vshrl.u32 %v1424, 7
        %v1426 = vadd.s32 %v1425, 96
        %1427 = vset.pattern.permute.xlu0 %v1426
        %1428 = vperm.xlu0 %1427, %v1351
        %v1429 = vpop.permute.xlu0 %1428
        %v1430 = vlaneseq
        %v1431 = vshrl.u32 %v1430, 7
        %v1432 = vadd.s32 %v1431, 104
        %1433 = vset.pattern.permute.xlu0 %v1432
        %1434 = vperm.xlu0 %1433, %v1351
        %v1435 = vpop.permute.xlu0 %1434
        %v1436 = vlaneseq
        %v1437 = vshrl.u32 %v1436, 7
        %v1438 = vadd.s32 %v1437, 112
        %1439 = vset.pattern.permute.xlu0 %v1438
        %1440 = vperm.xlu0 %1439, %v1351
        %v1441 = vpop.permute.xlu0 %1440
        %v1442 = vlaneseq
        %v1443 = vshrl.u32 %v1442, 7
        %v1444 = vadd.s32 %v1443, 120
        %1445 = vset.pattern.permute.xlu0 %v1444
        %1446 = vperm.xlu0 %1445, %v1351
        %v1447 = vpop.permute.xlu0 %1446
        %v1448 = vperm.slane %v868, 2
        %v1449 = vlaneseq
        %v1450 = vshrl.u32 %v1449, 7
        %1452 = vset.pattern.permute.xlu0 %v1450
        %1453 = vperm.xlu0 %1452, %v1448
        %v1454 = vpop.permute.xlu0 %1453
        %v1455 = vlaneseq
        %v1456 = vshrl.u32 %v1455, 7
        %v1457 = vadd.s32 %v1456, 8
        %1458 = vset.pattern.permute.xlu0 %v1457
        %1459 = vperm.xlu0 %1458, %v1448
        %v1460 = vpop.permute.xlu0 %1459
        %v1461 = vlaneseq
        %v1462 = vshrl.u32 %v1461, 7
        %v1463 = vadd.s32 %v1462, 16
        %1464 = vset.pattern.permute.xlu0 %v1463
        %1465 = vperm.xlu0 %1464, %v1448
        %v1466 = vpop.permute.xlu0 %1465
        %v1467 = vlaneseq
        %v1468 = vshrl.u32 %v1467, 7
        %v1469 = vadd.s32 %v1468, 24
        %1470 = vset.pattern.permute.xlu0 %v1469
        %1471 = vperm.xlu0 %1470, %v1448
        %v1472 = vpop.permute.xlu0 %1471
        %v1473 = vlaneseq
        %v1474 = vshrl.u32 %v1473, 7
        %v1475 = vadd.s32 %v1474, 32
        %1476 = vset.pattern.permute.xlu0 %v1475
        %1477 = vperm.xlu0 %1476, %v1448
        %v1478 = vpop.permute.xlu0 %1477
        %v1479 = vlaneseq
        %v1480 = vshrl.u32 %v1479, 7
        %v1481 = vadd.s32 %v1480, 40
        %1482 = vset.pattern.permute.xlu0 %v1481
        %1483 = vperm.xlu0 %1482, %v1448
        %v1484 = vpop.permute.xlu0 %1483
        %v1485 = vlaneseq
        %v1486 = vshrl.u32 %v1485, 7
        %v1487 = vadd.s32 %v1486, 48
        %1488 = vset.pattern.permute.xlu0 %v1487
        %1489 = vperm.xlu0 %1488, %v1448
        %v1490 = vpop.permute.xlu0 %1489
        %v1491 = vlaneseq
        %v1492 = vshrl.u32 %v1491, 7
        %v1493 = vadd.s32 %v1492, 56
        %1494 = vset.pattern.permute.xlu0 %v1493
        %1495 = vperm.xlu0 %1494, %v1448
        %v1496 = vpop.permute.xlu0 %1495
        %v1497 = vlaneseq
        %v1498 = vshrl.u32 %v1497, 7
        %v1499 = vadd.s32 %v1498, 64
        %1500 = vset.pattern.permute.xlu0 %v1499
        %1501 = vperm.xlu0 %1500, %v1448
        %v1502 = vpop.permute.xlu0 %1501
        %v1503 = vlaneseq
        %v1504 = vshrl.u32 %v1503, 7
        %v1505 = vadd.s32 %v1504, 72
        %1506 = vset.pattern.permute.xlu0 %v1505
        %1507 = vperm.xlu0 %1506, %v1448
        %v1508 = vpop.permute.xlu0 %1507
        %v1509 = vlaneseq
        %v1510 = vshrl.u32 %v1509, 7
        %v1511 = vadd.s32 %v1510, 80
        %1512 = vset.pattern.permute.xlu0 %v1511
        %1513 = vperm.xlu0 %1512, %v1448
        %v1514 = vpop.permute.xlu0 %1513
        %v1515 = vlaneseq
        %v1516 = vshrl.u32 %v1515, 7
        %v1517 = vadd.s32 %v1516, 88
        %1518 = vset.pattern.permute.xlu0 %v1517
        %1519 = vperm.xlu0 %1518, %v1448
        %v1520 = vpop.permute.xlu0 %1519
        %v1521 = vlaneseq
        %v1522 = vshrl.u32 %v1521, 7
        %v1523 = vadd.s32 %v1522, 96
        %1524 = vset.pattern.permute.xlu0 %v1523
        %1525 = vperm.xlu0 %1524, %v1448
        %v1526 = vpop.permute.xlu0 %1525
        %v1527 = vlaneseq
        %v1528 = vshrl.u32 %v1527, 7
        %v1529 = vadd.s32 %v1528, 104
        %1530 = vset.pattern.permute.xlu0 %v1529
        %1531 = vperm.xlu0 %1530, %v1448
        %v1532 = vpop.permute.xlu0 %1531
        %v1533 = vlaneseq
        %v1534 = vshrl.u32 %v1533, 7
        %v1535 = vadd.s32 %v1534, 112
        %1536 = vset.pattern.permute.xlu0 %v1535
        %1537 = vperm.xlu0 %1536, %v1448
        %v1538 = vpop.permute.xlu0 %1537
        %v1539 = vlaneseq
        %v1540 = vshrl.u32 %v1539, 7
        %v1541 = vadd.s32 %v1540, 120
        %1542 = vset.pattern.permute.xlu0 %v1541
        %1543 = vperm.xlu0 %1542, %v1448
        %v1544 = vpop.permute.xlu0 %1543
        %v1545 = vperm.slane %v868, 3
        %v1546 = vlaneseq
        %v1547 = vshrl.u32 %v1546, 7
        %1549 = vset.pattern.permute.xlu0 %v1547
        %1550 = vperm.xlu0 %1549, %v1545
        %v1551 = vpop.permute.xlu0 %1550
        %v1552 = vlaneseq
        %v1553 = vshrl.u32 %v1552, 7
        %v1554 = vadd.s32 %v1553, 8
        %1555 = vset.pattern.permute.xlu0 %v1554
        %1556 = vperm.xlu0 %1555, %v1545
        %v1557 = vpop.permute.xlu0 %1556
        %v1558 = vlaneseq
        %v1559 = vshrl.u32 %v1558, 7
        %v1560 = vadd.s32 %v1559, 16
        %1561 = vset.pattern.permute.xlu0 %v1560
        %1562 = vperm.xlu0 %1561, %v1545
        %v1563 = vpop.permute.xlu0 %1562
        %v1564 = vlaneseq
        %v1565 = vshrl.u32 %v1564, 7
        %v1566 = vadd.s32 %v1565, 24
        %1567 = vset.pattern.permute.xlu0 %v1566
        %1568 = vperm.xlu0 %1567, %v1545
        %v1569 = vpop.permute.xlu0 %1568
        %v1570 = vlaneseq
        %v1571 = vshrl.u32 %v1570, 7
        %v1572 = vadd.s32 %v1571, 32
        %1573 = vset.pattern.permute.xlu0 %v1572
        %1574 = vperm.xlu0 %1573, %v1545
        %v1575 = vpop.permute.xlu0 %1574
        %v1576 = vlaneseq
        %v1577 = vshrl.u32 %v1576, 7
        %v1578 = vadd.s32 %v1577, 40
        %1579 = vset.pattern.permute.xlu0 %v1578
        %1580 = vperm.xlu0 %1579, %v1545
        %v1581 = vpop.permute.xlu0 %1580
        %v1582 = vlaneseq
        %v1583 = vshrl.u32 %v1582, 7
        %v1584 = vadd.s32 %v1583, 48
        %1585 = vset.pattern.permute.xlu0 %v1584
        %1586 = vperm.xlu0 %1585, %v1545
        %v1587 = vpop.permute.xlu0 %1586
        %v1588 = vlaneseq
        %v1589 = vshrl.u32 %v1588, 7
        %v1590 = vadd.s32 %v1589, 56
        %1591 = vset.pattern.permute.xlu0 %v1590
        %1592 = vperm.xlu0 %1591, %v1545
        %v1593 = vpop.permute.xlu0 %1592
        %v1594 = vlaneseq
        %v1595 = vshrl.u32 %v1594, 7
        %v1596 = vadd.s32 %v1595, 64
        %1597 = vset.pattern.permute.xlu0 %v1596
        %1598 = vperm.xlu0 %1597, %v1545
        %v1599 = vpop.permute.xlu0 %1598
        %v1600 = vlaneseq
        %v1601 = vshrl.u32 %v1600, 7
        %v1602 = vadd.s32 %v1601, 72
        %1603 = vset.pattern.permute.xlu0 %v1602
        %1604 = vperm.xlu0 %1603, %v1545
        %v1605 = vpop.permute.xlu0 %1604
        %v1606 = vlaneseq
        %v1607 = vshrl.u32 %v1606, 7
        %v1608 = vadd.s32 %v1607, 80
        %1609 = vset.pattern.permute.xlu0 %v1608
        %1610 = vperm.xlu0 %1609, %v1545
        %v1611 = vpop.permute.xlu0 %1610
        %v1612 = vlaneseq
        %v1613 = vshrl.u32 %v1612, 7
        %v1614 = vadd.s32 %v1613, 88
        %1615 = vset.pattern.permute.xlu0 %v1614
        %1616 = vperm.xlu0 %1615, %v1545
        %v1617 = vpop.permute.xlu0 %1616
        %v1618 = vlaneseq
        %v1619 = vshrl.u32 %v1618, 7
        %v1620 = vadd.s32 %v1619, 96
        %1621 = vset.pattern.permute.xlu0 %v1620
        %1622 = vperm.xlu0 %1621, %v1545
        %v1623 = vpop.permute.xlu0 %1622
        %v1624 = vlaneseq
        %v1625 = vshrl.u32 %v1624, 7
        %v1626 = vadd.s32 %v1625, 104
        %1627 = vset.pattern.permute.xlu0 %v1626
        %1628 = vperm.xlu0 %1627, %v1545
        %v1629 = vpop.permute.xlu0 %1628
        %v1630 = vlaneseq
        %v1631 = vshrl.u32 %v1630, 7
        %v1632 = vadd.s32 %v1631, 112
        %1633 = vset.pattern.permute.xlu0 %v1632
        %1634 = vperm.xlu0 %1633, %v1545
        %v1635 = vpop.permute.xlu0 %1634
        %v1636 = vlaneseq
        %v1637 = vshrl.u32 %v1636, 7
        %v1638 = vadd.s32 %v1637, 120
        %1639 = vset.pattern.permute.xlu0 %v1638
        %1640 = vperm.xlu0 %1639, %v1545
        %v1641 = vpop.permute.xlu0 %1640
        %v1642 = vperm.slane %v868, 4
        %v1643 = vlaneseq
        %v1644 = vshrl.u32 %v1643, 7
        %1646 = vset.pattern.permute.xlu0 %v1644
        %1647 = vperm.xlu0 %1646, %v1642
        %v1648 = vpop.permute.xlu0 %1647
        %v1649 = vlaneseq
        %v1650 = vshrl.u32 %v1649, 7
        %v1651 = vadd.s32 %v1650, 8
        %1652 = vset.pattern.permute.xlu0 %v1651
        %1653 = vperm.xlu0 %1652, %v1642
        %v1654 = vpop.permute.xlu0 %1653
        %v1655 = vlaneseq
        %v1656 = vshrl.u32 %v1655, 7
        %v1657 = vadd.s32 %v1656, 16
        %1658 = vset.pattern.permute.xlu0 %v1657
        %1659 = vperm.xlu0 %1658, %v1642
        %v1660 = vpop.permute.xlu0 %1659
        %v1661 = vlaneseq
        %v1662 = vshrl.u32 %v1661, 7
        %v1663 = vadd.s32 %v1662, 24
        %1664 = vset.pattern.permute.xlu0 %v1663
        %1665 = vperm.xlu0 %1664, %v1642
        %v1666 = vpop.permute.xlu0 %1665
        %v1667 = vlaneseq
        %v1668 = vshrl.u32 %v1667, 7
        %v1669 = vadd.s32 %v1668, 32
        %1670 = vset.pattern.permute.xlu0 %v1669
        %1671 = vperm.xlu0 %1670, %v1642
        %v1672 = vpop.permute.xlu0 %1671
        %v1673 = vlaneseq
        %v1674 = vshrl.u32 %v1673, 7
        %v1675 = vadd.s32 %v1674, 40
        %1676 = vset.pattern.permute.xlu0 %v1675
        %1677 = vperm.xlu0 %1676, %v1642
        %v1678 = vpop.permute.xlu0 %1677
        %v1679 = vlaneseq
        %v1680 = vshrl.u32 %v1679, 7
        %v1681 = vadd.s32 %v1680, 48
        %1682 = vset.pattern.permute.xlu0 %v1681
        %1683 = vperm.xlu0 %1682, %v1642
        %v1684 = vpop.permute.xlu0 %1683
        %v1685 = vlaneseq
        %v1686 = vshrl.u32 %v1685, 7
        %v1687 = vadd.s32 %v1686, 56
        %1688 = vset.pattern.permute.xlu0 %v1687
        %1689 = vperm.xlu0 %1688, %v1642
        %v1690 = vpop.permute.xlu0 %1689
        %v1691 = vlaneseq
        %v1692 = vshrl.u32 %v1691, 7
        %v1693 = vadd.s32 %v1692, 64
        %1694 = vset.pattern.permute.xlu0 %v1693
        %1695 = vperm.xlu0 %1694, %v1642
        %v1696 = vpop.permute.xlu0 %1695
        %v1697 = vlaneseq
        %v1698 = vshrl.u32 %v1697, 7
        %v1699 = vadd.s32 %v1698, 72
        %1700 = vset.pattern.permute.xlu0 %v1699
        %1701 = vperm.xlu0 %1700, %v1642
        %v1702 = vpop.permute.xlu0 %1701
        %v1703 = vlaneseq
        %v1704 = vshrl.u32 %v1703, 7
        %v1705 = vadd.s32 %v1704, 80
        %1706 = vset.pattern.permute.xlu0 %v1705
        %1707 = vperm.xlu0 %1706, %v1642
        %v1708 = vpop.permute.xlu0 %1707
        %v1709 = vlaneseq
        %v1710 = vshrl.u32 %v1709, 7
        %v1711 = vadd.s32 %v1710, 88
        %1712 = vset.pattern.permute.xlu0 %v1711
        %1713 = vperm.xlu0 %1712, %v1642
        %v1714 = vpop.permute.xlu0 %1713
        %v1715 = vlaneseq
        %v1716 = vshrl.u32 %v1715, 7
        %v1717 = vadd.s32 %v1716, 96
        %1718 = vset.pattern.permute.xlu0 %v1717
        %1719 = vperm.xlu0 %1718, %v1642
        %v1720 = vpop.permute.xlu0 %1719
        %v1721 = vlaneseq
        %v1722 = vshrl.u32 %v1721, 7
        %v1723 = vadd.s32 %v1722, 104
        %1724 = vset.pattern.permute.xlu0 %v1723
        %1725 = vperm.xlu0 %1724, %v1642
        %v1726 = vpop.permute.xlu0 %1725
        %v1727 = vlaneseq
        %v1728 = vshrl.u32 %v1727, 7
        %v1729 = vadd.s32 %v1728, 112
        %1730 = vset.pattern.permute.xlu0 %v1729
        %1731 = vperm.xlu0 %1730, %v1642
        %v1732 = vpop.permute.xlu0 %1731
        %v1733 = vlaneseq
        %v1734 = vshrl.u32 %v1733, 7
        %v1735 = vadd.s32 %v1734, 120
        %1736 = vset.pattern.permute.xlu0 %v1735
        %1737 = vperm.xlu0 %1736, %v1642
        %v1738 = vpop.permute.xlu0 %1737
        %v1739 = vperm.slane %v868, 5
        %v1740 = vlaneseq
        %v1741 = vshrl.u32 %v1740, 7
        %1743 = vset.pattern.permute.xlu0 %v1741
        %1744 = vperm.xlu0 %1743, %v1739
        %v1745 = vpop.permute.xlu0 %1744
        %v1746 = vlaneseq
        %v1747 = vshrl.u32 %v1746, 7
        %v1748 = vadd.s32 %v1747, 8
        %1749 = vset.pattern.permute.xlu0 %v1748
        %1750 = vperm.xlu0 %1749, %v1739
        %v1751 = vpop.permute.xlu0 %1750
        %v1752 = vlaneseq
        %v1753 = vshrl.u32 %v1752, 7
        %v1754 = vadd.s32 %v1753, 16
        %1755 = vset.pattern.permute.xlu0 %v1754
        %1756 = vperm.xlu0 %1755, %v1739
        %v1757 = vpop.permute.xlu0 %1756
        %v1758 = vlaneseq
        %v1759 = vshrl.u32 %v1758, 7
        %v1760 = vadd.s32 %v1759, 24
        %1761 = vset.pattern.permute.xlu0 %v1760
        %1762 = vperm.xlu0 %1761, %v1739
        %v1763 = vpop.permute.xlu0 %1762
        %v1764 = vlaneseq
        %v1765 = vshrl.u32 %v1764, 7
        %v1766 = vadd.s32 %v1765, 32
        %1767 = vset.pattern.permute.xlu0 %v1766
        %1768 = vperm.xlu0 %1767, %v1739
        %v1769 = vpop.permute.xlu0 %1768
        %v1770 = vlaneseq
        %v1771 = vshrl.u32 %v1770, 7
        %v1772 = vadd.s32 %v1771, 40
        %1773 = vset.pattern.permute.xlu0 %v1772
        %1774 = vperm.xlu0 %1773, %v1739
        %v1775 = vpop.permute.xlu0 %1774
        %v1776 = vlaneseq
        %v1777 = vshrl.u32 %v1776, 7
        %v1778 = vadd.s32 %v1777, 48
        %1779 = vset.pattern.permute.xlu0 %v1778
        %1780 = vperm.xlu0 %1779, %v1739
        %v1781 = vpop.permute.xlu0 %1780
        %v1782 = vlaneseq
        %v1783 = vshrl.u32 %v1782, 7
        %v1784 = vadd.s32 %v1783, 56
        %1785 = vset.pattern.permute.xlu0 %v1784
        %1786 = vperm.xlu0 %1785, %v1739
        %v1787 = vpop.permute.xlu0 %1786
        %v1788 = vlaneseq
        %v1789 = vshrl.u32 %v1788, 7
        %v1790 = vadd.s32 %v1789, 64
        %1791 = vset.pattern.permute.xlu0 %v1790
        %1792 = vperm.xlu0 %1791, %v1739
        %v1793 = vpop.permute.xlu0 %1792
        %v1794 = vlaneseq
        %v1795 = vshrl.u32 %v1794, 7
        %v1796 = vadd.s32 %v1795, 72
        %1797 = vset.pattern.permute.xlu0 %v1796
        %1798 = vperm.xlu0 %1797, %v1739
        %v1799 = vpop.permute.xlu0 %1798
        %v1800 = vlaneseq
        %v1801 = vshrl.u32 %v1800, 7
        %v1802 = vadd.s32 %v1801, 80
        %1803 = vset.pattern.permute.xlu0 %v1802
        %1804 = vperm.xlu0 %1803, %v1739
        %v1805 = vpop.permute.xlu0 %1804
        %v1806 = vlaneseq
        %v1807 = vshrl.u32 %v1806, 7
        %v1808 = vadd.s32 %v1807, 88
        %1809 = vset.pattern.permute.xlu0 %v1808
        %1810 = vperm.xlu0 %1809, %v1739
        %v1811 = vpop.permute.xlu0 %1810
        %v1812 = vlaneseq
        %v1813 = vshrl.u32 %v1812, 7
        %v1814 = vadd.s32 %v1813, 96
        %1815 = vset.pattern.permute.xlu0 %v1814
        %1816 = vperm.xlu0 %1815, %v1739
        %v1817 = vpop.permute.xlu0 %1816
        %v1818 = vlaneseq
        %v1819 = vshrl.u32 %v1818, 7
        %v1820 = vadd.s32 %v1819, 104
        %1821 = vset.pattern.permute.xlu0 %v1820
        %1822 = vperm.xlu0 %1821, %v1739
        %v1823 = vpop.permute.xlu0 %1822
        %v1824 = vlaneseq
        %v1825 = vshrl.u32 %v1824, 7
        %v1826 = vadd.s32 %v1825, 112
        %1827 = vset.pattern.permute.xlu0 %v1826
        %1828 = vperm.xlu0 %1827, %v1739
        %v1829 = vpop.permute.xlu0 %1828
        %v1830 = vlaneseq
        %v1831 = vshrl.u32 %v1830, 7
        %v1832 = vadd.s32 %v1831, 120
        %1833 = vset.pattern.permute.xlu0 %v1832
        %1834 = vperm.xlu0 %1833, %v1739
        %v1835 = vpop.permute.xlu0 %1834
        %v1836 = vperm.slane %v868, 6
        %v1837 = vlaneseq
        %v1838 = vshrl.u32 %v1837, 7
        %1840 = vset.pattern.permute.xlu0 %v1838
        %1841 = vperm.xlu0 %1840, %v1836
        %v1842 = vpop.permute.xlu0 %1841
        %v1843 = vlaneseq
        %v1844 = vshrl.u32 %v1843, 7
        %v1845 = vadd.s32 %v1844, 8
        %1846 = vset.pattern.permute.xlu0 %v1845
        %1847 = vperm.xlu0 %1846, %v1836
        %v1848 = vpop.permute.xlu0 %1847
        %v1849 = vlaneseq
        %v1850 = vshrl.u32 %v1849, 7
        %v1851 = vadd.s32 %v1850, 16
        %1852 = vset.pattern.permute.xlu0 %v1851
        %1853 = vperm.xlu0 %1852, %v1836
        %v1854 = vpop.permute.xlu0 %1853
        %v1855 = vlaneseq
        %v1856 = vshrl.u32 %v1855, 7
        %v1857 = vadd.s32 %v1856, 24
        %1858 = vset.pattern.permute.xlu0 %v1857
        %1859 = vperm.xlu0 %1858, %v1836
        %v1860 = vpop.permute.xlu0 %1859
        %v1861 = vlaneseq
        %v1862 = vshrl.u32 %v1861, 7
        %v1863 = vadd.s32 %v1862, 32
        %1864 = vset.pattern.permute.xlu0 %v1863
        %1865 = vperm.xlu0 %1864, %v1836
        %v1866 = vpop.permute.xlu0 %1865
        %v1867 = vlaneseq
        %v1868 = vshrl.u32 %v1867, 7
        %v1869 = vadd.s32 %v1868, 40
        %1870 = vset.pattern.permute.xlu0 %v1869
        %1871 = vperm.xlu0 %1870, %v1836
        %v1872 = vpop.permute.xlu0 %1871
        %v1873 = vlaneseq
        %v1874 = vshrl.u32 %v1873, 7
        %v1875 = vadd.s32 %v1874, 48
        %1876 = vset.pattern.permute.xlu0 %v1875
        %1877 = vperm.xlu0 %1876, %v1836
        %v1878 = vpop.permute.xlu0 %1877
        %v1879 = vlaneseq
        %v1880 = vshrl.u32 %v1879, 7
        %v1881 = vadd.s32 %v1880, 56
        %1882 = vset.pattern.permute.xlu0 %v1881
        %1883 = vperm.xlu0 %1882, %v1836
        %v1884 = vpop.permute.xlu0 %1883
        %v1885 = vlaneseq
        %v1886 = vshrl.u32 %v1885, 7
        %v1887 = vadd.s32 %v1886, 64
        %1888 = vset.pattern.permute.xlu0 %v1887
        %1889 = vperm.xlu0 %1888, %v1836
        %v1890 = vpop.permute.xlu0 %1889
        %v1891 = vlaneseq
        %v1892 = vshrl.u32 %v1891, 7
        %v1893 = vadd.s32 %v1892, 72
        %1894 = vset.pattern.permute.xlu0 %v1893
        %1895 = vperm.xlu0 %1894, %v1836
        %v1896 = vpop.permute.xlu0 %1895
        %v1897 = vlaneseq
        %v1898 = vshrl.u32 %v1897, 7
        %v1899 = vadd.s32 %v1898, 80
        %1900 = vset.pattern.permute.xlu0 %v1899
        %1901 = vperm.xlu0 %1900, %v1836
        %v1902 = vpop.permute.xlu0 %1901
        %v1903 = vlaneseq
        %v1904 = vshrl.u32 %v1903, 7
        %v1905 = vadd.s32 %v1904, 88
        %1906 = vset.pattern.permute.xlu0 %v1905
        %1907 = vperm.xlu0 %1906, %v1836
        %v1908 = vpop.permute.xlu0 %1907
        %v1909 = vlaneseq
        %v1910 = vshrl.u32 %v1909, 7
        %v1911 = vadd.s32 %v1910, 96
        %1912 = vset.pattern.permute.xlu0 %v1911
        %1913 = vperm.xlu0 %1912, %v1836
        %v1914 = vpop.permute.xlu0 %1913
        %v1915 = vlaneseq
        %v1916 = vshrl.u32 %v1915, 7
        %v1917 = vadd.s32 %v1916, 104
        %1918 = vset.pattern.permute.xlu0 %v1917
        %1919 = vperm.xlu0 %1918, %v1836
        %v1920 = vpop.permute.xlu0 %1919
        %v1921 = vlaneseq
        %v1922 = vshrl.u32 %v1921, 7
        %v1923 = vadd.s32 %v1922, 112
        %1924 = vset.pattern.permute.xlu0 %v1923
        %1925 = vperm.xlu0 %1924, %v1836
        %v1926 = vpop.permute.xlu0 %1925
        %v1927 = vlaneseq
        %v1928 = vshrl.u32 %v1927, 7
        %v1929 = vadd.s32 %v1928, 120
        %1930 = vset.pattern.permute.xlu0 %v1929
        %1931 = vperm.xlu0 %1930, %v1836
        %v1932 = vpop.permute.xlu0 %1931
        %v1933 = vperm.slane %v868, 7
        %v1934 = vlaneseq
        %v1935 = vshrl.u32 %v1934, 7
        %1937 = vset.pattern.permute.xlu0 %v1935
        %1938 = vperm.xlu0 %1937, %v1933
        %v1939 = vpop.permute.xlu0 %1938
        %v1940 = vlaneseq
        %v1941 = vshrl.u32 %v1940, 7
        %v1942 = vadd.s32 %v1941, 8
        %1943 = vset.pattern.permute.xlu0 %v1942
        %1944 = vperm.xlu0 %1943, %v1933
        %v1945 = vpop.permute.xlu0 %1944
        %v1946 = vlaneseq
        %v1947 = vshrl.u32 %v1946, 7
        %v1948 = vadd.s32 %v1947, 16
        %1949 = vset.pattern.permute.xlu0 %v1948
        %1950 = vperm.xlu0 %1949, %v1933
        %v1951 = vpop.permute.xlu0 %1950
        %v1952 = vlaneseq
        %v1953 = vshrl.u32 %v1952, 7
        %v1954 = vadd.s32 %v1953, 24
        %1955 = vset.pattern.permute.xlu0 %v1954
        %1956 = vperm.xlu0 %1955, %v1933
        %v1957 = vpop.permute.xlu0 %1956
        %v1958 = vlaneseq
        %v1959 = vshrl.u32 %v1958, 7
        %v1960 = vadd.s32 %v1959, 32
        %1961 = vset.pattern.permute.xlu0 %v1960
        %1962 = vperm.xlu0 %1961, %v1933
        %v1963 = vpop.permute.xlu0 %1962
        %v1964 = vlaneseq
        %v1965 = vshrl.u32 %v1964, 7
        %v1966 = vadd.s32 %v1965, 40
        %1967 = vset.pattern.permute.xlu0 %v1966
        %1968 = vperm.xlu0 %1967, %v1933
        %v1969 = vpop.permute.xlu0 %1968
        %v1970 = vlaneseq
        %v1971 = vshrl.u32 %v1970, 7
        %v1972 = vadd.s32 %v1971, 48
        %1973 = vset.pattern.permute.xlu0 %v1972
        %1974 = vperm.xlu0 %1973, %v1933
        %v1975 = vpop.permute.xlu0 %1974
        %v1976 = vlaneseq
        %v1977 = vshrl.u32 %v1976, 7
        %v1978 = vadd.s32 %v1977, 56
        %1979 = vset.pattern.permute.xlu0 %v1978
        %1980 = vperm.xlu0 %1979, %v1933
        %v1981 = vpop.permute.xlu0 %1980
        %v1982 = vlaneseq
        %v1983 = vshrl.u32 %v1982, 7
        %v1984 = vadd.s32 %v1983, 64
        %1985 = vset.pattern.permute.xlu0 %v1984
        %1986 = vperm.xlu0 %1985, %v1933
        %v1987 = vpop.permute.xlu0 %1986
        %v1988 = vlaneseq
        %v1989 = vshrl.u32 %v1988, 7
        %v1990 = vadd.s32 %v1989, 72
        %1991 = vset.pattern.permute.xlu0 %v1990
        %1992 = vperm.xlu0 %1991, %v1933
        %v1993 = vpop.permute.xlu0 %1992
        %v1994 = vlaneseq
        %v1995 = vshrl.u32 %v1994, 7
        %v1996 = vadd.s32 %v1995, 80
        %1997 = vset.pattern.permute.xlu0 %v1996
        %1998 = vperm.xlu0 %1997, %v1933
        %v1999 = vpop.permute.xlu0 %1998
        %v2000 = vlaneseq
        %v2001 = vshrl.u32 %v2000, 7
        %v2002 = vadd.s32 %v2001, 88
        %2003 = vset.pattern.permute.xlu0 %v2002
        %2004 = vperm.xlu0 %2003, %v1933
        %v2005 = vpop.permute.xlu0 %2004
        %v2006 = vlaneseq
        %v2007 = vshrl.u32 %v2006, 7
        %v2008 = vadd.s32 %v2007, 96
        %2009 = vset.pattern.permute.xlu0 %v2008
        %2010 = vperm.xlu0 %2009, %v1933
        %v2011 = vpop.permute.xlu0 %2010
        %v2012 = vlaneseq
        %v2013 = vshrl.u32 %v2012, 7
        %v2014 = vadd.s32 %v2013, 104
        %2015 = vset.pattern.permute.xlu0 %v2014
        %2016 = vperm.xlu0 %2015, %v1933
        %v2017 = vpop.permute.xlu0 %2016
        %v2018 = vlaneseq
        %v2019 = vshrl.u32 %v2018, 7
        %v2020 = vadd.s32 %v2019, 112
        %2021 = vset.pattern.permute.xlu0 %v2020
        %2022 = vperm.xlu0 %2021, %v1933
        %v2023 = vpop.permute.xlu0 %2022
        %v2024 = vlaneseq
        %v2025 = vshrl.u32 %v2024, 7
        %v2026 = vadd.s32 %v2025, 120
        %2027 = vset.pattern.permute.xlu0 %v2026
        %2028 = vperm.xlu0 %2027, %v1933
        %v2029 = vpop.permute.xlu0 %2028
        %v2030 = vmul.f32 %v1260, %v617
        %v2031 = vmul.f32 %v1266, %v618
        %v2032 = vmul.f32 %v1272, %v619
        %v2033 = vmul.f32 %v1278, %v620
        %v2034 = vmul.f32 %v1284, %v621
        %v2035 = vmul.f32 %v1290, %v622
        %v2036 = vmul.f32 %v1296, %v623
        %v2037 = vmul.f32 %v1302, %v624
        %v2038 = vmul.f32 %v1308, %v625
        %v2039 = vmul.f32 %v1314, %v626
        %v2040 = vmul.f32 %v1320, %v627
        %v2041 = vmul.f32 %v1326, %v628
        %v2042 = vmul.f32 %v1332, %v629
        %v2043 = vmul.f32 %v1338, %v630
        %v2044 = vmul.f32 %v1344, %v631
        %v2045 = vmul.f32 %v1350, %v632
        %v2046 = vmul.f32 %v1357, %v633
        %v2047 = vmul.f32 %v1363, %v634
        %v2048 = vmul.f32 %v1369, %v635
        %v2049 = vmul.f32 %v1375, %v636
        %v2050 = vmul.f32 %v1381, %v637
        %v2051 = vmul.f32 %v1387, %v638
        %v2052 = vmul.f32 %v1393, %v639
        %v2053 = vmul.f32 %v1399, %v640
        %v2054 = vmul.f32 %v1405, %v641
        %v2055 = vmul.f32 %v1411, %v642
        %v2056 = vmul.f32 %v1417, %v643
        %v2057 = vmul.f32 %v1423, %v644
        %v2058 = vmul.f32 %v1429, %v645
        %v2059 = vmul.f32 %v1435, %v646
        %v2060 = vmul.f32 %v1441, %v647
        %v2061 = vmul.f32 %v1447, %v648
        %v2062 = vmul.f32 %v1454, %v649
        %v2063 = vmul.f32 %v1460, %v650
        %v2064 = vmul.f32 %v1466, %v651
        %v2065 = vmul.f32 %v1472, %v652
        %v2066 = vmul.f32 %v1478, %v653
        %v2067 = vmul.f32 %v1484, %v654
        %v2068 = vmul.f32 %v1490, %v655
        %v2069 = vmul.f32 %v1496, %v656
        %v2070 = vmul.f32 %v1502, %v657
        %v2071 = vmul.f32 %v1508, %v658
        %v2072 = vmul.f32 %v1514, %v659
        %v2073 = vmul.f32 %v1520, %v660
        %v2074 = vmul.f32 %v1526, %v661
        %v2075 = vmul.f32 %v1532, %v662
        %v2076 = vmul.f32 %v1538, %v663
        %v2077 = vmul.f32 %v1544, %v664
        %v2078 = vmul.f32 %v1551, %v665
        %v2079 = vmul.f32 %v1557, %v666
        %v2080 = vmul.f32 %v1563, %v667
        %v2081 = vmul.f32 %v1569, %v668
        %v2082 = vmul.f32 %v1575, %v669
        %v2083 = vmul.f32 %v1581, %v670
        %v2084 = vmul.f32 %v1587, %v671
        %v2085 = vmul.f32 %v1593, %v672
        %v2086 = vmul.f32 %v1599, %v673
        %v2087 = vmul.f32 %v1605, %v674
        %v2088 = vmul.f32 %v1611, %v675
        %v2089 = vmul.f32 %v1617, %v676
        %v2090 = vmul.f32 %v1623, %v677
        %v2091 = vmul.f32 %v1629, %v678
        %v2092 = vmul.f32 %v1635, %v679
        %v2093 = vmul.f32 %v1641, %v680
        %v2094 = vmul.f32 %v1648, %v681
        %v2095 = vmul.f32 %v1654, %v682
        %v2096 = vmul.f32 %v1660, %v683
        %v2097 = vmul.f32 %v1666, %v684
        %v2098 = vmul.f32 %v1672, %v685
        %v2099 = vmul.f32 %v1678, %v686
        %v2100 = vmul.f32 %v1684, %v687
        %v2101 = vmul.f32 %v1690, %v688
        %v2102 = vmul.f32 %v1696, %v689
        %v2103 = vmul.f32 %v1702, %v690
        %v2104 = vmul.f32 %v1708, %v691
        %v2105 = vmul.f32 %v1714, %v692
        %v2106 = vmul.f32 %v1720, %v693
        %v2107 = vmul.f32 %v1726, %v694
        %v2108 = vmul.f32 %v1732, %v695
        %v2109 = vmul.f32 %v1738, %v696
        %v2110 = vmul.f32 %v1745, %v697
        %v2111 = vmul.f32 %v1751, %v698
        %v2112 = vmul.f32 %v1757, %v699
        %v2113 = vmul.f32 %v1763, %v700
        %v2114 = vmul.f32 %v1769, %v701
        %v2115 = vmul.f32 %v1775, %v702
        %v2116 = vmul.f32 %v1781, %v703
        %v2117 = vmul.f32 %v1787, %v704
        %v2118 = vmul.f32 %v1793, %v705
        %v2119 = vmul.f32 %v1799, %v706
        %v2120 = vmul.f32 %v1805, %v707
        %v2121 = vmul.f32 %v1811, %v708
        %v2122 = vmul.f32 %v1817, %v709
        %v2123 = vmul.f32 %v1823, %v710
        %v2124 = vmul.f32 %v1829, %v711
        %v2125 = vmul.f32 %v1835, %v712
        %v2126 = vmul.f32 %v1842, %v713
        %v2127 = vmul.f32 %v1848, %v714
        %v2128 = vmul.f32 %v1854, %v715
        %v2129 = vmul.f32 %v1860, %v716
        %v2130 = vmul.f32 %v1866, %v717
        %v2131 = vmul.f32 %v1872, %v718
        %v2132 = vmul.f32 %v1878, %v719
        %v2133 = vmul.f32 %v1884, %v720
        %v2134 = vmul.f32 %v1890, %v721
        %v2135 = vmul.f32 %v1896, %v722
        %v2136 = vmul.f32 %v1902, %v723
        %v2137 = vmul.f32 %v1908, %v724
        %v2138 = vmul.f32 %v1914, %v725
        %v2139 = vmul.f32 %v1920, %v726
        %v2140 = vmul.f32 %v1926, %v727
        %v2141 = vmul.f32 %v1932, %v728
        %v2142 = vmul.f32 %v1939, %v729
        %v2143 = vmul.f32 %v1945, %v730
        %v2144 = vmul.f32 %v1951, %v731
        %v2145 = vmul.f32 %v1957, %v732
        %v2146 = vmul.f32 %v1963, %v733
        %v2147 = vmul.f32 %v1969, %v734
        %v2148 = vmul.f32 %v1975, %v735
        %v2149 = vmul.f32 %v1981, %v736
        %v2150 = vmul.f32 %v1987, %v737
        %v2151 = vmul.f32 %v1993, %v738
        %v2152 = vmul.f32 %v1999, %v739
        %v2153 = vmul.f32 %v2005, %v740
        %v2154 = vmul.f32 %v2011, %v741
        %v2155 = vmul.f32 %v2017, %v742
        %v2156 = vmul.f32 %v2023, %v743
        %v2157 = vmul.f32 %v2029, %v744
        %v2158 = vperm.slane %v1253, 0
        %v2159 = vlaneseq
        %v2160 = vshrl.u32 %v2159, 7
        %2162 = vset.pattern.permute.xlu0 %v2160
        %2163 = vperm.xlu0 %2162, %v2158
        %v2164 = vpop.permute.xlu0 %2163
        %v2165 = vlaneseq
        %v2166 = vshrl.u32 %v2165, 7
        %v2167 = vadd.s32 %v2166, 8
        %2168 = vset.pattern.permute.xlu0 %v2167
        %2169 = vperm.xlu0 %2168, %v2158
        %v2170 = vpop.permute.xlu0 %2169
        %v2171 = vlaneseq
        %v2172 = vshrl.u32 %v2171, 7
        %v2173 = vadd.s32 %v2172, 16
        %2174 = vset.pattern.permute.xlu0 %v2173
        %2175 = vperm.xlu0 %2174, %v2158
        %v2176 = vpop.permute.xlu0 %2175
        %v2177 = vlaneseq
        %v2178 = vshrl.u32 %v2177, 7
        %v2179 = vadd.s32 %v2178, 24
        %2180 = vset.pattern.permute.xlu0 %v2179
        %2181 = vperm.xlu0 %2180, %v2158
        %v2182 = vpop.permute.xlu0 %2181
        %v2183 = vlaneseq
        %v2184 = vshrl.u32 %v2183, 7
        %v2185 = vadd.s32 %v2184, 32
        %2186 = vset.pattern.permute.xlu0 %v2185
        %2187 = vperm.xlu0 %2186, %v2158
        %v2188 = vpop.permute.xlu0 %2187
        %v2189 = vlaneseq
        %v2190 = vshrl.u32 %v2189, 7
        %v2191 = vadd.s32 %v2190, 40
        %2192 = vset.pattern.permute.xlu0 %v2191
        %2193 = vperm.xlu0 %2192, %v2158
        %v2194 = vpop.permute.xlu0 %2193
        %v2195 = vlaneseq
        %v2196 = vshrl.u32 %v2195, 7
        %v2197 = vadd.s32 %v2196, 48
        %2198 = vset.pattern.permute.xlu0 %v2197
        %2199 = vperm.xlu0 %2198, %v2158
        %v2200 = vpop.permute.xlu0 %2199
        %v2201 = vlaneseq
        %v2202 = vshrl.u32 %v2201, 7
        %v2203 = vadd.s32 %v2202, 56
        %2204 = vset.pattern.permute.xlu0 %v2203
        %2205 = vperm.xlu0 %2204, %v2158
        %v2206 = vpop.permute.xlu0 %2205
        %v2207 = vlaneseq
        %v2208 = vshrl.u32 %v2207, 7
        %v2209 = vadd.s32 %v2208, 64
        %2210 = vset.pattern.permute.xlu0 %v2209
        %2211 = vperm.xlu0 %2210, %v2158
        %v2212 = vpop.permute.xlu0 %2211
        %v2213 = vlaneseq
        %v2214 = vshrl.u32 %v2213, 7
        %v2215 = vadd.s32 %v2214, 72
        %2216 = vset.pattern.permute.xlu0 %v2215
        %2217 = vperm.xlu0 %2216, %v2158
        %v2218 = vpop.permute.xlu0 %2217
        %v2219 = vlaneseq
        %v2220 = vshrl.u32 %v2219, 7
        %v2221 = vadd.s32 %v2220, 80
        %2222 = vset.pattern.permute.xlu0 %v2221
        %2223 = vperm.xlu0 %2222, %v2158
        %v2224 = vpop.permute.xlu0 %2223
        %v2225 = vlaneseq
        %v2226 = vshrl.u32 %v2225, 7
        %v2227 = vadd.s32 %v2226, 88
        %2228 = vset.pattern.permute.xlu0 %v2227
        %2229 = vperm.xlu0 %2228, %v2158
        %v2230 = vpop.permute.xlu0 %2229
        %v2231 = vlaneseq
        %v2232 = vshrl.u32 %v2231, 7
        %v2233 = vadd.s32 %v2232, 96
        %2234 = vset.pattern.permute.xlu0 %v2233
        %2235 = vperm.xlu0 %2234, %v2158
        %v2236 = vpop.permute.xlu0 %2235
        %v2237 = vlaneseq
        %v2238 = vshrl.u32 %v2237, 7
        %v2239 = vadd.s32 %v2238, 104
        %2240 = vset.pattern.permute.xlu0 %v2239
        %2241 = vperm.xlu0 %2240, %v2158
        %v2242 = vpop.permute.xlu0 %2241
        %v2243 = vlaneseq
        %v2244 = vshrl.u32 %v2243, 7
        %v2245 = vadd.s32 %v2244, 112
        %2246 = vset.pattern.permute.xlu0 %v2245
        %2247 = vperm.xlu0 %2246, %v2158
        %v2248 = vpop.permute.xlu0 %2247
        %v2249 = vlaneseq
        %v2250 = vshrl.u32 %v2249, 7
        %v2251 = vadd.s32 %v2250, 120
        %2252 = vset.pattern.permute.xlu0 %v2251
        %2253 = vperm.xlu0 %2252, %v2158
        %v2254 = vpop.permute.xlu0 %2253
        %v2255 = vperm.slane %v1253, 1
        %v2256 = vlaneseq
        %v2257 = vshrl.u32 %v2256, 7
        %2259 = vset.pattern.permute.xlu0 %v2257
        %2260 = vperm.xlu0 %2259, %v2255
        %v2261 = vpop.permute.xlu0 %2260
        %v2262 = vlaneseq
        %v2263 = vshrl.u32 %v2262, 7
        %v2264 = vadd.s32 %v2263, 8
        %2265 = vset.pattern.permute.xlu0 %v2264
        %2266 = vperm.xlu0 %2265, %v2255
        %v2267 = vpop.permute.xlu0 %2266
        %v2268 = vlaneseq
        %v2269 = vshrl.u32 %v2268, 7
        %v2270 = vadd.s32 %v2269, 16
        %2271 = vset.pattern.permute.xlu0 %v2270
        %2272 = vperm.xlu0 %2271, %v2255
        %v2273 = vpop.permute.xlu0 %2272
        %v2274 = vlaneseq
        %v2275 = vshrl.u32 %v2274, 7
        %v2276 = vadd.s32 %v2275, 24
        %2277 = vset.pattern.permute.xlu0 %v2276
        %2278 = vperm.xlu0 %2277, %v2255
        %v2279 = vpop.permute.xlu0 %2278
        %v2280 = vlaneseq
        %v2281 = vshrl.u32 %v2280, 7
        %v2282 = vadd.s32 %v2281, 32
        %2283 = vset.pattern.permute.xlu0 %v2282
        %2284 = vperm.xlu0 %2283, %v2255
        %v2285 = vpop.permute.xlu0 %2284
        %v2286 = vlaneseq
        %v2287 = vshrl.u32 %v2286, 7
        %v2288 = vadd.s32 %v2287, 40
        %2289 = vset.pattern.permute.xlu0 %v2288
        %2290 = vperm.xlu0 %2289, %v2255
        %v2291 = vpop.permute.xlu0 %2290
        %v2292 = vlaneseq
        %v2293 = vshrl.u32 %v2292, 7
        %v2294 = vadd.s32 %v2293, 48
        %2295 = vset.pattern.permute.xlu0 %v2294
        %2296 = vperm.xlu0 %2295, %v2255
        %v2297 = vpop.permute.xlu0 %2296
        %v2298 = vlaneseq
        %v2299 = vshrl.u32 %v2298, 7
        %v2300 = vadd.s32 %v2299, 56
        %2301 = vset.pattern.permute.xlu0 %v2300
        %2302 = vperm.xlu0 %2301, %v2255
        %v2303 = vpop.permute.xlu0 %2302
        %v2304 = vlaneseq
        %v2305 = vshrl.u32 %v2304, 7
        %v2306 = vadd.s32 %v2305, 64
        %2307 = vset.pattern.permute.xlu0 %v2306
        %2308 = vperm.xlu0 %2307, %v2255
        %v2309 = vpop.permute.xlu0 %2308
        %v2310 = vlaneseq
        %v2311 = vshrl.u32 %v2310, 7
        %v2312 = vadd.s32 %v2311, 72
        %2313 = vset.pattern.permute.xlu0 %v2312
        %2314 = vperm.xlu0 %2313, %v2255
        %v2315 = vpop.permute.xlu0 %2314
        %v2316 = vlaneseq
        %v2317 = vshrl.u32 %v2316, 7
        %v2318 = vadd.s32 %v2317, 80
        %2319 = vset.pattern.permute.xlu0 %v2318
        %2320 = vperm.xlu0 %2319, %v2255
        %v2321 = vpop.permute.xlu0 %2320
        %v2322 = vlaneseq
        %v2323 = vshrl.u32 %v2322, 7
        %v2324 = vadd.s32 %v2323, 88
        %2325 = vset.pattern.permute.xlu0 %v2324
        %2326 = vperm.xlu0 %2325, %v2255
        %v2327 = vpop.permute.xlu0 %2326
        %v2328 = vlaneseq
        %v2329 = vshrl.u32 %v2328, 7
        %v2330 = vadd.s32 %v2329, 96
        %2331 = vset.pattern.permute.xlu0 %v2330
        %2332 = vperm.xlu0 %2331, %v2255
        %v2333 = vpop.permute.xlu0 %2332
        %v2334 = vlaneseq
        %v2335 = vshrl.u32 %v2334, 7
        %v2336 = vadd.s32 %v2335, 104
        %2337 = vset.pattern.permute.xlu0 %v2336
        %2338 = vperm.xlu0 %2337, %v2255
        %v2339 = vpop.permute.xlu0 %2338
        %v2340 = vlaneseq
        %v2341 = vshrl.u32 %v2340, 7
        %v2342 = vadd.s32 %v2341, 112
        %2343 = vset.pattern.permute.xlu0 %v2342
        %2344 = vperm.xlu0 %2343, %v2255
        %v2345 = vpop.permute.xlu0 %2344
        %v2346 = vlaneseq
        %v2347 = vshrl.u32 %v2346, 7
        %v2348 = vadd.s32 %v2347, 120
        %2349 = vset.pattern.permute.xlu0 %v2348
        %2350 = vperm.xlu0 %2349, %v2255
        %v2351 = vpop.permute.xlu0 %2350
        %v2352 = vperm.slane %v1253, 2
        %v2353 = vlaneseq
        %v2354 = vshrl.u32 %v2353, 7
        %2356 = vset.pattern.permute.xlu0 %v2354
        %2357 = vperm.xlu0 %2356, %v2352
        %v2358 = vpop.permute.xlu0 %2357
        %v2359 = vlaneseq
        %v2360 = vshrl.u32 %v2359, 7
        %v2361 = vadd.s32 %v2360, 8
        %2362 = vset.pattern.permute.xlu0 %v2361
        %2363 = vperm.xlu0 %2362, %v2352
        %v2364 = vpop.permute.xlu0 %2363
        %v2365 = vlaneseq
        %v2366 = vshrl.u32 %v2365, 7
        %v2367 = vadd.s32 %v2366, 16
        %2368 = vset.pattern.permute.xlu0 %v2367
        %2369 = vperm.xlu0 %2368, %v2352
        %v2370 = vpop.permute.xlu0 %2369
        %v2371 = vlaneseq
        %v2372 = vshrl.u32 %v2371, 7
        %v2373 = vadd.s32 %v2372, 24
        %2374 = vset.pattern.permute.xlu0 %v2373
        %2375 = vperm.xlu0 %2374, %v2352
        %v2376 = vpop.permute.xlu0 %2375
        %v2377 = vlaneseq
        %v2378 = vshrl.u32 %v2377, 7
        %v2379 = vadd.s32 %v2378, 32
        %2380 = vset.pattern.permute.xlu0 %v2379
        %2381 = vperm.xlu0 %2380, %v2352
        %v2382 = vpop.permute.xlu0 %2381
        %v2383 = vlaneseq
        %v2384 = vshrl.u32 %v2383, 7
        %v2385 = vadd.s32 %v2384, 40
        %2386 = vset.pattern.permute.xlu0 %v2385
        %2387 = vperm.xlu0 %2386, %v2352
        %v2388 = vpop.permute.xlu0 %2387
        %v2389 = vlaneseq
        %v2390 = vshrl.u32 %v2389, 7
        %v2391 = vadd.s32 %v2390, 48
        %2392 = vset.pattern.permute.xlu0 %v2391
        %2393 = vperm.xlu0 %2392, %v2352
        %v2394 = vpop.permute.xlu0 %2393
        %v2395 = vlaneseq
        %v2396 = vshrl.u32 %v2395, 7
        %v2397 = vadd.s32 %v2396, 56
        %2398 = vset.pattern.permute.xlu0 %v2397
        %2399 = vperm.xlu0 %2398, %v2352
        %v2400 = vpop.permute.xlu0 %2399
        %v2401 = vlaneseq
        %v2402 = vshrl.u32 %v2401, 7
        %v2403 = vadd.s32 %v2402, 64
        %2404 = vset.pattern.permute.xlu0 %v2403
        %2405 = vperm.xlu0 %2404, %v2352
        %v2406 = vpop.permute.xlu0 %2405
        %v2407 = vlaneseq
        %v2408 = vshrl.u32 %v2407, 7
        %v2409 = vadd.s32 %v2408, 72
        %2410 = vset.pattern.permute.xlu0 %v2409
        %2411 = vperm.xlu0 %2410, %v2352
        %v2412 = vpop.permute.xlu0 %2411
        %v2413 = vlaneseq
        %v2414 = vshrl.u32 %v2413, 7
        %v2415 = vadd.s32 %v2414, 80
        %2416 = vset.pattern.permute.xlu0 %v2415
        %2417 = vperm.xlu0 %2416, %v2352
        %v2418 = vpop.permute.xlu0 %2417
        %v2419 = vlaneseq
        %v2420 = vshrl.u32 %v2419, 7
        %v2421 = vadd.s32 %v2420, 88
        %2422 = vset.pattern.permute.xlu0 %v2421
        %2423 = vperm.xlu0 %2422, %v2352
        %v2424 = vpop.permute.xlu0 %2423
        %v2425 = vlaneseq
        %v2426 = vshrl.u32 %v2425, 7
        %v2427 = vadd.s32 %v2426, 96
        %2428 = vset.pattern.permute.xlu0 %v2427
        %2429 = vperm.xlu0 %2428, %v2352
        %v2430 = vpop.permute.xlu0 %2429
        %v2431 = vlaneseq
        %v2432 = vshrl.u32 %v2431, 7
        %v2433 = vadd.s32 %v2432, 104
        %2434 = vset.pattern.permute.xlu0 %v2433
        %2435 = vperm.xlu0 %2434, %v2352
        %v2436 = vpop.permute.xlu0 %2435
        %v2437 = vlaneseq
        %v2438 = vshrl.u32 %v2437, 7
        %v2439 = vadd.s32 %v2438, 112
        %2440 = vset.pattern.permute.xlu0 %v2439
        %2441 = vperm.xlu0 %2440, %v2352
        %v2442 = vpop.permute.xlu0 %2441
        %v2443 = vlaneseq
        %v2444 = vshrl.u32 %v2443, 7
        %v2445 = vadd.s32 %v2444, 120
        %2446 = vset.pattern.permute.xlu0 %v2445
        %2447 = vperm.xlu0 %2446, %v2352
        %v2448 = vpop.permute.xlu0 %2447
        %v2449 = vperm.slane %v1253, 3
        %v2450 = vlaneseq
        %v2451 = vshrl.u32 %v2450, 7
        %2453 = vset.pattern.permute.xlu0 %v2451
        %2454 = vperm.xlu0 %2453, %v2449
        %v2455 = vpop.permute.xlu0 %2454
        %v2456 = vlaneseq
        %v2457 = vshrl.u32 %v2456, 7
        %v2458 = vadd.s32 %v2457, 8
        %2459 = vset.pattern.permute.xlu0 %v2458
        %2460 = vperm.xlu0 %2459, %v2449
        %v2461 = vpop.permute.xlu0 %2460
        %v2462 = vlaneseq
        %v2463 = vshrl.u32 %v2462, 7
        %v2464 = vadd.s32 %v2463, 16
        %2465 = vset.pattern.permute.xlu0 %v2464
        %2466 = vperm.xlu0 %2465, %v2449
        %v2467 = vpop.permute.xlu0 %2466
        %v2468 = vlaneseq
        %v2469 = vshrl.u32 %v2468, 7
        %v2470 = vadd.s32 %v2469, 24
        %2471 = vset.pattern.permute.xlu0 %v2470
        %2472 = vperm.xlu0 %2471, %v2449
        %v2473 = vpop.permute.xlu0 %2472
        %v2474 = vlaneseq
        %v2475 = vshrl.u32 %v2474, 7
        %v2476 = vadd.s32 %v2475, 32
        %2477 = vset.pattern.permute.xlu0 %v2476
        %2478 = vperm.xlu0 %2477, %v2449
        %v2479 = vpop.permute.xlu0 %2478
        %v2480 = vlaneseq
        %v2481 = vshrl.u32 %v2480, 7
        %v2482 = vadd.s32 %v2481, 40
        %2483 = vset.pattern.permute.xlu0 %v2482
        %2484 = vperm.xlu0 %2483, %v2449
        %v2485 = vpop.permute.xlu0 %2484
        %v2486 = vlaneseq
        %v2487 = vshrl.u32 %v2486, 7
        %v2488 = vadd.s32 %v2487, 48
        %2489 = vset.pattern.permute.xlu0 %v2488
        %2490 = vperm.xlu0 %2489, %v2449
        %v2491 = vpop.permute.xlu0 %2490
        %v2492 = vlaneseq
        %v2493 = vshrl.u32 %v2492, 7
        %v2494 = vadd.s32 %v2493, 56
        %2495 = vset.pattern.permute.xlu0 %v2494
        %2496 = vperm.xlu0 %2495, %v2449
        %v2497 = vpop.permute.xlu0 %2496
        %v2498 = vlaneseq
        %v2499 = vshrl.u32 %v2498, 7
        %v2500 = vadd.s32 %v2499, 64
        %2501 = vset.pattern.permute.xlu0 %v2500
        %2502 = vperm.xlu0 %2501, %v2449
        %v2503 = vpop.permute.xlu0 %2502
        %v2504 = vlaneseq
        %v2505 = vshrl.u32 %v2504, 7
        %v2506 = vadd.s32 %v2505, 72
        %2507 = vset.pattern.permute.xlu0 %v2506
        %2508 = vperm.xlu0 %2507, %v2449
        %v2509 = vpop.permute.xlu0 %2508
        %v2510 = vlaneseq
        %v2511 = vshrl.u32 %v2510, 7
        %v2512 = vadd.s32 %v2511, 80
        %2513 = vset.pattern.permute.xlu0 %v2512
        %2514 = vperm.xlu0 %2513, %v2449
        %v2515 = vpop.permute.xlu0 %2514
        %v2516 = vlaneseq
        %v2517 = vshrl.u32 %v2516, 7
        %v2518 = vadd.s32 %v2517, 88
        %2519 = vset.pattern.permute.xlu0 %v2518
        %2520 = vperm.xlu0 %2519, %v2449
        %v2521 = vpop.permute.xlu0 %2520
        %v2522 = vlaneseq
        %v2523 = vshrl.u32 %v2522, 7
        %v2524 = vadd.s32 %v2523, 96
        %2525 = vset.pattern.permute.xlu0 %v2524
        %2526 = vperm.xlu0 %2525, %v2449
        %v2527 = vpop.permute.xlu0 %2526
        %v2528 = vlaneseq
        %v2529 = vshrl.u32 %v2528, 7
        %v2530 = vadd.s32 %v2529, 104
        %2531 = vset.pattern.permute.xlu0 %v2530
        %2532 = vperm.xlu0 %2531, %v2449
        %v2533 = vpop.permute.xlu0 %2532
        %v2534 = vlaneseq
        %v2535 = vshrl.u32 %v2534, 7
        %v2536 = vadd.s32 %v2535, 112
        %2537 = vset.pattern.permute.xlu0 %v2536
        %2538 = vperm.xlu0 %2537, %v2449
        %v2539 = vpop.permute.xlu0 %2538
        %v2540 = vlaneseq
        %v2541 = vshrl.u32 %v2540, 7
        %v2542 = vadd.s32 %v2541, 120
        %2543 = vset.pattern.permute.xlu0 %v2542
        %2544 = vperm.xlu0 %2543, %v2449
        %v2545 = vpop.permute.xlu0 %2544
        %v2546 = vperm.slane %v1253, 4
        %v2547 = vlaneseq
        %v2548 = vshrl.u32 %v2547, 7
        %2550 = vset.pattern.permute.xlu0 %v2548
        %2551 = vperm.xlu0 %2550, %v2546
        %v2552 = vpop.permute.xlu0 %2551
        %v2553 = vlaneseq
        %v2554 = vshrl.u32 %v2553, 7
        %v2555 = vadd.s32 %v2554, 8
        %2556 = vset.pattern.permute.xlu0 %v2555
        %2557 = vperm.xlu0 %2556, %v2546
        %v2558 = vpop.permute.xlu0 %2557
        %v2559 = vlaneseq
        %v2560 = vshrl.u32 %v2559, 7
        %v2561 = vadd.s32 %v2560, 16
        %2562 = vset.pattern.permute.xlu0 %v2561
        %2563 = vperm.xlu0 %2562, %v2546
        %v2564 = vpop.permute.xlu0 %2563
        %v2565 = vlaneseq
        %v2566 = vshrl.u32 %v2565, 7
        %v2567 = vadd.s32 %v2566, 24
        %2568 = vset.pattern.permute.xlu0 %v2567
        %2569 = vperm.xlu0 %2568, %v2546
        %v2570 = vpop.permute.xlu0 %2569
        %v2571 = vlaneseq
        %v2572 = vshrl.u32 %v2571, 7
        %v2573 = vadd.s32 %v2572, 32
        %2574 = vset.pattern.permute.xlu0 %v2573
        %2575 = vperm.xlu0 %2574, %v2546
        %v2576 = vpop.permute.xlu0 %2575
        %v2577 = vlaneseq
        %v2578 = vshrl.u32 %v2577, 7
        %v2579 = vadd.s32 %v2578, 40
        %2580 = vset.pattern.permute.xlu0 %v2579
        %2581 = vperm.xlu0 %2580, %v2546
        %v2582 = vpop.permute.xlu0 %2581
        %v2583 = vlaneseq
        %v2584 = vshrl.u32 %v2583, 7
        %v2585 = vadd.s32 %v2584, 48
        %2586 = vset.pattern.permute.xlu0 %v2585
        %2587 = vperm.xlu0 %2586, %v2546
        %v2588 = vpop.permute.xlu0 %2587
        %v2589 = vlaneseq
        %v2590 = vshrl.u32 %v2589, 7
        %v2591 = vadd.s32 %v2590, 56
        %2592 = vset.pattern.permute.xlu0 %v2591
        %2593 = vperm.xlu0 %2592, %v2546
        %v2594 = vpop.permute.xlu0 %2593
        %v2595 = vlaneseq
        %v2596 = vshrl.u32 %v2595, 7
        %v2597 = vadd.s32 %v2596, 64
        %2598 = vset.pattern.permute.xlu0 %v2597
        %2599 = vperm.xlu0 %2598, %v2546
        %v2600 = vpop.permute.xlu0 %2599
        %v2601 = vlaneseq
        %v2602 = vshrl.u32 %v2601, 7
        %v2603 = vadd.s32 %v2602, 72
        %2604 = vset.pattern.permute.xlu0 %v2603
        %2605 = vperm.xlu0 %2604, %v2546
        %v2606 = vpop.permute.xlu0 %2605
        %v2607 = vlaneseq
        %v2608 = vshrl.u32 %v2607, 7
        %v2609 = vadd.s32 %v2608, 80
        %2610 = vset.pattern.permute.xlu0 %v2609
        %2611 = vperm.xlu0 %2610, %v2546
        %v2612 = vpop.permute.xlu0 %2611
        %v2613 = vlaneseq
        %v2614 = vshrl.u32 %v2613, 7
        %v2615 = vadd.s32 %v2614, 88
        %2616 = vset.pattern.permute.xlu0 %v2615
        %2617 = vperm.xlu0 %2616, %v2546
        %v2618 = vpop.permute.xlu0 %2617
        %v2619 = vlaneseq
        %v2620 = vshrl.u32 %v2619, 7
        %v2621 = vadd.s32 %v2620, 96
        %2622 = vset.pattern.permute.xlu0 %v2621
        %2623 = vperm.xlu0 %2622, %v2546
        %v2624 = vpop.permute.xlu0 %2623
        %v2625 = vlaneseq
        %v2626 = vshrl.u32 %v2625, 7
        %v2627 = vadd.s32 %v2626, 104
        %2628 = vset.pattern.permute.xlu0 %v2627
        %2629 = vperm.xlu0 %2628, %v2546
        %v2630 = vpop.permute.xlu0 %2629
        %v2631 = vlaneseq
        %v2632 = vshrl.u32 %v2631, 7
        %v2633 = vadd.s32 %v2632, 112
        %2634 = vset.pattern.permute.xlu0 %v2633
        %2635 = vperm.xlu0 %2634, %v2546
        %v2636 = vpop.permute.xlu0 %2635
        %v2637 = vlaneseq
        %v2638 = vshrl.u32 %v2637, 7
        %v2639 = vadd.s32 %v2638, 120
        %2640 = vset.pattern.permute.xlu0 %v2639
        %2641 = vperm.xlu0 %2640, %v2546
        %v2642 = vpop.permute.xlu0 %2641
        %v2643 = vperm.slane %v1253, 5
        %v2644 = vlaneseq
        %v2645 = vshrl.u32 %v2644, 7
        %2647 = vset.pattern.permute.xlu0 %v2645
        %2648 = vperm.xlu0 %2647, %v2643
        %v2649 = vpop.permute.xlu0 %2648
        %v2650 = vlaneseq
        %v2651 = vshrl.u32 %v2650, 7
        %v2652 = vadd.s32 %v2651, 8
        %2653 = vset.pattern.permute.xlu0 %v2652
        %2654 = vperm.xlu0 %2653, %v2643
        %v2655 = vpop.permute.xlu0 %2654
        %v2656 = vlaneseq
        %v2657 = vshrl.u32 %v2656, 7
        %v2658 = vadd.s32 %v2657, 16
        %2659 = vset.pattern.permute.xlu0 %v2658
        %2660 = vperm.xlu0 %2659, %v2643
        %v2661 = vpop.permute.xlu0 %2660
        %v2662 = vlaneseq
        %v2663 = vshrl.u32 %v2662, 7
        %v2664 = vadd.s32 %v2663, 24
        %2665 = vset.pattern.permute.xlu0 %v2664
        %2666 = vperm.xlu0 %2665, %v2643
        %v2667 = vpop.permute.xlu0 %2666
        %v2668 = vlaneseq
        %v2669 = vshrl.u32 %v2668, 7
        %v2670 = vadd.s32 %v2669, 32
        %2671 = vset.pattern.permute.xlu0 %v2670
        %2672 = vperm.xlu0 %2671, %v2643
        %v2673 = vpop.permute.xlu0 %2672
        %v2674 = vlaneseq
        %v2675 = vshrl.u32 %v2674, 7
        %v2676 = vadd.s32 %v2675, 40
        %2677 = vset.pattern.permute.xlu0 %v2676
        %2678 = vperm.xlu0 %2677, %v2643
        %v2679 = vpop.permute.xlu0 %2678
        %v2680 = vlaneseq
        %v2681 = vshrl.u32 %v2680, 7
        %v2682 = vadd.s32 %v2681, 48
        %2683 = vset.pattern.permute.xlu0 %v2682
        %2684 = vperm.xlu0 %2683, %v2643
        %v2685 = vpop.permute.xlu0 %2684
        %v2686 = vlaneseq
        %v2687 = vshrl.u32 %v2686, 7
        %v2688 = vadd.s32 %v2687, 56
        %2689 = vset.pattern.permute.xlu0 %v2688
        %2690 = vperm.xlu0 %2689, %v2643
        %v2691 = vpop.permute.xlu0 %2690
        %v2692 = vlaneseq
        %v2693 = vshrl.u32 %v2692, 7
        %v2694 = vadd.s32 %v2693, 64
        %2695 = vset.pattern.permute.xlu0 %v2694
        %2696 = vperm.xlu0 %2695, %v2643
        %v2697 = vpop.permute.xlu0 %2696
        %v2698 = vlaneseq
        %v2699 = vshrl.u32 %v2698, 7
        %v2700 = vadd.s32 %v2699, 72
        %2701 = vset.pattern.permute.xlu0 %v2700
        %2702 = vperm.xlu0 %2701, %v2643
        %v2703 = vpop.permute.xlu0 %2702
        %v2704 = vlaneseq
        %v2705 = vshrl.u32 %v2704, 7
        %v2706 = vadd.s32 %v2705, 80
        %2707 = vset.pattern.permute.xlu0 %v2706
        %2708 = vperm.xlu0 %2707, %v2643
        %v2709 = vpop.permute.xlu0 %2708
        %v2710 = vlaneseq
        %v2711 = vshrl.u32 %v2710, 7
        %v2712 = vadd.s32 %v2711, 88
        %2713 = vset.pattern.permute.xlu0 %v2712
        %2714 = vperm.xlu0 %2713, %v2643
        %v2715 = vpop.permute.xlu0 %2714
        %v2716 = vlaneseq
        %v2717 = vshrl.u32 %v2716, 7
        %v2718 = vadd.s32 %v2717, 96
        %2719 = vset.pattern.permute.xlu0 %v2718
        %2720 = vperm.xlu0 %2719, %v2643
        %v2721 = vpop.permute.xlu0 %2720
        %v2722 = vlaneseq
        %v2723 = vshrl.u32 %v2722, 7
        %v2724 = vadd.s32 %v2723, 104
        %2725 = vset.pattern.permute.xlu0 %v2724
        %2726 = vperm.xlu0 %2725, %v2643
        %v2727 = vpop.permute.xlu0 %2726
        %v2728 = vlaneseq
        %v2729 = vshrl.u32 %v2728, 7
        %v2730 = vadd.s32 %v2729, 112
        %2731 = vset.pattern.permute.xlu0 %v2730
        %2732 = vperm.xlu0 %2731, %v2643
        %v2733 = vpop.permute.xlu0 %2732
        %v2734 = vlaneseq
        %v2735 = vshrl.u32 %v2734, 7
        %v2736 = vadd.s32 %v2735, 120
        %2737 = vset.pattern.permute.xlu0 %v2736
        %2738 = vperm.xlu0 %2737, %v2643
        %v2739 = vpop.permute.xlu0 %2738
        %v2740 = vperm.slane %v1253, 6
        %v2741 = vlaneseq
        %v2742 = vshrl.u32 %v2741, 7
        %2744 = vset.pattern.permute.xlu0 %v2742
        %2745 = vperm.xlu0 %2744, %v2740
        %v2746 = vpop.permute.xlu0 %2745
        %v2747 = vlaneseq
        %v2748 = vshrl.u32 %v2747, 7
        %v2749 = vadd.s32 %v2748, 8
        %2750 = vset.pattern.permute.xlu0 %v2749
        %2751 = vperm.xlu0 %2750, %v2740
        %v2752 = vpop.permute.xlu0 %2751
        %v2753 = vlaneseq
        %v2754 = vshrl.u32 %v2753, 7
        %v2755 = vadd.s32 %v2754, 16
        %2756 = vset.pattern.permute.xlu0 %v2755
        %2757 = vperm.xlu0 %2756, %v2740
        %v2758 = vpop.permute.xlu0 %2757
        %v2759 = vlaneseq
        %v2760 = vshrl.u32 %v2759, 7
        %v2761 = vadd.s32 %v2760, 24
        %2762 = vset.pattern.permute.xlu0 %v2761
        %2763 = vperm.xlu0 %2762, %v2740
        %v2764 = vpop.permute.xlu0 %2763
        %v2765 = vlaneseq
        %v2766 = vshrl.u32 %v2765, 7
        %v2767 = vadd.s32 %v2766, 32
        %2768 = vset.pattern.permute.xlu0 %v2767
        %2769 = vperm.xlu0 %2768, %v2740
        %v2770 = vpop.permute.xlu0 %2769
        %v2771 = vlaneseq
        %v2772 = vshrl.u32 %v2771, 7
        %v2773 = vadd.s32 %v2772, 40
        %2774 = vset.pattern.permute.xlu0 %v2773
        %2775 = vperm.xlu0 %2774, %v2740
        %v2776 = vpop.permute.xlu0 %2775
        %v2777 = vlaneseq
        %v2778 = vshrl.u32 %v2777, 7
        %v2779 = vadd.s32 %v2778, 48
        %2780 = vset.pattern.permute.xlu0 %v2779
        %2781 = vperm.xlu0 %2780, %v2740
        %v2782 = vpop.permute.xlu0 %2781
        %v2783 = vlaneseq
        %v2784 = vshrl.u32 %v2783, 7
        %v2785 = vadd.s32 %v2784, 56
        %2786 = vset.pattern.permute.xlu0 %v2785
        %2787 = vperm.xlu0 %2786, %v2740
        %v2788 = vpop.permute.xlu0 %2787
        %v2789 = vlaneseq
        %v2790 = vshrl.u32 %v2789, 7
        %v2791 = vadd.s32 %v2790, 64
        %2792 = vset.pattern.permute.xlu0 %v2791
        %2793 = vperm.xlu0 %2792, %v2740
        %v2794 = vpop.permute.xlu0 %2793
        %v2795 = vlaneseq
        %v2796 = vshrl.u32 %v2795, 7
        %v2797 = vadd.s32 %v2796, 72
        %2798 = vset.pattern.permute.xlu0 %v2797
        %2799 = vperm.xlu0 %2798, %v2740
        %v2800 = vpop.permute.xlu0 %2799
        %v2801 = vlaneseq
        %v2802 = vshrl.u32 %v2801, 7
        %v2803 = vadd.s32 %v2802, 80
        %2804 = vset.pattern.permute.xlu0 %v2803
        %2805 = vperm.xlu0 %2804, %v2740
        %v2806 = vpop.permute.xlu0 %2805
        %v2807 = vlaneseq
        %v2808 = vshrl.u32 %v2807, 7
        %v2809 = vadd.s32 %v2808, 88
        %2810 = vset.pattern.permute.xlu0 %v2809
        %2811 = vperm.xlu0 %2810, %v2740
        %v2812 = vpop.permute.xlu0 %2811
        %v2813 = vlaneseq
        %v2814 = vshrl.u32 %v2813, 7
        %v2815 = vadd.s32 %v2814, 96
        %2816 = vset.pattern.permute.xlu0 %v2815
        %2817 = vperm.xlu0 %2816, %v2740
        %v2818 = vpop.permute.xlu0 %2817
        %v2819 = vlaneseq
        %v2820 = vshrl.u32 %v2819, 7
        %v2821 = vadd.s32 %v2820, 104
        %2822 = vset.pattern.permute.xlu0 %v2821
        %2823 = vperm.xlu0 %2822, %v2740
        %v2824 = vpop.permute.xlu0 %2823
        %v2825 = vlaneseq
        %v2826 = vshrl.u32 %v2825, 7
        %v2827 = vadd.s32 %v2826, 112
        %2828 = vset.pattern.permute.xlu0 %v2827
        %2829 = vperm.xlu0 %2828, %v2740
        %v2830 = vpop.permute.xlu0 %2829
        %v2831 = vlaneseq
        %v2832 = vshrl.u32 %v2831, 7
        %v2833 = vadd.s32 %v2832, 120
        %2834 = vset.pattern.permute.xlu0 %v2833
        %2835 = vperm.xlu0 %2834, %v2740
        %v2836 = vpop.permute.xlu0 %2835
        %v2837 = vperm.slane %v1253, 7
        %v2838 = vlaneseq
        %v2839 = vshrl.u32 %v2838, 7
        %2841 = vset.pattern.permute.xlu0 %v2839
        %2842 = vperm.xlu0 %2841, %v2837
        %v2843 = vpop.permute.xlu0 %2842
        %v2844 = vlaneseq
        %v2845 = vshrl.u32 %v2844, 7
        %v2846 = vadd.s32 %v2845, 8
        %2847 = vset.pattern.permute.xlu0 %v2846
        %2848 = vperm.xlu0 %2847, %v2837
        %v2849 = vpop.permute.xlu0 %2848
        %v2850 = vlaneseq
        %v2851 = vshrl.u32 %v2850, 7
        %v2852 = vadd.s32 %v2851, 16
        %2853 = vset.pattern.permute.xlu0 %v2852
        %2854 = vperm.xlu0 %2853, %v2837
        %v2855 = vpop.permute.xlu0 %2854
        %v2856 = vlaneseq
        %v2857 = vshrl.u32 %v2856, 7
        %v2858 = vadd.s32 %v2857, 24
        %2859 = vset.pattern.permute.xlu0 %v2858
        %2860 = vperm.xlu0 %2859, %v2837
        %v2861 = vpop.permute.xlu0 %2860
        %v2862 = vlaneseq
        %v2863 = vshrl.u32 %v2862, 7
        %v2864 = vadd.s32 %v2863, 32
        %2865 = vset.pattern.permute.xlu0 %v2864
        %2866 = vperm.xlu0 %2865, %v2837
        %v2867 = vpop.permute.xlu0 %2866
        %v2868 = vlaneseq
        %v2869 = vshrl.u32 %v2868, 7
        %v2870 = vadd.s32 %v2869, 40
        %2871 = vset.pattern.permute.xlu0 %v2870
        %2872 = vperm.xlu0 %2871, %v2837
        %v2873 = vpop.permute.xlu0 %2872
        %v2874 = vlaneseq
        %v2875 = vshrl.u32 %v2874, 7
        %v2876 = vadd.s32 %v2875, 48
        %2877 = vset.pattern.permute.xlu0 %v2876
        %2878 = vperm.xlu0 %2877, %v2837
        %v2879 = vpop.permute.xlu0 %2878
        %v2880 = vlaneseq
        %v2881 = vshrl.u32 %v2880, 7
        %v2882 = vadd.s32 %v2881, 56
        %2883 = vset.pattern.permute.xlu0 %v2882
        %2884 = vperm.xlu0 %2883, %v2837
        %v2885 = vpop.permute.xlu0 %2884
        %v2886 = vlaneseq
        %v2887 = vshrl.u32 %v2886, 7
        %v2888 = vadd.s32 %v2887, 64
        %2889 = vset.pattern.permute.xlu0 %v2888
        %2890 = vperm.xlu0 %2889, %v2837
        %v2891 = vpop.permute.xlu0 %2890
        %v2892 = vlaneseq
        %v2893 = vshrl.u32 %v2892, 7
        %v2894 = vadd.s32 %v2893, 72
        %2895 = vset.pattern.permute.xlu0 %v2894
        %2896 = vperm.xlu0 %2895, %v2837
        %v2897 = vpop.permute.xlu0 %2896
        %v2898 = vlaneseq
        %v2899 = vshrl.u32 %v2898, 7
        %v2900 = vadd.s32 %v2899, 80
        %2901 = vset.pattern.permute.xlu0 %v2900
        %2902 = vperm.xlu0 %2901, %v2837
        %v2903 = vpop.permute.xlu0 %2902
        %v2904 = vlaneseq
        %v2905 = vshrl.u32 %v2904, 7
        %v2906 = vadd.s32 %v2905, 88
        %2907 = vset.pattern.permute.xlu0 %v2906
        %2908 = vperm.xlu0 %2907, %v2837
        %v2909 = vpop.permute.xlu0 %2908
        %v2910 = vlaneseq
        %v2911 = vshrl.u32 %v2910, 7
        %v2912 = vadd.s32 %v2911, 96
        %2913 = vset.pattern.permute.xlu0 %v2912
        %2914 = vperm.xlu0 %2913, %v2837
        %v2915 = vpop.permute.xlu0 %2914
        %v2916 = vlaneseq
        %v2917 = vshrl.u32 %v2916, 7
        %v2918 = vadd.s32 %v2917, 104
        %2919 = vset.pattern.permute.xlu0 %v2918
        %2920 = vperm.xlu0 %2919, %v2837
        %v2921 = vpop.permute.xlu0 %2920
        %v2922 = vlaneseq
        %v2923 = vshrl.u32 %v2922, 7
        %v2924 = vadd.s32 %v2923, 112
        %2925 = vset.pattern.permute.xlu0 %v2924
        %2926 = vperm.xlu0 %2925, %v2837
        %v2927 = vpop.permute.xlu0 %2926
        %v2928 = vlaneseq
        %v2929 = vshrl.u32 %v2928, 7
        %v2930 = vadd.s32 %v2929, 120
        %2931 = vset.pattern.permute.xlu0 %v2930
        %2932 = vperm.xlu0 %2931, %v2837
        %v2933 = vpop.permute.xlu0 %2932
        %v2935 = vrot.slane %v895, 1
        %v2936 = vrot.slane %v895, 2
        %v2937 = vrot.slane %v895, 3
        %v2938 = vrot.slane %v895, 4
        %v2939 = vrot.slane %v895, 5
        %v2940 = vrot.slane %v895, 6
        %v2941 = vrot.slane %v895, 7
        %v2942 = vperm.slane %v895, 0
        %v2943 = vperm.slane %v2935, 0
        %v2944 = vperm.slane %v2936, 0
        %v2945 = vperm.slane %v2937, 0
        %v2946 = vperm.slane %v2938, 0
        %v2947 = vperm.slane %v2939, 0
        %v2948 = vperm.slane %v2940, 0
        %v2949 = vperm.slane %v2941, 0
        %v2958 = vmul.f32 %v2164, %v2942
        %v2959 = vmul.f32 %v2170, %v2942
        %v2960 = vmul.f32 %v2176, %v2942
        %v2961 = vmul.f32 %v2182, %v2942
        %v2962 = vmul.f32 %v2188, %v2942
        %v2963 = vmul.f32 %v2194, %v2942
        %v2964 = vmul.f32 %v2200, %v2942
        %v2965 = vmul.f32 %v2206, %v2942
        %v2966 = vmul.f32 %v2212, %v2942
        %v2967 = vmul.f32 %v2218, %v2942
        %v2968 = vmul.f32 %v2224, %v2942
        %v2969 = vmul.f32 %v2230, %v2942
        %v2970 = vmul.f32 %v2236, %v2942
        %v2971 = vmul.f32 %v2242, %v2942
        %v2972 = vmul.f32 %v2248, %v2942
        %v2973 = vmul.f32 %v2254, %v2942
        %v2974 = vmul.f32 %v2261, %v2943
        %v2975 = vmul.f32 %v2267, %v2943
        %v2976 = vmul.f32 %v2273, %v2943
        %v2977 = vmul.f32 %v2279, %v2943
        %v2978 = vmul.f32 %v2285, %v2943
        %v2979 = vmul.f32 %v2291, %v2943
        %v2980 = vmul.f32 %v2297, %v2943
        %v2981 = vmul.f32 %v2303, %v2943
        %v2982 = vmul.f32 %v2309, %v2943
        %v2983 = vmul.f32 %v2315, %v2943
        %v2984 = vmul.f32 %v2321, %v2943
        %v2985 = vmul.f32 %v2327, %v2943
        %v2986 = vmul.f32 %v2333, %v2943
        %v2987 = vmul.f32 %v2339, %v2943
        %v2988 = vmul.f32 %v2345, %v2943
        %v2989 = vmul.f32 %v2351, %v2943
        %v2990 = vmul.f32 %v2358, %v2944
        %v2991 = vmul.f32 %v2364, %v2944
        %v2992 = vmul.f32 %v2370, %v2944
        %v2993 = vmul.f32 %v2376, %v2944
        %v2994 = vmul.f32 %v2382, %v2944
        %v2995 = vmul.f32 %v2388, %v2944
        %v2996 = vmul.f32 %v2394, %v2944
        %v2997 = vmul.f32 %v2400, %v2944
        %v2998 = vmul.f32 %v2406, %v2944
        %v2999 = vmul.f32 %v2412, %v2944
        %v3000 = vmul.f32 %v2418, %v2944
        %v3001 = vmul.f32 %v2424, %v2944
        %v3002 = vmul.f32 %v2430, %v2944
        %v3003 = vmul.f32 %v2436, %v2944
        %v3004 = vmul.f32 %v2442, %v2944
        %v3005 = vmul.f32 %v2448, %v2944
        %v3006 = vmul.f32 %v2455, %v2945
        %v3007 = vmul.f32 %v2461, %v2945
        %v3008 = vmul.f32 %v2467, %v2945
        %v3009 = vmul.f32 %v2473, %v2945
        %v3010 = vmul.f32 %v2479, %v2945
        %v3011 = vmul.f32 %v2485, %v2945
        %v3012 = vmul.f32 %v2491, %v2945
        %v3013 = vmul.f32 %v2497, %v2945
        %v3014 = vmul.f32 %v2503, %v2945
        %v3015 = vmul.f32 %v2509, %v2945
        %v3016 = vmul.f32 %v2515, %v2945
        %v3017 = vmul.f32 %v2521, %v2945
        %v3018 = vmul.f32 %v2527, %v2945
        %v3019 = vmul.f32 %v2533, %v2945
        %v3020 = vmul.f32 %v2539, %v2945
        %v3021 = vmul.f32 %v2545, %v2945
        %v3022 = vmul.f32 %v2552, %v2946
        %v3023 = vmul.f32 %v2558, %v2946
        %v3024 = vmul.f32 %v2564, %v2946
        %v3025 = vmul.f32 %v2570, %v2946
        %v3026 = vmul.f32 %v2576, %v2946
        %v3027 = vmul.f32 %v2582, %v2946
        %v3028 = vmul.f32 %v2588, %v2946
        %v3029 = vmul.f32 %v2594, %v2946
        %v3030 = vmul.f32 %v2600, %v2946
        %v3031 = vmul.f32 %v2606, %v2946
        %v3032 = vmul.f32 %v2612, %v2946
        %v3033 = vmul.f32 %v2618, %v2946
        %v3034 = vmul.f32 %v2624, %v2946
        %v3035 = vmul.f32 %v2630, %v2946
        %v3036 = vmul.f32 %v2636, %v2946
        %v3037 = vmul.f32 %v2642, %v2946
        %v3038 = vmul.f32 %v2649, %v2947
        %v3039 = vmul.f32 %v2655, %v2947
        %v3040 = vmul.f32 %v2661, %v2947
        %v3041 = vmul.f32 %v2667, %v2947
        %v3042 = vmul.f32 %v2673, %v2947
        %v3043 = vmul.f32 %v2679, %v2947
        %v3044 = vmul.f32 %v2685, %v2947
        %v3045 = vmul.f32 %v2691, %v2947
        %v3046 = vmul.f32 %v2697, %v2947
        %v3047 = vmul.f32 %v2703, %v2947
        %v3048 = vmul.f32 %v2709, %v2947
        %v3049 = vmul.f32 %v2715, %v2947
        %v3050 = vmul.f32 %v2721, %v2947
        %v3051 = vmul.f32 %v2727, %v2947
        %v3052 = vmul.f32 %v2733, %v2947
        %v3053 = vmul.f32 %v2739, %v2947
        %v3054 = vmul.f32 %v2746, %v2948
        %v3055 = vmul.f32 %v2752, %v2948
        %v3056 = vmul.f32 %v2758, %v2948
        %v3057 = vmul.f32 %v2764, %v2948
        %v3058 = vmul.f32 %v2770, %v2948
        %v3059 = vmul.f32 %v2776, %v2948
        %v3060 = vmul.f32 %v2782, %v2948
        %v3061 = vmul.f32 %v2788, %v2948
        %v3062 = vmul.f32 %v2794, %v2948
        %v3063 = vmul.f32 %v2800, %v2948
        %v3064 = vmul.f32 %v2806, %v2948
        %v3065 = vmul.f32 %v2812, %v2948
        %v3066 = vmul.f32 %v2818, %v2948
        %v3067 = vmul.f32 %v2824, %v2948
        %v3068 = vmul.f32 %v2830, %v2948
        %v3069 = vmul.f32 %v2836, %v2948
        %v3070 = vmul.f32 %v2843, %v2949
        %v3071 = vmul.f32 %v2849, %v2949
        %v3072 = vmul.f32 %v2855, %v2949
        %v3073 = vmul.f32 %v2861, %v2949
        %v3074 = vmul.f32 %v2867, %v2949
        %v3075 = vmul.f32 %v2873, %v2949
        %v3076 = vmul.f32 %v2879, %v2949
        %v3077 = vmul.f32 %v2885, %v2949
        %v3078 = vmul.f32 %v2891, %v2949
        %v3079 = vmul.f32 %v2897, %v2949
        %v3080 = vmul.f32 %v2903, %v2949
        %v3081 = vmul.f32 %v2909, %v2949
        %v3082 = vmul.f32 %v2915, %v2949
        %v3083 = vmul.f32 %v2921, %v2949
        %v3084 = vmul.f32 %v2927, %v2949
        %v3085 = vmul.f32 %v2933, %v2949
        %v3086 = vadd.f32 %v2030, %v2958
        %v3087 = vadd.f32 %v2031, %v2959
        %v3088 = vadd.f32 %v2032, %v2960
        %v3089 = vadd.f32 %v2033, %v2961
        %v3090 = vadd.f32 %v2034, %v2962
        %v3091 = vadd.f32 %v2035, %v2963
        %v3092 = vadd.f32 %v2036, %v2964
        %v3093 = vadd.f32 %v2037, %v2965
        %v3094 = vadd.f32 %v2038, %v2966
        %v3095 = vadd.f32 %v2039, %v2967
        %v3096 = vadd.f32 %v2040, %v2968
        %v3097 = vadd.f32 %v2041, %v2969
        %v3098 = vadd.f32 %v2042, %v2970
        %v3099 = vadd.f32 %v2043, %v2971
        %v3100 = vadd.f32 %v2044, %v2972
        %v3101 = vadd.f32 %v2045, %v2973
        %v3102 = vadd.f32 %v2046, %v2974
        %v3103 = vadd.f32 %v2047, %v2975
        %v3104 = vadd.f32 %v2048, %v2976
        %v3105 = vadd.f32 %v2049, %v2977
        %v3106 = vadd.f32 %v2050, %v2978
        %v3107 = vadd.f32 %v2051, %v2979
        %v3108 = vadd.f32 %v2052, %v2980
        %v3109 = vadd.f32 %v2053, %v2981
        %v3110 = vadd.f32 %v2054, %v2982
        %v3111 = vadd.f32 %v2055, %v2983
        %v3112 = vadd.f32 %v2056, %v2984
        %v3113 = vadd.f32 %v2057, %v2985
        %v3114 = vadd.f32 %v2058, %v2986
        %v3115 = vadd.f32 %v2059, %v2987
        %v3116 = vadd.f32 %v2060, %v2988
        %v3117 = vadd.f32 %v2061, %v2989
        %v3118 = vadd.f32 %v2062, %v2990
        %v3119 = vadd.f32 %v2063, %v2991
        %v3120 = vadd.f32 %v2064, %v2992
        %v3121 = vadd.f32 %v2065, %v2993
        %v3122 = vadd.f32 %v2066, %v2994
        %v3123 = vadd.f32 %v2067, %v2995
        %v3124 = vadd.f32 %v2068, %v2996
        %v3125 = vadd.f32 %v2069, %v2997
        %v3126 = vadd.f32 %v2070, %v2998
        %v3127 = vadd.f32 %v2071, %v2999
        %v3128 = vadd.f32 %v2072, %v3000
        %v3129 = vadd.f32 %v2073, %v3001
        %v3130 = vadd.f32 %v2074, %v3002
        %v3131 = vadd.f32 %v2075, %v3003
        %v3132 = vadd.f32 %v2076, %v3004
        %v3133 = vadd.f32 %v2077, %v3005
        %v3134 = vadd.f32 %v2078, %v3006
        %v3135 = vadd.f32 %v2079, %v3007
        %v3136 = vadd.f32 %v2080, %v3008
        %v3137 = vadd.f32 %v2081, %v3009
        %v3138 = vadd.f32 %v2082, %v3010
        %v3139 = vadd.f32 %v2083, %v3011
        %v3140 = vadd.f32 %v2084, %v3012
        %v3141 = vadd.f32 %v2085, %v3013
        %v3142 = vadd.f32 %v2086, %v3014
        %v3143 = vadd.f32 %v2087, %v3015
        %v3144 = vadd.f32 %v2088, %v3016
        %v3145 = vadd.f32 %v2089, %v3017
        %v3146 = vadd.f32 %v2090, %v3018
        %v3147 = vadd.f32 %v2091, %v3019
        %v3148 = vadd.f32 %v2092, %v3020
        %v3149 = vadd.f32 %v2093, %v3021
        %v3150 = vadd.f32 %v2094, %v3022
        %v3151 = vadd.f32 %v2095, %v3023
        %v3152 = vadd.f32 %v2096, %v3024
        %v3153 = vadd.f32 %v2097, %v3025
        %v3154 = vadd.f32 %v2098, %v3026
        %v3155 = vadd.f32 %v2099, %v3027
        %v3156 = vadd.f32 %v2100, %v3028
        %v3157 = vadd.f32 %v2101, %v3029
        %v3158 = vadd.f32 %v2102, %v3030
        %v3159 = vadd.f32 %v2103, %v3031
        %v3160 = vadd.f32 %v2104, %v3032
        %v3161 = vadd.f32 %v2105, %v3033
        %v3162 = vadd.f32 %v2106, %v3034
        %v3163 = vadd.f32 %v2107, %v3035
        %v3164 = vadd.f32 %v2108, %v3036
        %v3165 = vadd.f32 %v2109, %v3037
        %v3166 = vadd.f32 %v2110, %v3038
        %v3167 = vadd.f32 %v2111, %v3039
        %v3168 = vadd.f32 %v2112, %v3040
        %v3169 = vadd.f32 %v2113, %v3041
        %v3170 = vadd.f32 %v2114, %v3042
        %v3171 = vadd.f32 %v2115, %v3043
        %v3172 = vadd.f32 %v2116, %v3044
        %v3173 = vadd.f32 %v2117, %v3045
        %v3174 = vadd.f32 %v2118, %v3046
        %v3175 = vadd.f32 %v2119, %v3047
        %v3176 = vadd.f32 %v2120, %v3048
        %v3177 = vadd.f32 %v2121, %v3049
        %v3178 = vadd.f32 %v2122, %v3050
        %v3179 = vadd.f32 %v2123, %v3051
        %v3180 = vadd.f32 %v2124, %v3052
        %v3181 = vadd.f32 %v2125, %v3053
        %v3182 = vadd.f32 %v2126, %v3054
        %v3183 = vadd.f32 %v2127, %v3055
        %v3184 = vadd.f32 %v2128, %v3056
        %v3185 = vadd.f32 %v2129, %v3057
        %v3186 = vadd.f32 %v2130, %v3058
        %v3187 = vadd.f32 %v2131, %v3059
        %v3188 = vadd.f32 %v2132, %v3060
        %v3189 = vadd.f32 %v2133, %v3061
        %v3190 = vadd.f32 %v2134, %v3062
        %v3191 = vadd.f32 %v2135, %v3063
        %v3192 = vadd.f32 %v2136, %v3064
        %v3193 = vadd.f32 %v2137, %v3065
        %v3194 = vadd.f32 %v2138, %v3066
        %v3195 = vadd.f32 %v2139, %v3067
        %v3196 = vadd.f32 %v2140, %v3068
        %v3197 = vadd.f32 %v2141, %v3069
        %v3198 = vadd.f32 %v2142, %v3070
        %v3199 = vadd.f32 %v2143, %v3071
        %v3200 = vadd.f32 %v2144, %v3072
        %v3201 = vadd.f32 %v2145, %v3073
        %v3202 = vadd.f32 %v2146, %v3074
        %v3203 = vadd.f32 %v2147, %v3075
        %v3204 = vadd.f32 %v2148, %v3076
        %v3205 = vadd.f32 %v2149, %v3077
        %v3206 = vadd.f32 %v2150, %v3078
        %v3207 = vadd.f32 %v2151, %v3079
        %v3208 = vadd.f32 %v2152, %v3080
        %v3209 = vadd.f32 %v2153, %v3081
        %v3210 = vadd.f32 %v2154, %v3082
        %v3211 = vadd.f32 %v2155, %v3083
        %v3212 = vadd.f32 %v2156, %v3084
        %v3213 = vadd.f32 %v2157, %v3085
        %3214 = vst [vmem:[%s606] sm:$0xff] %v3086
        %3215 = vst [vmem:[%s606 + $0x8] sm:$0xff] %v3087
        %3216 = vst [vmem:[%s606 + $0x10] sm:$0xff] %v3088
        %3217 = vst [vmem:[%s606 + $0x18] sm:$0xff] %v3089
        %3218 = vst [vmem:[%s606 + $0x20] sm:$0xff] %v3090
        %3219 = vst [vmem:[%s606 + $0x28] sm:$0xff] %v3091
        %3220 = vst [vmem:[%s606 + $0x30] sm:$0xff] %v3092
        %3221 = vst [vmem:[%s606 + $0x38] sm:$0xff] %v3093
        %3222 = vst [vmem:[%s606 + $0x40] sm:$0xff] %v3094
        %3223 = vst [vmem:[%s606 + $0x48] sm:$0xff] %v3095
        %3224 = vst [vmem:[%s606 + $0x50] sm:$0xff] %v3096
        %3225 = vst [vmem:[%s606 + $0x58] sm:$0xff] %v3097
        %3226 = vst [vmem:[%s606 + $0x60] sm:$0xff] %v3098
        %3227 = vst [vmem:[%s606 + $0x68] sm:$0xff] %v3099
        %3228 = vst [vmem:[%s606 + $0x70] sm:$0xff] %v3100
        %3229 = vst [vmem:[%s606 + $0x78] sm:$0xff] %v3101
        %3230 = vst [vmem:[%s606 + $0x80] sm:$0xff] %v3102
        %3231 = vst [vmem:[%s606 + $0x88] sm:$0xff] %v3103
        %3232 = vst [vmem:[%s606 + $0x90] sm:$0xff] %v3104
        %3233 = vst [vmem:[%s606 + $0x98] sm:$0xff] %v3105
        %3234 = vst [vmem:[%s606 + $0xa0] sm:$0xff] %v3106
        %3235 = vst [vmem:[%s606 + $0xa8] sm:$0xff] %v3107
        %3236 = vst [vmem:[%s606 + $0xb0] sm:$0xff] %v3108
        %3237 = vst [vmem:[%s606 + $0xb8] sm:$0xff] %v3109
        %3238 = vst [vmem:[%s606 + $0xc0] sm:$0xff] %v3110
        %3239 = vst [vmem:[%s606 + $0xc8] sm:$0xff] %v3111
        %3240 = vst [vmem:[%s606 + $0xd0] sm:$0xff] %v3112
        %3241 = vst [vmem:[%s606 + $0xd8] sm:$0xff] %v3113
        %3242 = vst [vmem:[%s606 + $0xe0] sm:$0xff] %v3114
        %3243 = vst [vmem:[%s606 + $0xe8] sm:$0xff] %v3115
        %3244 = vst [vmem:[%s606 + $0xf0] sm:$0xff] %v3116
        %3245 = vst [vmem:[%s606 + $0xf8] sm:$0xff] %v3117
        %3246 = vst [vmem:[%s606 + $0x100] sm:$0xff] %v3118
        %3247 = vst [vmem:[%s606 + $0x108] sm:$0xff] %v3119
        %3248 = vst [vmem:[%s606 + $0x110] sm:$0xff] %v3120
        %3249 = vst [vmem:[%s606 + $0x118] sm:$0xff] %v3121
        %3250 = vst [vmem:[%s606 + $0x120] sm:$0xff] %v3122
        %3251 = vst [vmem:[%s606 + $0x128] sm:$0xff] %v3123
        %3252 = vst [vmem:[%s606 + $0x130] sm:$0xff] %v3124
        %3253 = vst [vmem:[%s606 + $0x138] sm:$0xff] %v3125
        %3254 = vst [vmem:[%s606 + $0x140] sm:$0xff] %v3126
        %3255 = vst [vmem:[%s606 + $0x148] sm:$0xff] %v3127
        %3256 = vst [vmem:[%s606 + $0x150] sm:$0xff] %v3128
        %3257 = vst [vmem:[%s606 + $0x158] sm:$0xff] %v3129
        %3258 = vst [vmem:[%s606 + $0x160] sm:$0xff] %v3130
        %3259 = vst [vmem:[%s606 + $0x168] sm:$0xff] %v3131
        %3260 = vst [vmem:[%s606 + $0x170] sm:$0xff] %v3132
        %3261 = vst [vmem:[%s606 + $0x178] sm:$0xff] %v3133
        %3262 = vst [vmem:[%s606 + $0x180] sm:$0xff] %v3134
        %3263 = vst [vmem:[%s606 + $0x188] sm:$0xff] %v3135
        %3264 = vst [vmem:[%s606 + $0x190] sm:$0xff] %v3136
        %3265 = vst [vmem:[%s606 + $0x198] sm:$0xff] %v3137
        %3266 = vst [vmem:[%s606 + $0x1a0] sm:$0xff] %v3138
        %3267 = vst [vmem:[%s606 + $0x1a8] sm:$0xff] %v3139
        %3268 = vst [vmem:[%s606 + $0x1b0] sm:$0xff] %v3140
        %3269 = vst [vmem:[%s606 + $0x1b8] sm:$0xff] %v3141
        %3270 = vst [vmem:[%s606 + $0x1c0] sm:$0xff] %v3142
        %3271 = vst [vmem:[%s606 + $0x1c8] sm:$0xff] %v3143
        %3272 = vst [vmem:[%s606 + $0x1d0] sm:$0xff] %v3144
        %3273 = vst [vmem:[%s606 + $0x1d8] sm:$0xff] %v3145
        %3274 = vst [vmem:[%s606 + $0x1e0] sm:$0xff] %v3146
        %3275 = vst [vmem:[%s606 + $0x1e8] sm:$0xff] %v3147
        %3276 = vst [vmem:[%s606 + $0x1f0] sm:$0xff] %v3148
        %3277 = vst [vmem:[%s606 + $0x1f8] sm:$0xff] %v3149
        %3278 = vst [vmem:[%s606 + $0x200] sm:$0xff] %v3150
        %3279 = vst [vmem:[%s606 + $0x208] sm:$0xff] %v3151
        %3280 = vst [vmem:[%s606 + $0x210] sm:$0xff] %v3152
        %3281 = vst [vmem:[%s606 + $0x218] sm:$0xff] %v3153
        %3282 = vst [vmem:[%s606 + $0x220] sm:$0xff] %v3154
        %3283 = vst [vmem:[%s606 + $0x228] sm:$0xff] %v3155
        %3284 = vst [vmem:[%s606 + $0x230] sm:$0xff] %v3156
        %3285 = vst [vmem:[%s606 + $0x238] sm:$0xff] %v3157
        %3286 = vst [vmem:[%s606 + $0x240] sm:$0xff] %v3158
        %3287 = vst [vmem:[%s606 + $0x248] sm:$0xff] %v3159
        %3288 = vst [vmem:[%s606 + $0x250] sm:$0xff] %v3160
        %3289 = vst [vmem:[%s606 + $0x258] sm:$0xff] %v3161
        %3290 = vst [vmem:[%s606 + $0x260] sm:$0xff] %v3162
        %3291 = vst [vmem:[%s606 + $0x268] sm:$0xff] %v3163
        %3292 = vst [vmem:[%s606 + $0x270] sm:$0xff] %v3164
        %3293 = vst [vmem:[%s606 + $0x278] sm:$0xff] %v3165
        %3294 = vst [vmem:[%s606 + $0x280] sm:$0xff] %v3166
        %3295 = vst [vmem:[%s606 + $0x288] sm:$0xff] %v3167
        %3296 = vst [vmem:[%s606 + $0x290] sm:$0xff] %v3168
        %3297 = vst [vmem:[%s606 + $0x298] sm:$0xff] %v3169
        %3298 = vst [vmem:[%s606 + $0x2a0] sm:$0xff] %v3170
        %3299 = vst [vmem:[%s606 + $0x2a8] sm:$0xff] %v3171
        %3300 = vst [vmem:[%s606 + $0x2b0] sm:$0xff] %v3172
        %3301 = vst [vmem:[%s606 + $0x2b8] sm:$0xff] %v3173
        %3302 = vst [vmem:[%s606 + $0x2c0] sm:$0xff] %v3174
        %3303 = vst [vmem:[%s606 + $0x2c8] sm:$0xff] %v3175
        %3304 = vst [vmem:[%s606 + $0x2d0] sm:$0xff] %v3176
        %3305 = vst [vmem:[%s606 + $0x2d8] sm:$0xff] %v3177
        %3306 = vst [vmem:[%s606 + $0x2e0] sm:$0xff] %v3178
        %3307 = vst [vmem:[%s606 + $0x2e8] sm:$0xff] %v3179
        %3308 = vst [vmem:[%s606 + $0x2f0] sm:$0xff] %v3180
        %3309 = vst [vmem:[%s606 + $0x2f8] sm:$0xff] %v3181
        %3310 = vst [vmem:[%s606 + $0x300] sm:$0xff] %v3182
        %3311 = vst [vmem:[%s606 + $0x308] sm:$0xff] %v3183
        %3312 = vst [vmem:[%s606 + $0x310] sm:$0xff] %v3184
        %3313 = vst [vmem:[%s606 + $0x318] sm:$0xff] %v3185
        %3314 = vst [vmem:[%s606 + $0x320] sm:$0xff] %v3186
        %3315 = vst [vmem:[%s606 + $0x328] sm:$0xff] %v3187
        %3316 = vst [vmem:[%s606 + $0x330] sm:$0xff] %v3188
        %3317 = vst [vmem:[%s606 + $0x338] sm:$0xff] %v3189
        %3318 = vst [vmem:[%s606 + $0x340] sm:$0xff] %v3190
        %3319 = vst [vmem:[%s606 + $0x348] sm:$0xff] %v3191
        %3320 = vst [vmem:[%s606 + $0x350] sm:$0xff] %v3192
        %3321 = vst [vmem:[%s606 + $0x358] sm:$0xff] %v3193
        %3322 = vst [vmem:[%s606 + $0x360] sm:$0xff] %v3194
        %3323 = vst [vmem:[%s606 + $0x368] sm:$0xff] %v3195
        %3324 = vst [vmem:[%s606 + $0x370] sm:$0xff] %v3196
        %3325 = vst [vmem:[%s606 + $0x378] sm:$0xff] %v3197
        %3326 = vst [vmem:[%s606 + $0x380] sm:$0xff] %v3198
        %3327 = vst [vmem:[%s606 + $0x388] sm:$0xff] %v3199
        %3328 = vst [vmem:[%s606 + $0x390] sm:$0xff] %v3200
        %3329 = vst [vmem:[%s606 + $0x398] sm:$0xff] %v3201
        %3330 = vst [vmem:[%s606 + $0x3a0] sm:$0xff] %v3202
        %3331 = vst [vmem:[%s606 + $0x3a8] sm:$0xff] %v3203
        %3332 = vst [vmem:[%s606 + $0x3b0] sm:$0xff] %v3204
        %3333 = vst [vmem:[%s606 + $0x3b8] sm:$0xff] %v3205
        %3334 = vst [vmem:[%s606 + $0x3c0] sm:$0xff] %v3206
        %3335 = vst [vmem:[%s606 + $0x3c8] sm:$0xff] %v3207
        %3336 = vst [vmem:[%s606 + $0x3d0] sm:$0xff] %v3208
        %3337 = vst [vmem:[%s606 + $0x3d8] sm:$0xff] %v3209
        %3338 = vst [vmem:[%s606 + $0x3e0] sm:$0xff] %v3210
        %3339 = vst [vmem:[%s606 + $0x3e8] sm:$0xff] %v3211
        %3340 = vst [vmem:[%s606 + $0x3f0] sm:$0xff] %v3212
        %3341 = vst [vmem:[%s606 + $0x3f8] sm:$0xff] %v3213
        %s3342 = sand.u32 %s263, 1
        %s3343 = scalar_lea.sflag [#allocation4], %s3342
        %s3344 = sand.u32 %s263, 1
        %s3345 = smul.addr %s3344, 8
        %s3346 = scalar_lea.vmem [#allocation16], %s3345
        %s3347 = sand.u32 %s39, 1
        %s3348 = scalar_lea.sflag [#allocation18], %s3347
        %s3349 = sand.u32 %s291, 1
        %s3350 = smul.addr %s3349, 1024
        %s3351 = scalar_lea.vmem [#allocation17], %s3350
        %s3352 = sand.u32 %s39, 1
        %s3353 = scalar_lea.sflag [#allocation18], %s3352
        %s3354 = sand.u32 %s319, 1
        %s3355 = smul.addr %s3354, 8
        %s3356 = scalar_lea.vmem [#allocation19], %s3355
        // Predicated region
        $region85: #{_mlstm_cell_impl.1} parent=51 // pred_check
          %p3357 = pneg %p273
        $region86: #{_mlstm_cell_impl.1} parent=51 // pred_check_branch
          %3359 = sbr.rel (%p3357) target = $region88
        $region87: #{_mlstm_cell_impl.1} parent=51 // pred_region
          %3361 = vsyncadd %s3343, 0
          %s3362 = sadd.s32 %s44, %s43
          %s3363 = smul.addr %s3362, 8
          %s3364 = scalar_lea.hbm %s8, %s3363
          %s3366 = sshll.u32 %s3346, 4
          %s3367 = int_to_ptr.vmem [resolvable:$true] %s3366
          %s3368 = sshll.u32 %s3364, 4
          %s3369 = int_to_ptr.hbm [resolvable:$true] %s3368
          %3371 = dma.vmem_to_hbm [thread:$0]  %s3367, 128, %s3369, %s3343
        $region88: #{_mlstm_cell_impl.1} parent=51 // pred_fallthru
          _
        // Predicated region
        $region89: #{_mlstm_cell_impl.1} parent=51 // pred_check
          %p3372 = pneg %p301
        $region90: #{_mlstm_cell_impl.1} parent=51 // pred_check_branch
          %3374 = sbr.rel (%p3372) target = $region92
        $region91: #{_mlstm_cell_impl.1} parent=51 // pred_region
          %s3375 = smul.u32 8, %s43
          %3377 = vsyncadd %s3348, 0
          %s3378 = smul.addr %s3375, 16
          %s3379 = sadd.s32 %s44, %s3378
          %s3380 = smul.addr %s3379, 8
          %s3381 = scalar_lea.hbm %s9, %s3380
          %s3382 = sshll.u32 %s3351, 4
          %s3383 = int_to_ptr.vmem [resolvable:$true] %s3382
          %s3384 = sshll.u32 %s3381, 4
          %s3385 = int_to_ptr.hbm [resolvable:$true] %s3384
          %3390 = dma.vmem_to_hbm [thread:$0]  %s3383, 16384, %s3385, %s3348, 128, 128, 8
        $region92: #{_mlstm_cell_impl.1} parent=51 // pred_fallthru
          _
        // Predicated region
        $region93: #{_mlstm_cell_impl.1} parent=51 // pred_check
          %p3391 = pneg %p329
        $region94: #{_mlstm_cell_impl.1} parent=51 // pred_check_branch
          %3393 = sbr.rel (%p3391) target = $region96
        $region95: #{_mlstm_cell_impl.1} parent=51 // pred_region
          %3395 = vsyncadd %s3353, 0
          %s3396 = sadd.s32 %s44, %s43
          %s3397 = smul.addr %s3396, 8
          %s3398 = scalar_lea.hbm %s10, %s3397
          %s3400 = sshll.u32 %s3356, 4
          %s3401 = int_to_ptr.vmem [resolvable:$true] %s3400
          %s3402 = sshll.u32 %s3398, 4
          %s3403 = int_to_ptr.hbm [resolvable:$true] %s3402
          %3405 = dma.vmem_to_hbm [thread:$0]  %s3401, 128, %s3403, %s3353
        $region96: #{_mlstm_cell_impl.1} parent=51 // pred_fallthru
          _
      $region52: #{_mlstm_cell_impl.1} parent=5 // pred_fallthru
        _
      %p3406 = scmp.le.s32.totalorder 2, %s34
      // Predicated region
      $region97: #{_mlstm_cell_impl.1} parent=5 // pred_check
        %p3407 = pneg %p3406
      $region98: #{_mlstm_cell_impl.1} parent=5 // pred_check_branch
        %3409 = sbr.rel (%p3407) target = $region100
      $region99: #{_mlstm_cell_impl.1} parent=5 // pred_region
        %s3410 = ssub.s32 %s34, 2
        // Predicated region
        $region101: #{_mlstm_cell_impl.1} parent=99 // pred_check
          %p3411 = pneg %p279
        $region102: #{_mlstm_cell_impl.1} parent=99 // pred_check_branch
          %3413 = sbr.rel (%p3411) target = $region104
        $region103: #{_mlstm_cell_impl.1} parent=99 // pred_region
          %s3414 = sand.u32 %s264, 1
          %s3415 = scalar_lea.sflag [#allocation4], %s3414
          %s3416 = sand.u32 %s264, 1
          %s3417 = smul.addr %s3416, 8
          %s3418 = scalar_lea.vmem [#allocation16], %s3417
          %3420 = dma.done %s3415, 128
        $region104: #{_mlstm_cell_impl.1} parent=99 // pred_fallthru
          _
        // Predicated region
        $region105: #{_mlstm_cell_impl.1} parent=99 // pred_check
          %p3421 = pneg %p307
        $region106: #{_mlstm_cell_impl.1} parent=99 // pred_check_branch
          %3423 = sbr.rel (%p3421) target = $region108
        $region107: #{_mlstm_cell_impl.1} parent=99 // pred_region
          %s3424 = sand.u32 %s40, 1
          %s3425 = scalar_lea.sflag [#allocation18], %s3424
          %s3426 = sand.u32 %s292, 1
          %s3427 = smul.addr %s3426, 1024
          %s3428 = scalar_lea.vmem [#allocation17], %s3427
          %3430 = dma.done %s3425, 16384
        $region108: #{_mlstm_cell_impl.1} parent=99 // pred_fallthru
          _
        // Predicated region
        $region109: #{_mlstm_cell_impl.1} parent=99 // pred_check
          %p3431 = pneg %p335
        $region110: #{_mlstm_cell_impl.1} parent=99 // pred_check_branch
          %3433 = sbr.rel (%p3431) target = $region112
        $region111: #{_mlstm_cell_impl.1} parent=99 // pred_region
          %s3434 = sand.u32 %s40, 1
          %s3435 = scalar_lea.sflag [#allocation18], %s3434
          %s3436 = sand.u32 %s320, 1
          %s3437 = smul.addr %s3436, 8
          %s3438 = scalar_lea.vmem [#allocation19], %s3437
          %3440 = dma.done %s3435, 128
        $region112: #{_mlstm_cell_impl.1} parent=99 // pred_fallthru
          _
      $region100: #{_mlstm_cell_impl.1} parent=5 // pred_fallthru
        _
    $region6: #{_mlstm_cell_impl.1} parent=1 // loop_footer
      %s38 = sadd.s32 1, %s34
    $region7: #{_mlstm_cell_impl.1} parent=1 // loop_footer_branch
      %33 = sbr.rel target = $region3
    $region8: #{_mlstm_cell_impl.1} parent=1 // loop_exit
      _
    %3441 = vsyncpa [#allocation3], 1
    %s3442 = scalar_lea.sflag [#allocation3], 1
    %3443 = vsyncpa %s3442, 1
    %3444 = vsyncpa [#allocation6], 1
    %3445 = vsyncpa [#allocation9], 1
    %3446 = vsyncpa [#allocation12], 1
    %s3447 = scalar_lea.sflag [#allocation12], 1
    %3448 = vsyncpa %s3447, 1
    %3449 = vsyncpa [#allocation15], 1
    %s3450 = scalar_lea.sflag [#allocation15], 1
    %3451 = vsyncpa %s3450, 1
    %3452 = vsyncpa [#allocation4], 1
    %s3453 = scalar_lea.sflag [#allocation4], 1
    %3454 = vsyncpa %s3453, 1
    %3455 = vsyncpa [#allocation18], 1
    %s3456 = scalar_lea.sflag [#allocation18], 1
    %3457 = vsyncpa %s3456, 1

</llo_original>
